<compile_context>
chip_gen: v6e
topology: v6e:2x2x1
jax: 0.10.0
libtpu: 0.0.40
codegen_flags: <defaults>
</compile_context>

<pallas_src>
import jax
import jax.numpy as jnp
from jax.experimental import pallas as pl
from jax.experimental.pallas import tpu as pltpu


# ------------------------- fused TextLSTM kernel ----------------------------
def text_lstm_kernel(x_ref, h0_ref, c0_ref, wx_ref, wh_ref, b_ref,
                     wfc_ref, bfc_ref,
                     logits_ref, h_out_ref, c_out_ref,
                     xp_sc, hseq_sc):
    """Fused input-projection + LSTM recurrence + FC head.

    x_ref:    (B, T, E)   embedded tokens, batch-first
    h0_ref:   (B, H)      initial hidden state
    c0_ref:   (B, H)      initial cell state
    wx_ref:   (E, 4H)     transposed weight_ih
    wh_ref:   (H, 4H)     transposed weight_hh
    b_ref:    (1, 4H)     b_ih + b_hh
    wfc_ref:  (H, V)      transposed fc.weight
    bfc_ref:  (1, V)      fc.bias
    logits_ref: (B*T, V)  output logits (lane-dense)
    h_out_ref/c_out_ref: (B, H) final states
    xp_sc:    (B, T, 4H)  VMEM scratch: precomputed input projection
    hseq_sc:  (B, T, H)   VMEM scratch: per-step hidden states
    """
    B, T, E = x_ref.shape
    H = h0_ref.shape[1]

    # ---- Phase 1: input projection for ALL timesteps, one big MXU matmul ----
    x2d = x_ref[...].reshape(B * T, E)                       # free view (T%8==0)
    xp = (jnp.dot(x2d, wx_ref[...], preferred_element_type=jnp.float32)
          + b_ref[...])                                      # (B*T, 4H)
    xp_sc[...] = xp.reshape(B, T, 4 * H)

    # ---- Phase 2: recurrence. Only (B,H)@(H,4H) + VPU/EUP gate math per step.
    # Trace-time unrolled loop (T is a small static constant): h/c stay in
    # vregs, all indices are static, and the LLO scheduler sees straight-line
    # code so the xp_sc loads can be hoisted off the serial h-dependency chain.
    wh = wh_ref[...]
    h = h0_ref[...].astype(jnp.float32)
    c = c0_ref[...].astype(jnp.float32)
    for t in range(T):
        gates = xp_sc[:, t, :] + jnp.dot(h, wh,
                                         preferred_element_type=jnp.float32)
        # H is a multiple of 128 -> each gate slice is a whole lane chunk.
        i_g = jax.nn.sigmoid(gates[:, 0 * H:1 * H])
        f_g = jax.nn.sigmoid(gates[:, 1 * H:2 * H])
        g_g = jnp.tanh(gates[:, 2 * H:3 * H])
        o_g = jax.nn.sigmoid(gates[:, 3 * H:4 * H])
        c = f_g * c + i_g * g_g
        h = o_g * jnp.tanh(c)
        hseq_sc[:, t, :] = h

    # Final states written exactly once (not every timestep).
    h_out_ref[...] = h.astype(h_out_ref.dtype)
    c_out_ref[...] = c.astype(c_out_ref.dtype)

    # ---- Phase 3: FC head over all timesteps at once -> lane-dense store ----
    hs = hseq_sc[...].reshape(B * T, H)                      # free view (T%8==0)
    logits_ref[...] = (jnp.dot(hs, wfc_ref[...],
                               preferred_element_type=jnp.float32)
                       + bfc_ref[...]).astype(logits_ref.dtype)


# ------------------------- TextLSTM forward (wrapper) -----------------------
def text_lstm_forward(tokens, h0, c0, params):
    """tokens: (B, T) int32; h0, c0: (num_layers=1, B, H).
    Returns (logits (B*T, V), (h, c)) exactly like the PyTorch module."""
    B, T = tokens.shape
    H = params["wh"].shape[0]
    V = params["w_fc"].shape[1]

    # Embedding lookup stays in XLA (data-dependent row gather); everything
    # downstream is fused into a single Pallas kernel -- no wrapper transposes,
    # no intermediate HBM traffic between the LSTM and the FC head.
    x_emb = params["embedding"][tokens]                      # (B, T, E)

    logits, h_f, c_f = pl.pallas_call(
        text_lstm_kernel,
        out_shape=(
            jax.ShapeDtypeStruct((B * T, V), jnp.float32),   # logits
            jax.ShapeDtypeStruct((B, H), jnp.float32),       # final h
            jax.ShapeDtypeStruct((B, H), jnp.float32),       # final c
        ),
        scratch_shapes=[
            pltpu.VMEM((B, T, 4 * H), jnp.float32),          # input projection
            pltpu.VMEM((B, T, H), jnp.float32),              # per-step hiddens
        ],
    )(x_emb, h0[0], c0[0],
      params["wx"], params["wh"], params["b_lstm"],
      params["w_fc"], params["b_fc"])

    return logits, (h_f[None], c_f[None])


# ----------------------------- pure-JAX reference ---------------------------
def reference_forward(tokens, h0, c0, params):
    x_emb = params["embedding"][tokens]                      # (B, T, E)
    H = params["wh"].shape[0]

    def step(carry, x_t):
        h, c = carry
        gates = x_t @ params["wx"] + h @ params["wh"] + params["b_lstm"][0]
        i = jax.nn.sigmoid(gates[:, 0 * H:1 * H])
        f = jax.nn.sigmoid(gates[:, 1 * H:2 * H])
        g = jnp.tanh(gates[:, 2 * H:3 * H])
        o = jax.nn.sigmoid(gates[:, 3 * H:4 * H])
        c = f * c + i * g
        h = o * jnp.tanh(c)
        return (h, c), h

    (h_f, c_f), out_tbh = jax.lax.scan(step, (h0[0], c0[0]),
                                       jnp.transpose(x_emb, (1, 0, 2)))
    out = jnp.transpose(out_tbh, (1, 0, 2)).reshape(-1, H)
    logits = out @ params["w_fc"] + params["b_fc"][0]
    return logits, (h_f[None], c_f[None])


# ---------------------------------- main -------------------------------------
if __name__ == "__main__":
    # Small shapes consistent with the module (embedding -> LSTM -> Linear).
    # E = 128 matches the module; H = 128 / V = 256 keep gate slices and the
    # logits store lane-aligned; B = 8 fills all sublanes.
    vocab_size, embedding_size, hidden_size, num_layers = 256, 128, 128, 1
    B, T = 8, 8

    key = jax.random.PRNGKey(0)
    k_emb, k_wih, k_whh, k_bih, k_bhh, k_wfc, k_bfc, k_tok = jax.random.split(key, 8)

    H, E, V = hidden_size, embedding_size, vocab_size
    s = 1.0 / jnp.sqrt(jnp.float32(H))

    # PyTorch parameter shapes: weight_ih (4H,E), weight_hh (4H,H), biases (4H,),
    # fc.weight (V,H), fc.bias (V,). Stored transposed for the kernel matmuls.
    w_ih = jax.random.uniform(k_wih, (4 * H, E), jnp.float32, -s, s)
    w_hh = jax.random.uniform(k_whh, (4 * H, H), jnp.float32, -s, s)
    b_ih = jax.random.uniform(k_bih, (4 * H,), jnp.float32, -s, s)
    b_hh = jax.random.uniform(k_bhh, (4 * H,), jnp.float32, -s, s)
    w_fc = jax.random.uniform(k_wfc, (V, H), jnp.float32, -s, s)
    b_fc = jax.random.uniform(k_bfc, (V,), jnp.float32, -s, s)

    params = {
        "embedding": jax.random.normal(k_emb, (V, E), jnp.float32),
        "wx": w_ih.T,                              # (E, 4H)
        "wh": w_hh.T,                              # (H, 4H)
        "b_lstm": (b_ih + b_hh)[None, :],          # (1, 4H)
        "w_fc": w_fc.T,                            # (H, V)
        "b_fc": b_fc[None, :],                     # (1, V)
    }

    tokens = jax.random.randint(k_tok, (B, T), 0, V, dtype=jnp.int32)
    h0 = jnp.zeros((num_layers, B, H), jnp.float32)
    c0 = jnp.zeros((num_layers, B, H), jnp.float32)

    logits, (h_out, c_out) = text_lstm_forward(tokens, h0, c0, params)
    jax.block_until_ready((logits, h_out, c_out))

    ref_logits, (ref_h, ref_c) = reference_forward(tokens, h0, c0, params)
    assert logits.shape == (B * T, V)
    assert h_out.shape == (num_layers, B, H) and c_out.shape == (num_layers, B, H)
    assert jnp.allclose(logits, ref_logits, atol=2e-3, rtol=2e-3)
    assert jnp.allclose(h_out, ref_h, atol=2e-3, rtol=2e-3)
    assert jnp.allclose(c_out, ref_c, atol=2e-3, rtol=2e-3)

    print("KERNEL_OK")
</pallas_src>

<mosaic_0001>
module attributes {stable_mosaic.version = 11 : i64} {
  func.func @text_lstm_kernel(%arg0: memref<8x8x128xf32, #tpu.memory_space<vmem>>, %arg1: memref<8x128xf32, #tpu.memory_space<vmem>>, %arg2: memref<8x128xf32, #tpu.memory_space<vmem>>, %arg3: memref<128x512xf32, #tpu.memory_space<vmem>>, %arg4: memref<128x512xf32, #tpu.memory_space<vmem>>, %arg5: memref<1x512xf32, #tpu.memory_space<vmem>>, %arg6: memref<128x256xf32, #tpu.memory_space<vmem>>, %arg7: memref<1x256xf32, #tpu.memory_space<vmem>>, %arg8: memref<64x256xf32, #tpu.memory_space<vmem>>, %arg9: memref<8x128xf32, #tpu.memory_space<vmem>>, %arg10: memref<8x128xf32, #tpu.memory_space<vmem>>, %arg11: memref<8x8x512xf32, #tpu.memory_space<vmem>>, %arg12: memref<8x8x128xf32, #tpu.memory_space<vmem>>) attributes {dimension_semantics = [], scalar_prefetch = 0 : i64, scratch_operands = 2 : i64, tpu.core_type = #tpu.core_type<tc>} {
    %c0 = arith.constant 0 : index
    %c0_0 = arith.constant 0 : index
    %c0_1 = arith.constant 0 : index
    %0 = vector.load %arg0[%c0, %c0_0, %c0_1] : memref<8x8x128xf32, #tpu.memory_space<vmem>>, vector<8x8x128xf32>
    %1 = vector.shape_cast %0 : vector<8x8x128xf32> to vector<64x128xf32>
    %c0_2 = arith.constant 0 : index
    %c0_3 = arith.constant 0 : index
    %2 = vector.load %arg3[%c0_2, %c0_3] : memref<128x512xf32, #tpu.memory_space<vmem>>, vector<128x512xf32>
    %cst = arith.constant dense<0.000000e+00> : vector<64x512xf32>
    %3 = tpu.matmul %1, %2, %cst {dimension_numbers = #tpu.dot_dimension_numbers<[1], [0], [0], [1], [0, 0, 1, 1], [], []>} : vector<64x128xf32>, vector<128x512xf32>, vector<64x512xf32> -> vector<64x512xf32>
    %c0_4 = arith.constant 0 : index
    %c0_5 = arith.constant 0 : index
    %4 = vector.load %arg5[%c0_4, %c0_5] : memref<1x512xf32, #tpu.memory_space<vmem>>, vector<1x512xf32>
    %5 = vector.broadcast %4 : vector<1x512xf32> to vector<64x512xf32>
    %6 = arith.addf %3, %5 : vector<64x512xf32>
    %7 = vector.shape_cast %6 : vector<64x512xf32> to vector<8x8x512xf32>
    %c0_6 = arith.constant 0 : index
    %c0_7 = arith.constant 0 : index
    %c0_8 = arith.constant 0 : index
    %8 = vector.load %arg11[%c0_6, %c0_7, %c0_8] : memref<8x8x512xf32, #tpu.memory_space<vmem>>, vector<8x8x512xf32>
    tpu.vector_store %arg11[%c0_6, %c0_7, %c0_8], %7 {strides = array<i32>} : memref<8x8x512xf32, #tpu.memory_space<vmem>>, vector<8x8x512xf32>,
    %c0_9 = arith.constant 0 : index
    %c0_10 = arith.constant 0 : index
    %9 = vector.load %arg4[%c0_9, %c0_10] : memref<128x512xf32, #tpu.memory_space<vmem>>, vector<128x512xf32>
    %c0_11 = arith.constant 0 : index
    %c0_12 = arith.constant 0 : index
    %10 = vector.load %arg1[%c0_11, %c0_12] : memref<8x128xf32, #tpu.memory_space<vmem>>, vector<8x128xf32>
    %c0_13 = arith.constant 0 : index
    %c0_14 = arith.constant 0 : index
    %11 = vector.load %arg2[%c0_13, %c0_14] : memref<8x128xf32, #tpu.memory_space<vmem>>, vector<8x128xf32>
    %c0_15 = arith.constant 0 : index
    %c0_16 = arith.constant 0 : index
    %c0_17 = arith.constant 0 : index
    %12 = vector.load %arg11[%c0_15, %c0_16, %c0_17] : memref<8x8x512xf32, #tpu.memory_space<vmem>>, vector<8x1x512xf32>
    %13 = vector.shape_cast %12 : vector<8x1x512xf32> to vector<8x512xf32>
    %cst_18 = arith.constant dense<0.000000e+00> : vector<8x512xf32>
    %14 = tpu.matmul %10, %9, %cst_18 {dimension_numbers = #tpu.dot_dimension_numbers<[1], [0], [0], [1], [0, 0, 1, 1], [], []>} : vector<8x128xf32>, vector<128x512xf32>, vector<8x512xf32> -> vector<8x512xf32>
    %15 = arith.addf %13, %14 : vector<8x512xf32>
    %16 = vector.extract_strided_slice %15 {offsets = [0, 0], sizes = [8, 128], strides = [1, 1]} : vector<8x512xf32> to vector<8x128xf32>
    %17 = arith.negf %16 : vector<8x128xf32>
    %18 = math.exp %17 : vector<8x128xf32>
    %cst_19 = arith.constant 1.000000e+00 : f32
    %19 = vector.broadcast %cst_19 : f32 to vector<8x128xf32>
    %20 = arith.addf %19, %18 : vector<8x128xf32>
    %21 = arith.divf %19, %20 : vector<8x128xf32>
    %22 = vector.extract_strided_slice %15 {offsets = [0, 128], sizes = [8, 128], strides = [1, 1]} : vector<8x512xf32> to vector<8x128xf32>
    %23 = arith.negf %22 : vector<8x128xf32>
    %24 = math.exp %23 : vector<8x128xf32>
    %cst_20 = arith.constant 1.000000e+00 : f32
    %25 = vector.broadcast %cst_20 : f32 to vector<8x128xf32>
    %26 = arith.addf %25, %24 : vector<8x128xf32>
    %27 = arith.divf %25, %26 : vector<8x128xf32>
    %28 = vector.extract_strided_slice %15 {offsets = [0, 256], sizes = [8, 128], strides = [1, 1]} : vector<8x512xf32> to vector<8x128xf32>
    %29 = math.tanh %28 : vector<8x128xf32>
    %30 = vector.extract_strided_slice %15 {offsets = [0, 384], sizes = [8, 128], strides = [1, 1]} : vector<8x512xf32> to vector<8x128xf32>
    %31 = arith.negf %30 : vector<8x128xf32>
    %32 = math.exp %31 : vector<8x128xf32>
    %cst_21 = arith.constant 1.000000e+00 : f32
    %33 = vector.broadcast %cst_21 : f32 to vector<8x128xf32>
    %34 = arith.addf %33, %32 : vector<8x128xf32>
    %35 = arith.divf %33, %34 : vector<8x128xf32>
    %36 = arith.mulf %27, %11 : vector<8x128xf32>
    %37 = arith.mulf %21, %29 : vector<8x128xf32>
    %38 = arith.addf %36, %37 : vector<8x128xf32>
    %39 = math.tanh %38 : vector<8x128xf32>
    %40 = arith.mulf %35, %39 : vector<8x128xf32>
    %c0_22 = arith.constant 0 : index
    %c0_23 = arith.constant 0 : index
    %c0_24 = arith.constant 0 : index
    %41 = vector.load %arg12[%c0_22, %c0_23, %c0_24] : memref<8x8x128xf32, #tpu.memory_space<vmem>>, vector<8x1x128xf32>
    %42 = vector.shape_cast %41 : vector<8x1x128xf32> to vector<8x128xf32>
    %43 = vector.shape_cast %40 : vector<8x128xf32> to vector<8x1x128xf32>
    tpu.vector_store %arg12[%c0_22, %c0_23, %c0_24], %43 {strides = array<i32>} : memref<8x8x128xf32, #tpu.memory_space<vmem>>, vector<8x1x128xf32>,
    %c0_25 = arith.constant 0 : index
    %c1 = arith.constant 1 : index
    %c0_26 = arith.constant 0 : index
    %44 = vector.load %arg11[%c0_25, %c1, %c0_26] : memref<8x8x512xf32, #tpu.memory_space<vmem>>, vector<8x1x512xf32>
    %45 = vector.shape_cast %44 : vector<8x1x512xf32> to vector<8x512xf32>
    %cst_27 = arith.constant dense<0.000000e+00> : vector<8x512xf32>
    %46 = tpu.matmul %40, %9, %cst_27 {dimension_numbers = #tpu.dot_dimension_numbers<[1], [0], [0], [1], [0, 0, 1, 1], [], []>} : vector<8x128xf32>, vector<128x512xf32>, vector<8x512xf32> -> vector<8x512xf32>
    %47 = arith.addf %45, %46 : vector<8x512xf32>
    %48 = vector.extract_strided_slice %47 {offsets = [0, 0], sizes = [8, 128], strides = [1, 1]} : vector<8x512xf32> to vector<8x128xf32>
    %49 = arith.negf %48 : vector<8x128xf32>
    %50 = math.exp %49 : vector<8x128xf32>
    %cst_28 = arith.constant 1.000000e+00 : f32
    %51 = vector.broadcast %cst_28 : f32 to vector<8x128xf32>
    %52 = arith.addf %51, %50 : vector<8x128xf32>
    %53 = arith.divf %51, %52 : vector<8x128xf32>
    %54 = vector.extract_strided_slice %47 {offsets = [0, 128], sizes = [8, 128], strides = [1, 1]} : vector<8x512xf32> to vector<8x128xf32>
    %55 = arith.negf %54 : vector<8x128xf32>
    %56 = math.exp %55 : vector<8x128xf32>
    %cst_29 = arith.constant 1.000000e+00 : f32
    %57 = vector.broadcast %cst_29 : f32 to vector<8x128xf32>
    %58 = arith.addf %57, %56 : vector<8x128xf32>
    %59 = arith.divf %57, %58 : vector<8x128xf32>
    %60 = vector.extract_strided_slice %47 {offsets = [0, 256], sizes = [8, 128], strides = [1, 1]} : vector<8x512xf32> to vector<8x128xf32>
    %61 = math.tanh %60 : vector<8x128xf32>
    %62 = vector.extract_strided_slice %47 {offsets = [0, 384], sizes = [8, 128], strides = [1, 1]} : vector<8x512xf32> to vector<8x128xf32>
    %63 = arith.negf %62 : vector<8x128xf32>
    %64 = math.exp %63 : vector<8x128xf32>
    %cst_30 = arith.constant 1.000000e+00 : f32
    %65 = vector.broadcast %cst_30 : f32 to vector<8x128xf32>
    %66 = arith.addf %65, %64 : vector<8x128xf32>
    %67 = arith.divf %65, %66 : vector<8x128xf32>
    %68 = arith.mulf %59, %38 : vector<8x128xf32>
    %69 = arith.mulf %53, %61 : vector<8x128xf32>
    %70 = arith.addf %68, %69 : vector<8x128xf32>
    %71 = math.tanh %70 : vector<8x128xf32>
    %72 = arith.mulf %67, %71 : vector<8x128xf32>
    %c0_31 = arith.constant 0 : index
    %c1_32 = arith.constant 1 : index
    %c0_33 = arith.constant 0 : index
    %73 = vector.load %arg12[%c0_31, %c1_32, %c0_33] : memref<8x8x128xf32, #tpu.memory_space<vmem>>, vector<8x1x128xf32>
    %74 = vector.shape_cast %73 : vector<8x1x128xf32> to vector<8x128xf32>
    %75 = vector.shape_cast %72 : vector<8x128xf32> to vector<8x1x128xf32>
    tpu.vector_store %arg12[%c0_31, %c1_32, %c0_33], %75 {strides = array<i32>} : memref<8x8x128xf32, #tpu.memory_space<vmem>>, vector<8x1x128xf32>,
    %c0_34 = arith.constant 0 : index
    %c2 = arith.constant 2 : index
    %c0_35 = arith.constant 0 : index
    %76 = vector.load %arg11[%c0_34, %c2, %c0_35] : memref<8x8x512xf32, #tpu.memory_space<vmem>>, vector<8x1x512xf32>
    %77 = vector.shape_cast %76 : vector<8x1x512xf32> to vector<8x512xf32>
    %cst_36 = arith.constant dense<0.000000e+00> : vector<8x512xf32>
    %78 = tpu.matmul %72, %9, %cst_36 {dimension_numbers = #tpu.dot_dimension_numbers<[1], [0], [0], [1], [0, 0, 1, 1], [], []>} : vector<8x128xf32>, vector<128x512xf32>, vector<8x512xf32> -> vector<8x512xf32>
    %79 = arith.addf %77, %78 : vector<8x512xf32>
    %80 = vector.extract_strided_slice %79 {offsets = [0, 0], sizes = [8, 128], strides = [1, 1]} : vector<8x512xf32> to vector<8x128xf32>
    %81 = arith.negf %80 : vector<8x128xf32>
    %82 = math.exp %81 : vector<8x128xf32>
    %cst_37 = arith.constant 1.000000e+00 : f32
    %83 = vector.broadcast %cst_37 : f32 to vector<8x128xf32>
    %84 = arith.addf %83, %82 : vector<8x128xf32>
    %85 = arith.divf %83, %84 : vector<8x128xf32>
    %86 = vector.extract_strided_slice %79 {offsets = [0, 128], sizes = [8, 128], strides = [1, 1]} : vector<8x512xf32> to vector<8x128xf32>
    %87 = arith.negf %86 : vector<8x128xf32>
    %88 = math.exp %87 : vector<8x128xf32>
    %cst_38 = arith.constant 1.000000e+00 : f32
    %89 = vector.broadcast %cst_38 : f32 to vector<8x128xf32>
    %90 = arith.addf %89, %88 : vector<8x128xf32>
    %91 = arith.divf %89, %90 : vector<8x128xf32>
    %92 = vector.extract_strided_slice %79 {offsets = [0, 256], sizes = [8, 128], strides = [1, 1]} : vector<8x512xf32> to vector<8x128xf32>
    %93 = math.tanh %92 : vector<8x128xf32>
    %94 = vector.extract_strided_slice %79 {offsets = [0, 384], sizes = [8, 128], strides = [1, 1]} : vector<8x512xf32> to vector<8x128xf32>
    %95 = arith.negf %94 : vector<8x128xf32>
    %96 = math.exp %95 : vector<8x128xf32>
    %cst_39 = arith.constant 1.000000e+00 : f32
    %97 = vector.broadcast %cst_39 : f32 to vector<8x128xf32>
    %98 = arith.addf %97, %96 : vector<8x128xf32>
    %99 = arith.divf %97, %98 : vector<8x128xf32>
    %100 = arith.mulf %91, %70 : vector<8x128xf32>
    %101 = arith.mulf %85, %93 : vector<8x128xf32>
    %102 = arith.addf %100, %101 : vector<8x128xf32>
    %103 = math.tanh %102 : vector<8x128xf32>
    %104 = arith.mulf %99, %103 : vector<8x128xf32>
    %c0_40 = arith.constant 0 : index
    %c2_41 = arith.constant 2 : index
    %c0_42 = arith.constant 0 : index
    %105 = vector.load %arg12[%c0_40, %c2_41, %c0_42] : memref<8x8x128xf32, #tpu.memory_space<vmem>>, vector<8x1x128xf32>
    %106 = vector.shape_cast %105 : vector<8x1x128xf32> to vector<8x128xf32>
    %107 = vector.shape_cast %104 : vector<8x128xf32> to vector<8x1x128xf32>
    tpu.vector_store %arg12[%c0_40, %c2_41, %c0_42], %107 {strides = array<i32>} : memref<8x8x128xf32, #tpu.memory_space<vmem>>, vector<8x1x128xf32>,
    %c0_43 = arith.constant 0 : index
    %c3 = arith.constant 3 : index
    %c0_44 = arith.constant 0 : index
    %108 = vector.load %arg11[%c0_43, %c3, %c0_44] : memref<8x8x512xf32, #tpu.memory_space<vmem>>, vector<8x1x512xf32>
    %109 = vector.shape_cast %108 : vector<8x1x512xf32> to vector<8x512xf32>
    %cst_45 = arith.constant dense<0.000000e+00> : vector<8x512xf32>
    %110 = tpu.matmul %104, %9, %cst_45 {dimension_numbers = #tpu.dot_dimension_numbers<[1], [0], [0], [1], [0, 0, 1, 1], [], []>} : vector<8x128xf32>, vector<128x512xf32>, vector<8x512xf32> -> vector<8x512xf32>
    %111 = arith.addf %109, %110 : vector<8x512xf32>
    %112 = vector.extract_strided_slice %111 {offsets = [0, 0], sizes = [8, 128], strides = [1, 1]} : vector<8x512xf32> to vector<8x128xf32>
    %113 = arith.negf %112 : vector<8x128xf32>
    %114 = math.exp %113 : vector<8x128xf32>
    %cst_46 = arith.constant 1.000000e+00 : f32
    %115 = vector.broadcast %cst_46 : f32 to vector<8x128xf32>
    %116 = arith.addf %115, %114 : vector<8x128xf32>
    %117 = arith.divf %115, %116 : vector<8x128xf32>
    %118 = vector.extract_strided_slice %111 {offsets = [0, 128], sizes = [8, 128], strides = [1, 1]} : vector<8x512xf32> to vector<8x128xf32>
    %119 = arith.negf %118 : vector<8x128xf32>
    %120 = math.exp %119 : vector<8x128xf32>
    %cst_47 = arith.constant 1.000000e+00 : f32
    %121 = vector.broadcast %cst_47 : f32 to vector<8x128xf32>
    %122 = arith.addf %121, %120 : vector<8x128xf32>
    %123 = arith.divf %121, %122 : vector<8x128xf32>
    %124 = vector.extract_strided_slice %111 {offsets = [0, 256], sizes = [8, 128], strides = [1, 1]} : vector<8x512xf32> to vector<8x128xf32>
    %125 = math.tanh %124 : vector<8x128xf32>
    %126 = vector.extract_strided_slice %111 {offsets = [0, 384], sizes = [8, 128], strides = [1, 1]} : vector<8x512xf32> to vector<8x128xf32>
    %127 = arith.negf %126 : vector<8x128xf32>
    %128 = math.exp %127 : vector<8x128xf32>
    %cst_48 = arith.constant 1.000000e+00 : f32
    %129 = vector.broadcast %cst_48 : f32 to vector<8x128xf32>
    %130 = arith.addf %129, %128 : vector<8x128xf32>
    %131 = arith.divf %129, %130 : vector<8x128xf32>
    %132 = arith.mulf %123, %102 : vector<8x128xf32>
    %133 = arith.mulf %117, %125 : vector<8x128xf32>
    %134 = arith.addf %132, %133 : vector<8x128xf32>
    %135 = math.tanh %134 : vector<8x128xf32>
    %136 = arith.mulf %131, %135 : vector<8x128xf32>
    %c0_49 = arith.constant 0 : index
    %c3_50 = arith.constant 3 : index
    %c0_51 = arith.constant 0 : index
    %137 = vector.load %arg12[%c0_49, %c3_50, %c0_51] : memref<8x8x128xf32, #tpu.memory_space<vmem>>, vector<8x1x128xf32>
    %138 = vector.shape_cast %137 : vector<8x1x128xf32> to vector<8x128xf32>
    %139 = vector.shape_cast %136 : vector<8x128xf32> to vector<8x1x128xf32>
    tpu.vector_store %arg12[%c0_49, %c3_50, %c0_51], %139 {strides = array<i32>} : memref<8x8x128xf32, #tpu.memory_space<vmem>>, vector<8x1x128xf32>,
    %c0_52 = arith.constant 0 : index
    %c4 = arith.constant 4 : index
    %c0_53 = arith.constant 0 : index
    %140 = vector.load %arg11[%c0_52, %c4, %c0_53] : memref<8x8x512xf32, #tpu.memory_space<vmem>>, vector<8x1x512xf32>
    %141 = vector.shape_cast %140 : vector<8x1x512xf32> to vector<8x512xf32>
    %cst_54 = arith.constant dense<0.000000e+00> : vector<8x512xf32>
    %142 = tpu.matmul %136, %9, %cst_54 {dimension_numbers = #tpu.dot_dimension_numbers<[1], [0], [0], [1], [0, 0, 1, 1], [], []>} : vector<8x128xf32>, vector<128x512xf32>, vector<8x512xf32> -> vector<8x512xf32>
    %143 = arith.addf %141, %142 : vector<8x512xf32>
    %144 = vector.extract_strided_slice %143 {offsets = [0, 0], sizes = [8, 128], strides = [1, 1]} : vector<8x512xf32> to vector<8x128xf32>
    %145 = arith.negf %144 : vector<8x128xf32>
    %146 = math.exp %145 : vector<8x128xf32>
    %cst_55 = arith.constant 1.000000e+00 : f32
    %147 = vector.broadcast %cst_55 : f32 to vector<8x128xf32>
    %148 = arith.addf %147, %146 : vector<8x128xf32>
    %149 = arith.divf %147, %148 : vector<8x128xf32>
    %150 = vector.extract_strided_slice %143 {offsets = [0, 128], sizes = [8, 128], strides = [1, 1]} : vector<8x512xf32> to vector<8x128xf32>
    %151 = arith.negf %150 : vector<8x128xf32>
    %152 = math.exp %151 : vector<8x128xf32>
    %cst_56 = arith.constant 1.000000e+00 : f32
    %153 = vector.broadcast %cst_56 : f32 to vector<8x128xf32>
    %154 = arith.addf %153, %152 : vector<8x128xf32>
    %155 = arith.divf %153, %154 : vector<8x128xf32>
    %156 = vector.extract_strided_slice %143 {offsets = [0, 256], sizes = [8, 128], strides = [1, 1]} : vector<8x512xf32> to vector<8x128xf32>
    %157 = math.tanh %156 : vector<8x128xf32>
    %158 = vector.extract_strided_slice %143 {offsets = [0, 384], sizes = [8, 128], strides = [1, 1]} : vector<8x512xf32> to vector<8x128xf32>
    %159 = arith.negf %158 : vector<8x128xf32>
    %160 = math.exp %159 : vector<8x128xf32>
    %cst_57 = arith.constant 1.000000e+00 : f32
    %161 = vector.broadcast %cst_57 : f32 to vector<8x128xf32>
    %162 = arith.addf %161, %160 : vector<8x128xf32>
    %163 = arith.divf %161, %162 : vector<8x128xf32>
    %164 = arith.mulf %155, %134 : vector<8x128xf32>
    %165 = arith.mulf %149, %157 : vector<8x128xf32>
    %166 = arith.addf %164, %165 : vector<8x128xf32>
    %167 = math.tanh %166 : vector<8x128xf32>
    %168 = arith.mulf %163, %167 : vector<8x128xf32>
    %c0_58 = arith.constant 0 : index
    %c4_59 = arith.constant 4 : index
    %c0_60 = arith.constant 0 : index
    %169 = vector.load %arg12[%c0_58, %c4_59, %c0_60] : memref<8x8x128xf32, #tpu.memory_space<vmem>>, vector<8x1x128xf32>
    %170 = vector.shape_cast %169 : vector<8x1x128xf32> to vector<8x128xf32>
    %171 = vector.shape_cast %168 : vector<8x128xf32> to vector<8x1x128xf32>
    tpu.vector_store %arg12[%c0_58, %c4_59, %c0_60], %171 {strides = array<i32>} : memref<8x8x128xf32, #tpu.memory_space<vmem>>, vector<8x1x128xf32>,
    %c0_61 = arith.constant 0 : index
    %c5 = arith.constant 5 : index
    %c0_62 = arith.constant 0 : index
    %172 = vector.load %arg11[%c0_61, %c5, %c0_62] : memref<8x8x512xf32, #tpu.memory_space<vmem>>, vector<8x1x512xf32>
    %173 = vector.shape_cast %172 : vector<8x1x512xf32> to vector<8x512xf32>
    %cst_63 = arith.constant dense<0.000000e+00> : vector<8x512xf32>
    %174 = tpu.matmul %168, %9, %cst_63 {dimension_numbers = #tpu.dot_dimension_numbers<[1], [0], [0], [1], [0, 0, 1, 1], [], []>} : vector<8x128xf32>, vector<128x512xf32>, vector<8x512xf32> -> vector<8x512xf32>
    %175 = arith.addf %173, %174 : vector<8x512xf32>
    %176 = vector.extract_strided_slice %175 {offsets = [0, 0], sizes = [8, 128], strides = [1, 1]} : vector<8x512xf32> to vector<8x128xf32>
    %177 = arith.negf %176 : vector<8x128xf32>
    %178 = math.exp %177 : vector<8x128xf32>
    %cst_64 = arith.constant 1.000000e+00 : f32
    %179 = vector.broadcast %cst_64 : f32 to vector<8x128xf32>
    %180 = arith.addf %179, %178 : vector<8x128xf32>
    %181 = arith.divf %179, %180 : vector<8x128xf32>
    %182 = vector.extract_strided_slice %175 {offsets = [0, 128], sizes = [8, 128], strides = [1, 1]} : vector<8x512xf32> to vector<8x128xf32>
    %183 = arith.negf %182 : vector<8x128xf32>
    %184 = math.exp %183 : vector<8x128xf32>
    %cst_65 = arith.constant 1.000000e+00 : f32
    %185 = vector.broadcast %cst_65 : f32 to vector<8x128xf32>
    %186 = arith.addf %185, %184 : vector<8x128xf32>
    %187 = arith.divf %185, %186 : vector<8x128xf32>
    %188 = vector.extract_strided_slice %175 {offsets = [0, 256], sizes = [8, 128], strides = [1, 1]} : vector<8x512xf32> to vector<8x128xf32>
    %189 = math.tanh %188 : vector<8x128xf32>
    %190 = vector.extract_strided_slice %175 {offsets = [0, 384], sizes = [8, 128], strides = [1, 1]} : vector<8x512xf32> to vector<8x128xf32>
    %191 = arith.negf %190 : vector<8x128xf32>
    %192 = math.exp %191 : vector<8x128xf32>
    %cst_66 = arith.constant 1.000000e+00 : f32
    %193 = vector.broadcast %cst_66 : f32 to vector<8x128xf32>
    %194 = arith.addf %193, %192 : vector<8x128xf32>
    %195 = arith.divf %193, %194 : vector<8x128xf32>
    %196 = arith.mulf %187, %166 : vector<8x128xf32>
    %197 = arith.mulf %181, %189 : vector<8x128xf32>
    %198 = arith.addf %196, %197 : vector<8x128xf32>
    %199 = math.tanh %198 : vector<8x128xf32>
    %200 = arith.mulf %195, %199 : vector<8x128xf32>
    %c0_67 = arith.constant 0 : index
    %c5_68 = arith.constant 5 : index
    %c0_69 = arith.constant 0 : index
    %201 = vector.load %arg12[%c0_67, %c5_68, %c0_69] : memref<8x8x128xf32, #tpu.memory_space<vmem>>, vector<8x1x128xf32>
    %202 = vector.shape_cast %201 : vector<8x1x128xf32> to vector<8x128xf32>
    %203 = vector.shape_cast %200 : vector<8x128xf32> to vector<8x1x128xf32>
    tpu.vector_store %arg12[%c0_67, %c5_68, %c0_69], %203 {strides = array<i32>} : memref<8x8x128xf32, #tpu.memory_space<vmem>>, vector<8x1x128xf32>,
    %c0_70 = arith.constant 0 : index
    %c6 = arith.constant 6 : index
    %c0_71 = arith.constant 0 : index
    %204 = vector.load %arg11[%c0_70, %c6, %c0_71] : memref<8x8x512xf32, #tpu.memory_space<vmem>>, vector<8x1x512xf32>
    %205 = vector.shape_cast %204 : vector<8x1x512xf32> to vector<8x512xf32>
    %cst_72 = arith.constant dense<0.000000e+00> : vector<8x512xf32>
    %206 = tpu.matmul %200, %9, %cst_72 {dimension_numbers = #tpu.dot_dimension_numbers<[1], [0], [0], [1], [0, 0, 1, 1], [], []>} : vector<8x128xf32>, vector<128x512xf32>, vector<8x512xf32> -> vector<8x512xf32>
    %207 = arith.addf %205, %206 : vector<8x512xf32>
    %208 = vector.extract_strided_slice %207 {offsets = [0, 0], sizes = [8, 128], strides = [1, 1]} : vector<8x512xf32> to vector<8x128xf32>
    %209 = arith.negf %208 : vector<8x128xf32>
    %210 = math.exp %209 : vector<8x128xf32>
    %cst_73 = arith.constant 1.000000e+00 : f32
    %211 = vector.broadcast %cst_73 : f32 to vector<8x128xf32>
    %212 = arith.addf %211, %210 : vector<8x128xf32>
    %213 = arith.divf %211, %212 : vector<8x128xf32>
    %214 = vector.extract_strided_slice %207 {offsets = [0, 128], sizes = [8, 128], strides = [1, 1]} : vector<8x512xf32> to vector<8x128xf32>
    %215 = arith.negf %214 : vector<8x128xf32>
    %216 = math.exp %215 : vector<8x128xf32>
    %cst_74 = arith.constant 1.000000e+00 : f32
    %217 = vector.broadcast %cst_74 : f32 to vector<8x128xf32>
    %218 = arith.addf %217, %216 : vector<8x128xf32>
    %219 = arith.divf %217, %218 : vector<8x128xf32>
    %220 = vector.extract_strided_slice %207 {offsets = [0, 256], sizes = [8, 128], strides = [1, 1]} : vector<8x512xf32> to vector<8x128xf32>
    %221 = math.tanh %220 : vector<8x128xf32>
    %222 = vector.extract_strided_slice %207 {offsets = [0, 384], sizes = [8, 128], strides = [1, 1]} : vector<8x512xf32> to vector<8x128xf32>
    %223 = arith.negf %222 : vector<8x128xf32>
    %224 = math.exp %223 : vector<8x128xf32>
    %cst_75 = arith.constant 1.000000e+00 : f32
    %225 = vector.broadcast %cst_75 : f32 to vector<8x128xf32>
    %226 = arith.addf %225, %224 : vector<8x128xf32>
    %227 = arith.divf %225, %226 : vector<8x128xf32>
    %228 = arith.mulf %219, %198 : vector<8x128xf32>
    %229 = arith.mulf %213, %221 : vector<8x128xf32>
    %230 = arith.addf %228, %229 : vector<8x128xf32>
    %231 = math.tanh %230 : vector<8x128xf32>
    %232 = arith.mulf %227, %231 : vector<8x128xf32>
    %c0_76 = arith.constant 0 : index
    %c6_77 = arith.constant 6 : index
    %c0_78 = arith.constant 0 : index
    %233 = vector.load %arg12[%c0_76, %c6_77, %c0_78] : memref<8x8x128xf32, #tpu.memory_space<vmem>>, vector<8x1x128xf32>
    %234 = vector.shape_cast %233 : vector<8x1x128xf32> to vector<8x128xf32>
    %235 = vector.shape_cast %232 : vector<8x128xf32> to vector<8x1x128xf32>
    tpu.vector_store %arg12[%c0_76, %c6_77, %c0_78], %235 {strides = array<i32>} : memref<8x8x128xf32, #tpu.memory_space<vmem>>, vector<8x1x128xf32>,
    %c0_79 = arith.constant 0 : index
    %c7 = arith.constant 7 : index
    %c0_80 = arith.constant 0 : index
    %236 = vector.load %arg11[%c0_79, %c7, %c0_80] : memref<8x8x512xf32, #tpu.memory_space<vmem>>, vector<8x1x512xf32>
    %237 = vector.shape_cast %236 : vector<8x1x512xf32> to vector<8x512xf32>
    %cst_81 = arith.constant dense<0.000000e+00> : vector<8x512xf32>
    %238 = tpu.matmul %232, %9, %cst_81 {dimension_numbers = #tpu.dot_dimension_numbers<[1], [0], [0], [1], [0, 0, 1, 1], [], []>} : vector<8x128xf32>, vector<128x512xf32>, vector<8x512xf32> -> vector<8x512xf32>
    %239 = arith.addf %237, %238 : vector<8x512xf32>
    %240 = vector.extract_strided_slice %239 {offsets = [0, 0], sizes = [8, 128], strides = [1, 1]} : vector<8x512xf32> to vector<8x128xf32>
    %241 = arith.negf %240 : vector<8x128xf32>
    %242 = math.exp %241 : vector<8x128xf32>
    %cst_82 = arith.constant 1.000000e+00 : f32
    %243 = vector.broadcast %cst_82 : f32 to vector<8x128xf32>
    %244 = arith.addf %243, %242 : vector<8x128xf32>
    %245 = arith.divf %243, %244 : vector<8x128xf32>
    %246 = vector.extract_strided_slice %239 {offsets = [0, 128], sizes = [8, 128], strides = [1, 1]} : vector<8x512xf32> to vector<8x128xf32>
    %247 = arith.negf %246 : vector<8x128xf32>
    %248 = math.exp %247 : vector<8x128xf32>
    %cst_83 = arith.constant 1.000000e+00 : f32
    %249 = vector.broadcast %cst_83 : f32 to vector<8x128xf32>
    %250 = arith.addf %249, %248 : vector<8x128xf32>
    %251 = arith.divf %249, %250 : vector<8x128xf32>
    %252 = vector.extract_strided_slice %239 {offsets = [0, 256], sizes = [8, 128], strides = [1, 1]} : vector<8x512xf32> to vector<8x128xf32>
    %253 = math.tanh %252 : vector<8x128xf32>
    %254 = vector.extract_strided_slice %239 {offsets = [0, 384], sizes = [8, 128], strides = [1, 1]} : vector<8x512xf32> to vector<8x128xf32>
    %255 = arith.negf %254 : vector<8x128xf32>
    %256 = math.exp %255 : vector<8x128xf32>
    %cst_84 = arith.constant 1.000000e+00 : f32
    %257 = vector.broadcast %cst_84 : f32 to vector<8x128xf32>
    %258 = arith.addf %257, %256 : vector<8x128xf32>
    %259 = arith.divf %257, %258 : vector<8x128xf32>
    %260 = arith.mulf %251, %230 : vector<8x128xf32>
    %261 = arith.mulf %245, %253 : vector<8x128xf32>
    %262 = arith.addf %260, %261 : vector<8x128xf32>
    %263 = math.tanh %262 : vector<8x128xf32>
    %264 = arith.mulf %259, %263 : vector<8x128xf32>
    %c0_85 = arith.constant 0 : index
    %c7_86 = arith.constant 7 : index
    %c0_87 = arith.constant 0 : index
    %265 = vector.load %arg12[%c0_85, %c7_86, %c0_87] : memref<8x8x128xf32, #tpu.memory_space<vmem>>, vector<8x1x128xf32>
    %266 = vector.shape_cast %265 : vector<8x1x128xf32> to vector<8x128xf32>
    %267 = vector.shape_cast %264 : vector<8x128xf32> to vector<8x1x128xf32>
    tpu.vector_store %arg12[%c0_85, %c7_86, %c0_87], %267 {strides = array<i32>} : memref<8x8x128xf32, #tpu.memory_space<vmem>>, vector<8x1x128xf32>,
    %c0_88 = arith.constant 0 : index
    %c0_89 = arith.constant 0 : index
    %268 = vector.load %arg9[%c0_88, %c0_89] : memref<8x128xf32, #tpu.memory_space<vmem>>, vector<8x128xf32>
    tpu.vector_store %arg9[%c0_88, %c0_89], %264 {strides = array<i32>} : memref<8x128xf32, #tpu.memory_space<vmem>>, vector<8x128xf32>,
    %c0_90 = arith.constant 0 : index
    %c0_91 = arith.constant 0 : index
    %269 = vector.load %arg10[%c0_90, %c0_91] : memref<8x128xf32, #tpu.memory_space<vmem>>, vector<8x128xf32>
    tpu.vector_store %arg10[%c0_90, %c0_91], %262 {strides = array<i32>} : memref<8x128xf32, #tpu.memory_space<vmem>>, vector<8x128xf32>,
    %c0_92 = arith.constant 0 : index
    %c0_93 = arith.constant 0 : index
    %c0_94 = arith.constant 0 : index
    %270 = vector.load %arg12[%c0_92, %c0_93, %c0_94] : memref<8x8x128xf32, #tpu.memory_space<vmem>>, vector<8x8x128xf32>
    %271 = vector.shape_cast %270 : vector<8x8x128xf32> to vector<64x128xf32>
    %c0_95 = arith.constant 0 : index
    %c0_96 = arith.constant 0 : index
    %272 = vector.load %arg6[%c0_95, %c0_96] : memref<128x256xf32, #tpu.memory_space<vmem>>, vector<128x256xf32>
    %cst_97 = arith.constant dense<0.000000e+00> : vector<64x256xf32>
    %273 = tpu.matmul %271, %272, %cst_97 {dimension_numbers = #tpu.dot_dimension_numbers<[1], [0], [0], [1], [0, 0, 1, 1], [], []>} : vector<64x128xf32>, vector<128x256xf32>, vector<64x256xf32> -> vector<64x256xf32>
    %c0_98 = arith.constant 0 : index
    %c0_99 = arith.constant 0 : index
    %274 = vector.load %arg7[%c0_98, %c0_99] : memref<1x256xf32, #tpu.memory_space<vmem>>, vector<1x256xf32>
    %275 = vector.broadcast %274 : vector<1x256xf32> to vector<64x256xf32>
    %276 = arith.addf %273, %275 : vector<64x256xf32>
    %c0_100 = arith.constant 0 : index
    %c0_101 = arith.constant 0 : index
    %277 = vector.load %arg8[%c0_100, %c0_101] : memref<64x256xf32, #tpu.memory_space<vmem>>, vector<64x256xf32>
    tpu.vector_store %arg8[%c0_100, %c0_101], %276 {strides = array<i32>} : memref<64x256xf32, #tpu.memory_space<vmem>>, vector<64x256xf32>,
    return
  }
}

</mosaic_0001>

<llo_original>
// kernel: tpu_custom_call.1
$region0: #{tpu_custom_call.1}
  #allocation0 [shape = 'u32[]', space=smem, size = 0x4, offset = 0x4, fixed_abs, tag = 'smem constant byte address 0x4 - core index']
  #allocation1 [shape = 'u32[144,128]{1,0:T(1,128)}', space=vmem, size = 0x12000, scoped, tag = 'internal scratch']
  #allocation2 [shape = 'f32[8,8,512]{2,1,0:T(8,128)}', space=vmem, size = 0x20000, scoped, tag = 'scratch operand']
  #allocation3 [shape = 'f32[8,8,128]{2,1,0:T(8,128)}', space=vmem, size = 0x8000, scoped, tag = 'scratch operand']
  %s0 = inlined_call_operand.hbm [shape: f32[8,8,128], index: 0, kind: input, shape index: {}]
  %s1 = inlined_call_operand.hbm [shape: f32[8,128], index: 1, kind: input, shape index: {}]
  %s2 = inlined_call_operand.hbm [shape: f32[8,128], index: 2, kind: input, shape index: {}]
  %s3 = inlined_call_operand.hbm [shape: f32[128,512], index: 3, kind: input, shape index: {}]
  %s4 = inlined_call_operand.hbm [shape: f32[128,512], index: 4, kind: input, shape index: {}]
  %s5 = inlined_call_operand.vmem [shape: f32[1,512], index: 5, kind: input, shape index: {}]
  %s6 = inlined_call_operand.hbm [shape: f32[128,256], index: 6, kind: input, shape index: {}]
  %s7 = inlined_call_operand.vmem [shape: f32[1,256], index: 7, kind: input, shape index: {}]
  %s8 = inlined_call_operand.hbm [shape: f32[64,256], index: 8, kind: output, shape index: {0}]
  %s9 = inlined_call_operand.hbm [shape: f32[8,128], index: 9, kind: output, shape index: {1}]
  %s10 = inlined_call_operand.hbm [shape: f32[8,128], index: 10, kind: output, shape index: {2}]
  %11 = xla_tuple %s8, %s9, %s10
  %s12 = sld [smem:[#allocation0]]
  $region82: #{tpu_custom_call.1} parent=0
    _
  %s14 = ssub.s32 1, %s12
  %s15 = scalar_select 0, %s14, %s12
  $region1: #{tpu_custom_call.1} parent=0
    #allocation4 [shape = 'u8[32768]{0}', space=vmem, size = 0x8000, scoped, tag = 'input window, operand 0, single buffered']
    #allocation5 [shape = 's32[1]{0}', space=sflag, size = 0x4, scoped, tag = 'scoped memory for tpu_custom_call.1']
    #allocation6 [shape = 's32[1]{0}', space=sflag, size = 0x4, scoped, tag = 'scoped memory for tpu_custom_call.1']
    #allocation7 [shape = 'u8[4096]{0}', space=vmem, size = 0x1000, scoped, tag = 'input window, operand 1, single buffered']
    #allocation8 [shape = 's32[1]{0}', space=sflag, size = 0x4, scoped, tag = 'scoped memory for tpu_custom_call.1']
    #allocation9 [shape = 'u8[4096]{0}', space=vmem, size = 0x1000, scoped, tag = 'input window, operand 2, single buffered']
    #allocation10 [shape = 'u8[262144]{0}', space=vmem, size = 0x40000, scoped, tag = 'input window, operand 3, single buffered']
    #allocation11 [shape = 's32[1]{0}', space=sflag, size = 0x4, scoped, tag = 'scoped memory for tpu_custom_call.1']
    #allocation12 [shape = 'u8[262144]{0}', space=vmem, size = 0x40000, scoped, tag = 'input window, operand 4, single buffered']
    #allocation13 [shape = 'u8[131072]{0}', space=vmem, size = 0x20000, scoped, tag = 'input window, operand 6, single buffered']
    #allocation14 [shape = 's32[1]{0}', space=sflag, size = 0x4, scoped, tag = 'scoped memory for tpu_custom_call.1']
    #allocation15 [shape = 'u8[65536]{0}', space=vmem, size = 0x10000, scoped, tag = 'output window, operand 0, single buffered']
    #allocation16 [shape = 'u8[4096]{0}', space=vmem, size = 0x1000, scoped, tag = 'output window, operand 1, single buffered']
    #allocation17 [shape = 's32[1]{0}', space=sflag, size = 0x4, scoped, tag = 'scoped memory for tpu_custom_call.1']
    #allocation18 [shape = 'u8[4096]{0}', space=vmem, size = 0x1000, scoped, tag = 'output window, operand 2, single buffered']
    %16 = vsyncpa [#allocation5], 0
    %17 = vsyncpa [#allocation8], 0
    %18 = vsyncpa [#allocation11], 0
    %19 = vsyncpa [#allocation14], 0
    %20 = vsyncpa [#allocation6], 0
    %21 = vsyncpa [#allocation17], 0
    // Predicated region
    $region2: #{tpu_custom_call.1} parent=1 // pred_check
      _
    $region3: #{tpu_custom_call.1} parent=1 // pred_check_branch
      %23 = sbr.rel (0) target = $region5
    $region4: #{tpu_custom_call.1} parent=1 // pred_region
      %s25 = ssub.s32 1024, 1024
      %26 = vsyncadd [#allocation5], %s25
      %s27 = sshll.u32 [#allocation4], 4
      %s28 = int_to_ptr.vmem [resolvable:$true] %s27
      %33 = dma.hbm_to_vmem [thread:$0]  %s0, 1024, %s28, [#allocation5], 128, 128, 8
    $region5: #{tpu_custom_call.1} parent=1 // pred_fallthru
      _
    // Predicated region
    $region6: #{tpu_custom_call.1} parent=1 // pred_check
      _
    $region7: #{tpu_custom_call.1} parent=1 // pred_check_branch
      %35 = sbr.rel (0) target = $region9
    $region8: #{tpu_custom_call.1} parent=1 // pred_region
      %s37 = ssub.s32 128, 128
      %38 = vsyncadd [#allocation8], %s37
      %s40 = sshll.u32 [#allocation7], 4
      %s41 = int_to_ptr.vmem [resolvable:$true] %s40
      %43 = dma.hbm_to_vmem [thread:$0]  %s1, 128, %s41, [#allocation8]
    $region9: #{tpu_custom_call.1} parent=1 // pred_fallthru
      _
    // Predicated region
    $region10: #{tpu_custom_call.1} parent=1 // pred_check
      _
    $region11: #{tpu_custom_call.1} parent=1 // pred_check_branch
      %45 = sbr.rel (0) target = $region13
    $region12: #{tpu_custom_call.1} parent=1 // pred_region
      %s47 = ssub.s32 128, 128
      %48 = vsyncadd [#allocation8], %s47
      %s50 = sshll.u32 [#allocation9], 4
      %s51 = int_to_ptr.vmem [resolvable:$true] %s50
      %53 = dma.hbm_to_vmem [thread:$0]  %s2, 128, %s51, [#allocation8]
    $region13: #{tpu_custom_call.1} parent=1 // pred_fallthru
      _
    // Predicated region
    $region14: #{tpu_custom_call.1} parent=1 // pred_check
      _
    $region15: #{tpu_custom_call.1} parent=1 // pred_check_branch
      %55 = sbr.rel (0) target = $region17
    $region16: #{tpu_custom_call.1} parent=1 // pred_region
      %s57 = ssub.s32 8192, 8192
      %58 = vsyncadd [#allocation11], %s57
      %s59 = sshll.u32 [#allocation10], 4
      %s60 = int_to_ptr.vmem [resolvable:$true] %s59
      %65 = dma.hbm_to_vmem [thread:$0]  %s3, 8192, %s60, [#allocation11], 512, 512, 32
    $region17: #{tpu_custom_call.1} parent=1 // pred_fallthru
      _
    // Predicated region
    $region18: #{tpu_custom_call.1} parent=1 // pred_check
      _
    $region19: #{tpu_custom_call.1} parent=1 // pred_check_branch
      %67 = sbr.rel (0) target = $region21
    $region20: #{tpu_custom_call.1} parent=1 // pred_region
      %s69 = ssub.s32 8192, 8192
      %70 = vsyncadd [#allocation11], %s69
      %s71 = sshll.u32 [#allocation12], 4
      %s72 = int_to_ptr.vmem [resolvable:$true] %s71
      %77 = dma.hbm_to_vmem [thread:$0]  %s4, 8192, %s72, [#allocation11], 512, 512, 32
    $region21: #{tpu_custom_call.1} parent=1 // pred_fallthru
      _
    // Predicated region
    $region22: #{tpu_custom_call.1} parent=1 // pred_check
      _
    $region23: #{tpu_custom_call.1} parent=1 // pred_check_branch
      %79 = sbr.rel (0) target = $region25
    $region24: #{tpu_custom_call.1} parent=1 // pred_region
      _
    $region25: #{tpu_custom_call.1} parent=1 // pred_fallthru
      _
    // Predicated region
    $region26: #{tpu_custom_call.1} parent=1 // pred_check
      _
    $region27: #{tpu_custom_call.1} parent=1 // pred_check_branch
      %81 = sbr.rel (0) target = $region29
    $region28: #{tpu_custom_call.1} parent=1 // pred_region
      %s83 = ssub.s32 4096, 4096
      %84 = vsyncadd [#allocation14], %s83
      %s85 = sshll.u32 [#allocation13], 4
      %s86 = int_to_ptr.vmem [resolvable:$true] %s85
      %91 = dma.hbm_to_vmem [thread:$0]  %s6, 4096, %s86, [#allocation14], 256, 256, 16
    $region29: #{tpu_custom_call.1} parent=1 // pred_fallthru
      _
    // Predicated region
    $region30: #{tpu_custom_call.1} parent=1 // pred_check
      _
    $region31: #{tpu_custom_call.1} parent=1 // pred_check_branch
      %93 = sbr.rel (0) target = $region33
    $region32: #{tpu_custom_call.1} parent=1 // pred_region
      _
    $region33: #{tpu_custom_call.1} parent=1 // pred_fallthru
      _
    // Predicated region
    $region34: #{tpu_custom_call.1} parent=1 // pred_check
      _
    $region35: #{tpu_custom_call.1} parent=1 // pred_check_branch
      %95 = sbr.rel (0) target = $region37
    $region36: #{tpu_custom_call.1} parent=1 // pred_region
      %96 = dma.done [#allocation5], 1024
    $region37: #{tpu_custom_call.1} parent=1 // pred_fallthru
      _
    // Predicated region
    $region38: #{tpu_custom_call.1} parent=1 // pred_check
      _
    $region39: #{tpu_custom_call.1} parent=1 // pred_check_branch
      %98 = sbr.rel (0) target = $region41
    $region40: #{tpu_custom_call.1} parent=1 // pred_region
      %99 = dma.done [#allocation8], 128
    $region41: #{tpu_custom_call.1} parent=1 // pred_fallthru
      _
    // Predicated region
    $region42: #{tpu_custom_call.1} parent=1 // pred_check
      _
    $region43: #{tpu_custom_call.1} parent=1 // pred_check_branch
      %101 = sbr.rel (0) target = $region45
    $region44: #{tpu_custom_call.1} parent=1 // pred_region
      %102 = dma.done [#allocation8], 128
    $region45: #{tpu_custom_call.1} parent=1 // pred_fallthru
      _
    // Predicated region
    $region46: #{tpu_custom_call.1} parent=1 // pred_check
      _
    $region47: #{tpu_custom_call.1} parent=1 // pred_check_branch
      %104 = sbr.rel (0) target = $region49
    $region48: #{tpu_custom_call.1} parent=1 // pred_region
      %105 = dma.done [#allocation11], 8192
    $region49: #{tpu_custom_call.1} parent=1 // pred_fallthru
      _
    // Predicated region
    $region50: #{tpu_custom_call.1} parent=1 // pred_check
      _
    $region51: #{tpu_custom_call.1} parent=1 // pred_check_branch
      %107 = sbr.rel (0) target = $region53
    $region52: #{tpu_custom_call.1} parent=1 // pred_region
      %108 = dma.done [#allocation11], 8192
    $region53: #{tpu_custom_call.1} parent=1 // pred_fallthru
      _
    // Predicated region
    $region54: #{tpu_custom_call.1} parent=1 // pred_check
      _
    $region55: #{tpu_custom_call.1} parent=1 // pred_check_branch
      %110 = sbr.rel (0) target = $region57
    $region56: #{tpu_custom_call.1} parent=1 // pred_region
      %111 = dma.done [#allocation14], 4096
    $region57: #{tpu_custom_call.1} parent=1 // pred_fallthru
      _
    %v112 = vld [vmem:[#allocation4] sm:$0xff]
    %v113 = vld [vmem:[#allocation4 + $0x8] sm:$0xff]
    %v114 = vld [vmem:[#allocation4 + $0x10] sm:$0xff]
    %v115 = vld [vmem:[#allocation4 + $0x18] sm:$0xff]
    %v116 = vld [vmem:[#allocation4 + $0x20] sm:$0xff]
    %v117 = vld [vmem:[#allocation4 + $0x28] sm:$0xff]
    %v118 = vld [vmem:[#allocation4 + $0x30] sm:$0xff]
    %v119 = vld [vmem:[#allocation4 + $0x38] sm:$0xff]
    %v120 = vld [vmem:[#allocation10] sm:$0xff]
    %v121 = vld [vmem:[#allocation10 + $0x8] sm:$0xff]
    %v122 = vld [vmem:[#allocation10 + $0x10] sm:$0xff]
    %v123 = vld [vmem:[#allocation10 + $0x18] sm:$0xff]
    %v124 = vld [vmem:[#allocation10 + $0x20] sm:$0xff]
    %v125 = vld [vmem:[#allocation10 + $0x28] sm:$0xff]
    %v126 = vld [vmem:[#allocation10 + $0x30] sm:$0xff]
    %v127 = vld [vmem:[#allocation10 + $0x38] sm:$0xff]
    %v128 = vld [vmem:[#allocation10 + $0x40] sm:$0xff]
    %v129 = vld [vmem:[#allocation10 + $0x48] sm:$0xff]
    %v130 = vld [vmem:[#allocation10 + $0x50] sm:$0xff]
    %v131 = vld [vmem:[#allocation10 + $0x58] sm:$0xff]
    %v132 = vld [vmem:[#allocation10 + $0x60] sm:$0xff]
    %v133 = vld [vmem:[#allocation10 + $0x68] sm:$0xff]
    %v134 = vld [vmem:[#allocation10 + $0x70] sm:$0xff]
    %v135 = vld [vmem:[#allocation10 + $0x78] sm:$0xff]
    %v136 = vld [vmem:[#allocation10 + $0x80] sm:$0xff]
    %v137 = vld [vmem:[#allocation10 + $0x88] sm:$0xff]
    %v138 = vld [vmem:[#allocation10 + $0x90] sm:$0xff]
    %v139 = vld [vmem:[#allocation10 + $0x98] sm:$0xff]
    %v140 = vld [vmem:[#allocation10 + $0xa0] sm:$0xff]
    %v141 = vld [vmem:[#allocation10 + $0xa8] sm:$0xff]
    %v142 = vld [vmem:[#allocation10 + $0xb0] sm:$0xff]
    %v143 = vld [vmem:[#allocation10 + $0xb8] sm:$0xff]
    %v144 = vld [vmem:[#allocation10 + $0xc0] sm:$0xff]
    %v145 = vld [vmem:[#allocation10 + $0xc8] sm:$0xff]
    %v146 = vld [vmem:[#allocation10 + $0xd0] sm:$0xff]
    %v147 = vld [vmem:[#allocation10 + $0xd8] sm:$0xff]
    %v148 = vld [vmem:[#allocation10 + $0xe0] sm:$0xff]
    %v149 = vld [vmem:[#allocation10 + $0xe8] sm:$0xff]
    %v150 = vld [vmem:[#allocation10 + $0xf0] sm:$0xff]
    %v151 = vld [vmem:[#allocation10 + $0xf8] sm:$0xff]
    %v152 = vld [vmem:[#allocation10 + $0x100] sm:$0xff]
    %v153 = vld [vmem:[#allocation10 + $0x108] sm:$0xff]
    %v154 = vld [vmem:[#allocation10 + $0x110] sm:$0xff]
    %v155 = vld [vmem:[#allocation10 + $0x118] sm:$0xff]
    %v156 = vld [vmem:[#allocation10 + $0x120] sm:$0xff]
    %v157 = vld [vmem:[#allocation10 + $0x128] sm:$0xff]
    %v158 = vld [vmem:[#allocation10 + $0x130] sm:$0xff]
    %v159 = vld [vmem:[#allocation10 + $0x138] sm:$0xff]
    %v160 = vld [vmem:[#allocation10 + $0x140] sm:$0xff]
    %v161 = vld [vmem:[#allocation10 + $0x148] sm:$0xff]
    %v162 = vld [vmem:[#allocation10 + $0x150] sm:$0xff]
    %v163 = vld [vmem:[#allocation10 + $0x158] sm:$0xff]
    %v164 = vld [vmem:[#allocation10 + $0x160] sm:$0xff]
    %v165 = vld [vmem:[#allocation10 + $0x168] sm:$0xff]
    %v166 = vld [vmem:[#allocation10 + $0x170] sm:$0xff]
    %v167 = vld [vmem:[#allocation10 + $0x178] sm:$0xff]
    %v168 = vld [vmem:[#allocation10 + $0x180] sm:$0xff]
    %v169 = vld [vmem:[#allocation10 + $0x188] sm:$0xff]
    %v170 = vld [vmem:[#allocation10 + $0x190] sm:$0xff]
    %v171 = vld [vmem:[#allocation10 + $0x198] sm:$0xff]
    %v172 = vld [vmem:[#allocation10 + $0x1a0] sm:$0xff]
    %v173 = vld [vmem:[#allocation10 + $0x1a8] sm:$0xff]
    %v174 = vld [vmem:[#allocation10 + $0x1b0] sm:$0xff]
    %v175 = vld [vmem:[#allocation10 + $0x1b8] sm:$0xff]
    %v176 = vld [vmem:[#allocation10 + $0x1c0] sm:$0xff]
    %v177 = vld [vmem:[#allocation10 + $0x1c8] sm:$0xff]
    %v178 = vld [vmem:[#allocation10 + $0x1d0] sm:$0xff]
    %v179 = vld [vmem:[#allocation10 + $0x1d8] sm:$0xff]
    %v180 = vld [vmem:[#allocation10 + $0x1e0] sm:$0xff]
    %v181 = vld [vmem:[#allocation10 + $0x1e8] sm:$0xff]
    %v182 = vld [vmem:[#allocation10 + $0x1f0] sm:$0xff]
    %v183 = vld [vmem:[#allocation10 + $0x1f8] sm:$0xff]
    %v184 = vld [vmem:[%s5] sm:$0xf]
    %v186 = vlaneseq
    %v187 = vshrl.u32 %v186, 7
    %v188 = vsub.s32 0, %v187
    %v189 = vrot.slane %v184, %v188
    %v190 = vlaneseq
    %v191 = vshrl.u32 %v190, 7
    %v192 = vsub.s32 1, %v191
    %v193 = vrot.slane %v184, %v192
    %v194 = vlaneseq
    %v195 = vshrl.u32 %v194, 7
    %v196 = vsub.s32 2, %v195
    %v197 = vrot.slane %v184, %v196
    %v198 = vlaneseq
    %v199 = vshrl.u32 %v198, 7
    %v200 = vsub.s32 3, %v199
    %v201 = vrot.slane %v184, %v200
    %206 = vmatprep.subr.mxu0 %v181
    %207 = vmatpush1.msra.mxu0 %v180
    %208 = vmatprep.subr.mxu0 %v177
    %209 = vmatpush1.msra.mxu0 %v176
    %210 = vmatprep.subr.mxu0 %v173
    %211 = vmatpush1.msra.mxu0 %v172
    %212 = vmatprep.subr.mxu0 %v169
    %213 = vmatpush1.msra.mxu0 %v168
    %214 = vmatprep.subr.mxu0 %v165
    %215 = vmatpush1.msra.mxu0 %v164
    %216 = vmatprep.subr.mxu0 %v161
    %217 = vmatpush1.msra.mxu0 %v160
    %218 = vmatprep.subr.mxu0 %v157
    %219 = vmatpush1.msra.mxu0 %v156
    %220 = vmatprep.subr.mxu0 %v153
    %221 = vmatpush1.msra.mxu0 %v152
    %222 = vmatprep.subr.mxu0 %v149
    %223 = vmatpush1.msra.mxu0 %v148
    %224 = vmatprep.subr.mxu0 %v145
    %225 = vmatpush1.msra.mxu0 %v144
    %226 = vmatprep.subr.mxu0 %v141
    %227 = vmatpush1.msra.mxu0 %v140
    %228 = vmatprep.subr.mxu0 %v137
    %229 = vmatpush1.msra.mxu0 %v136
    %230 = vmatprep.subr.mxu0 %v133
    %231 = vmatpush1.msra.mxu0 %v132
    %232 = vmatprep.subr.mxu0 %v129
    %233 = vmatpush1.msra.mxu0 %v128
    %234 = vmatprep.subr.mxu0 %v125
    %235 = vmatpush1.msra.mxu0 %v124
    %236 = vmatprep.subr.mxu0 %v121
    %237 = vmatpush1.msra.mxu0 %v120
    %238 = vmatprep.subr.mxu0 0.0
    %239 = vmatpush2.msra.mxu0 0.0
    %240 = vmatprep.subr.mxu0 0.0
    %241 = vmatpush2.msra.mxu0 0.0
    %242 = vmatprep.subr.mxu0 0.0
    %243 = vmatpush2.msra.mxu0 0.0
    %244 = vmatprep.subr.mxu0 0.0
    %245 = vmatpush2.msra.mxu0 0.0
    %246 = vmatprep.subr.mxu0 0.0
    %247 = vmatpush2.msra.mxu0 0.0
    %248 = vmatprep.subr.mxu0 0.0
    %249 = vmatpush2.msra.mxu0 0.0
    %250 = vmatprep.subr.mxu0 0.0
    %251 = vmatpush2.msra.mxu0 0.0
    %252 = vmatprep.subr.mxu0 0.0
    %253 = vmatpush2.msra.mxu0 0.0
    %254 = vmatprep.subr.mxu0 0.0
    %255 = vmatpush2.msra.mxu0 0.0
    %256 = vmatprep.subr.mxu0 0.0
    %257 = vmatpush2.msra.mxu0 0.0
    %258 = vmatprep.subr.mxu0 0.0
    %259 = vmatpush2.msra.mxu0 0.0
    %260 = vmatprep.subr.mxu0 0.0
    %261 = vmatpush2.msra.mxu0 0.0
    %262 = vmatprep.subr.mxu0 0.0
    %263 = vmatpush2.msra.mxu0 0.0
    %264 = vmatprep.subr.mxu0 0.0
    %265 = vmatpush2.msra.mxu0 0.0
    %266 = vmatprep.subr.mxu0 0.0
    %267 = vmatpush2.msra.mxu0 0.0
    %268 = vmatprep.subr.mxu0 0.0
    %269 = vmatpush2.msra.mxu0 0.0
    %270 = vmatprep.mubr.f32.mxu0 0.0
    %271 = vmatmul.mubr.f32.gmra.mxu0 %v112
    %v272 = vpop.f32.mrf.mxu0
    %v273 = vadd.f32 %v189, %v272
    %v274 = vpop.f32.mrf.mxu0
    %v275 = vadd.f32 %v193, %v274
    %276 = vmatprep.mubr.f32.mxu0 0.0
    %277 = vmatmul.mubr.f32.gmra.mxu0 %v113
    %v278 = vpop.f32.mrf.mxu0
    %v279 = vadd.f32 %v189, %v278
    %v280 = vpop.f32.mrf.mxu0
    %v281 = vadd.f32 %v193, %v280
    %282 = vmatprep.mubr.f32.mxu0 0.0
    %283 = vmatmul.mubr.f32.gmra.mxu0 %v114
    %v284 = vpop.f32.mrf.mxu0
    %v285 = vadd.f32 %v189, %v284
    %v286 = vpop.f32.mrf.mxu0
    %v287 = vadd.f32 %v193, %v286
    %288 = vmatprep.mubr.f32.mxu0 0.0
    %289 = vmatmul.mubr.f32.gmra.mxu0 %v115
    %v290 = vpop.f32.mrf.mxu0
    %v291 = vadd.f32 %v189, %v290
    %v292 = vpop.f32.mrf.mxu0
    %v293 = vadd.f32 %v193, %v292
    %294 = vmatprep.mubr.f32.mxu0 0.0
    %295 = vmatmul.mubr.f32.gmra.mxu0 %v116
    %v296 = vpop.f32.mrf.mxu0
    %v297 = vadd.f32 %v189, %v296
    %v298 = vpop.f32.mrf.mxu0
    %v299 = vadd.f32 %v193, %v298
    %300 = vmatprep.mubr.f32.mxu0 0.0
    %301 = vmatmul.mubr.f32.gmra.mxu0 %v117
    %v302 = vpop.f32.mrf.mxu0
    %v303 = vadd.f32 %v189, %v302
    %v304 = vpop.f32.mrf.mxu0
    %v305 = vadd.f32 %v193, %v304
    %306 = vmatprep.mubr.f32.mxu0 0.0
    %307 = vmatmul.mubr.f32.gmra.mxu0 %v118
    %v308 = vpop.f32.mrf.mxu0
    %v309 = vadd.f32 %v189, %v308
    %v310 = vpop.f32.mrf.mxu0
    %v311 = vadd.f32 %v193, %v310
    %312 = vmatprep.mubr.f32.mxu0 0.0
    %313 = vmatmul.mubr.f32.gmra.mxu0 %v119
    %v314 = vpop.f32.mrf.mxu0
    %v315 = vadd.f32 %v189, %v314
    %v316 = vpop.f32.mrf.mxu0
    %v317 = vadd.f32 %v193, %v316
    %318 = vdwg.mxu0
    %319 = vmatprep.subr.mxu0 %v183
    %320 = vmatpush1.msra.mxu0 %v182
    %321 = vmatprep.subr.mxu0 %v179
    %322 = vmatpush1.msra.mxu0 %v178
    %323 = vmatprep.subr.mxu0 %v175
    %324 = vmatpush1.msra.mxu0 %v174
    %325 = vmatprep.subr.mxu0 %v171
    %326 = vmatpush1.msra.mxu0 %v170
    %327 = vmatprep.subr.mxu0 %v167
    %328 = vmatpush1.msra.mxu0 %v166
    %329 = vmatprep.subr.mxu0 %v163
    %330 = vmatpush1.msra.mxu0 %v162
    %331 = vmatprep.subr.mxu0 %v159
    %332 = vmatpush1.msra.mxu0 %v158
    %333 = vmatprep.subr.mxu0 %v155
    %334 = vmatpush1.msra.mxu0 %v154
    %335 = vmatprep.subr.mxu0 %v151
    %336 = vmatpush1.msra.mxu0 %v150
    %337 = vmatprep.subr.mxu0 %v147
    %338 = vmatpush1.msra.mxu0 %v146
    %339 = vmatprep.subr.mxu0 %v143
    %340 = vmatpush1.msra.mxu0 %v142
    %341 = vmatprep.subr.mxu0 %v139
    %342 = vmatpush1.msra.mxu0 %v138
    %343 = vmatprep.subr.mxu0 %v135
    %344 = vmatpush1.msra.mxu0 %v134
    %345 = vmatprep.subr.mxu0 %v131
    %346 = vmatpush1.msra.mxu0 %v130
    %347 = vmatprep.subr.mxu0 %v127
    %348 = vmatpush1.msra.mxu0 %v126
    %349 = vmatprep.subr.mxu0 %v123
    %350 = vmatpush1.msra.mxu0 %v122
    %351 = vmatprep.subr.mxu0 0.0
    %352 = vmatpush2.msra.mxu0 0.0
    %353 = vmatprep.subr.mxu0 0.0
    %354 = vmatpush2.msra.mxu0 0.0
    %355 = vmatprep.subr.mxu0 0.0
    %356 = vmatpush2.msra.mxu0 0.0
    %357 = vmatprep.subr.mxu0 0.0
    %358 = vmatpush2.msra.mxu0 0.0
    %359 = vmatprep.subr.mxu0 0.0
    %360 = vmatpush2.msra.mxu0 0.0
    %361 = vmatprep.subr.mxu0 0.0
    %362 = vmatpush2.msra.mxu0 0.0
    %363 = vmatprep.subr.mxu0 0.0
    %364 = vmatpush2.msra.mxu0 0.0
    %365 = vmatprep.subr.mxu0 0.0
    %366 = vmatpush2.msra.mxu0 0.0
    %367 = vmatprep.subr.mxu0 0.0
    %368 = vmatpush2.msra.mxu0 0.0
    %369 = vmatprep.subr.mxu0 0.0
    %370 = vmatpush2.msra.mxu0 0.0
    %371 = vmatprep.subr.mxu0 0.0
    %372 = vmatpush2.msra.mxu0 0.0
    %373 = vmatprep.subr.mxu0 0.0
    %374 = vmatpush2.msra.mxu0 0.0
    %375 = vmatprep.subr.mxu0 0.0
    %376 = vmatpush2.msra.mxu0 0.0
    %377 = vmatprep.subr.mxu0 0.0
    %378 = vmatpush2.msra.mxu0 0.0
    %379 = vmatprep.subr.mxu0 0.0
    %380 = vmatpush2.msra.mxu0 0.0
    %381 = vmatprep.subr.mxu0 0.0
    %382 = vmatpush2.msra.mxu0 0.0
    %383 = vmatprep.mubr.f32.mxu0 0.0
    %384 = vmatmul.mubr.f32.gmra.mxu0 %v112
    %v385 = vpop.f32.mrf.mxu0
    %v386 = vadd.f32 %v197, %v385
    %v387 = vpop.f32.mrf.mxu0
    %v388 = vadd.f32 %v201, %v387
    %389 = vmatprep.mubr.f32.mxu0 0.0
    %390 = vmatmul.mubr.f32.gmra.mxu0 %v113
    %v391 = vpop.f32.mrf.mxu0
    %v392 = vadd.f32 %v197, %v391
    %v393 = vpop.f32.mrf.mxu0
    %v394 = vadd.f32 %v201, %v393
    %395 = vmatprep.mubr.f32.mxu0 0.0
    %396 = vmatmul.mubr.f32.gmra.mxu0 %v114
    %v397 = vpop.f32.mrf.mxu0
    %v398 = vadd.f32 %v197, %v397
    %v399 = vpop.f32.mrf.mxu0
    %v400 = vadd.f32 %v201, %v399
    %401 = vmatprep.mubr.f32.mxu0 0.0
    %402 = vmatmul.mubr.f32.gmra.mxu0 %v115
    %v403 = vpop.f32.mrf.mxu0
    %v404 = vadd.f32 %v197, %v403
    %v405 = vpop.f32.mrf.mxu0
    %v406 = vadd.f32 %v201, %v405
    %407 = vmatprep.mubr.f32.mxu0 0.0
    %408 = vmatmul.mubr.f32.gmra.mxu0 %v116
    %v409 = vpop.f32.mrf.mxu0
    %v410 = vadd.f32 %v197, %v409
    %v411 = vpop.f32.mrf.mxu0
    %v412 = vadd.f32 %v201, %v411
    %413 = vmatprep.mubr.f32.mxu0 0.0
    %414 = vmatmul.mubr.f32.gmra.mxu0 %v117
    %v415 = vpop.f32.mrf.mxu0
    %v416 = vadd.f32 %v197, %v415
    %v417 = vpop.f32.mrf.mxu0
    %v418 = vadd.f32 %v201, %v417
    %419 = vmatprep.mubr.f32.mxu0 0.0
    %420 = vmatmul.mubr.f32.gmra.mxu0 %v118
    %v421 = vpop.f32.mrf.mxu0
    %v422 = vadd.f32 %v197, %v421
    %v423 = vpop.f32.mrf.mxu0
    %v424 = vadd.f32 %v201, %v423
    %425 = vmatprep.mubr.f32.mxu0 0.0
    %426 = vmatmul.mubr.f32.gmra.mxu0 %v119
    %v427 = vpop.f32.mrf.mxu0
    %v428 = vadd.f32 %v197, %v427
    %v429 = vpop.f32.mrf.mxu0
    %v430 = vadd.f32 %v201, %v429
    %431 = vdwg.mxu0
    %432 = vst [vmem:[#allocation2] sm:$0xff] %v273
    %433 = vst [vmem:[#allocation2 + $0x8] sm:$0xff] %v275
    %434 = vst [vmem:[#allocation2 + $0x10] sm:$0xff] %v386
    %435 = vst [vmem:[#allocation2 + $0x18] sm:$0xff] %v388
    %436 = vst [vmem:[#allocation2 + $0x20] sm:$0xff] %v279
    %437 = vst [vmem:[#allocation2 + $0x28] sm:$0xff] %v281
    %438 = vst [vmem:[#allocation2 + $0x30] sm:$0xff] %v392
    %439 = vst [vmem:[#allocation2 + $0x38] sm:$0xff] %v394
    %440 = vst [vmem:[#allocation2 + $0x40] sm:$0xff] %v285
    %441 = vst [vmem:[#allocation2 + $0x48] sm:$0xff] %v287
    %442 = vst [vmem:[#allocation2 + $0x50] sm:$0xff] %v398
    %443 = vst [vmem:[#allocation2 + $0x58] sm:$0xff] %v400
    %444 = vst [vmem:[#allocation2 + $0x60] sm:$0xff] %v291
    %445 = vst [vmem:[#allocation2 + $0x68] sm:$0xff] %v293
    %446 = vst [vmem:[#allocation2 + $0x70] sm:$0xff] %v404
    %447 = vst [vmem:[#allocation2 + $0x78] sm:$0xff] %v406
    %448 = vst [vmem:[#allocation2 + $0x80] sm:$0xff] %v297
    %449 = vst [vmem:[#allocation2 + $0x88] sm:$0xff] %v299
    %450 = vst [vmem:[#allocation2 + $0x90] sm:$0xff] %v410
    %451 = vst [vmem:[#allocation2 + $0x98] sm:$0xff] %v412
    %452 = vst [vmem:[#allocation2 + $0xa0] sm:$0xff] %v303
    %453 = vst [vmem:[#allocation2 + $0xa8] sm:$0xff] %v305
    %454 = vst [vmem:[#allocation2 + $0xb0] sm:$0xff] %v416
    %455 = vst [vmem:[#allocation2 + $0xb8] sm:$0xff] %v418
    %456 = vst [vmem:[#allocation2 + $0xc0] sm:$0xff] %v309
    %457 = vst [vmem:[#allocation2 + $0xc8] sm:$0xff] %v311
    %458 = vst [vmem:[#allocation2 + $0xd0] sm:$0xff] %v422
    %459 = vst [vmem:[#allocation2 + $0xd8] sm:$0xff] %v424
    %460 = vst [vmem:[#allocation2 + $0xe0] sm:$0xff] %v315
    %461 = vst [vmem:[#allocation2 + $0xe8] sm:$0xff] %v317
    %462 = vst [vmem:[#allocation2 + $0xf0] sm:$0xff] %v428
    %463 = vst [vmem:[#allocation2 + $0xf8] sm:$0xff] %v430
    %v464 = vld [vmem:[#allocation12] sm:$0xff]
    %v465 = vld [vmem:[#allocation12 + $0x8] sm:$0xff]
    %v466 = vld [vmem:[#allocation12 + $0x10] sm:$0xff]
    %v467 = vld [vmem:[#allocation12 + $0x18] sm:$0xff]
    %v468 = vld [vmem:[#allocation12 + $0x20] sm:$0xff]
    %v469 = vld [vmem:[#allocation12 + $0x28] sm:$0xff]
    %v470 = vld [vmem:[#allocation12 + $0x30] sm:$0xff]
    %v471 = vld [vmem:[#allocation12 + $0x38] sm:$0xff]
    %v472 = vld [vmem:[#allocation12 + $0x40] sm:$0xff]
    %v473 = vld [vmem:[#allocation12 + $0x48] sm:$0xff]
    %v474 = vld [vmem:[#allocation12 + $0x50] sm:$0xff]
    %v475 = vld [vmem:[#allocation12 + $0x58] sm:$0xff]
    %v476 = vld [vmem:[#allocation12 + $0x60] sm:$0xff]
    %v477 = vld [vmem:[#allocation12 + $0x68] sm:$0xff]
    %v478 = vld [vmem:[#allocation12 + $0x70] sm:$0xff]
    %v479 = vld [vmem:[#allocation12 + $0x78] sm:$0xff]
    %v480 = vld [vmem:[#allocation12 + $0x80] sm:$0xff]
    %v481 = vld [vmem:[#allocation12 + $0x88] sm:$0xff]
    %v482 = vld [vmem:[#allocation12 + $0x90] sm:$0xff]
    %v483 = vld [vmem:[#allocation12 + $0x98] sm:$0xff]
    %v484 = vld [vmem:[#allocation12 + $0xa0] sm:$0xff]
    %v485 = vld [vmem:[#allocation12 + $0xa8] sm:$0xff]
    %v486 = vld [vmem:[#allocation12 + $0xb0] sm:$0xff]
    %v487 = vld [vmem:[#allocation12 + $0xb8] sm:$0xff]
    %v488 = vld [vmem:[#allocation12 + $0xc0] sm:$0xff]
    %v489 = vld [vmem:[#allocation12 + $0xc8] sm:$0xff]
    %v490 = vld [vmem:[#allocation12 + $0xd0] sm:$0xff]
    %v491 = vld [vmem:[#allocation12 + $0xd8] sm:$0xff]
    %v492 = vld [vmem:[#allocation12 + $0xe0] sm:$0xff]
    %v493 = vld [vmem:[#allocation12 + $0xe8] sm:$0xff]
    %v494 = vld [vmem:[#allocation12 + $0xf0] sm:$0xff]
    %v495 = vld [vmem:[#allocation12 + $0xf8] sm:$0xff]
    %v496 = vld [vmem:[#allocation12 + $0x100] sm:$0xff]
    %v497 = vld [vmem:[#allocation12 + $0x108] sm:$0xff]
    %v498 = vld [vmem:[#allocation12 + $0x110] sm:$0xff]
    %v499 = vld [vmem:[#allocation12 + $0x118] sm:$0xff]
    %v500 = vld [vmem:[#allocation12 + $0x120] sm:$0xff]
    %v501 = vld [vmem:[#allocation12 + $0x128] sm:$0xff]
    %v502 = vld [vmem:[#allocation12 + $0x130] sm:$0xff]
    %v503 = vld [vmem:[#allocation12 + $0x138] sm:$0xff]
    %v504 = vld [vmem:[#allocation12 + $0x140] sm:$0xff]
    %v505 = vld [vmem:[#allocation12 + $0x148] sm:$0xff]
    %v506 = vld [vmem:[#allocation12 + $0x150] sm:$0xff]
    %v507 = vld [vmem:[#allocation12 + $0x158] sm:$0xff]
    %v508 = vld [vmem:[#allocation12 + $0x160] sm:$0xff]
    %v509 = vld [vmem:[#allocation12 + $0x168] sm:$0xff]
    %v510 = vld [vmem:[#allocation12 + $0x170] sm:$0xff]
    %v511 = vld [vmem:[#allocation12 + $0x178] sm:$0xff]
    %v512 = vld [vmem:[#allocation12 + $0x180] sm:$0xff]
    %v513 = vld [vmem:[#allocation12 + $0x188] sm:$0xff]
    %v514 = vld [vmem:[#allocation12 + $0x190] sm:$0xff]
    %v515 = vld [vmem:[#allocation12 + $0x198] sm:$0xff]
    %v516 = vld [vmem:[#allocation12 + $0x1a0] sm:$0xff]
    %v517 = vld [vmem:[#allocation12 + $0x1a8] sm:$0xff]
    %v518 = vld [vmem:[#allocation12 + $0x1b0] sm:$0xff]
    %v519 = vld [vmem:[#allocation12 + $0x1b8] sm:$0xff]
    %v520 = vld [vmem:[#allocation12 + $0x1c0] sm:$0xff]
    %v521 = vld [vmem:[#allocation12 + $0x1c8] sm:$0xff]
    %v522 = vld [vmem:[#allocation12 + $0x1d0] sm:$0xff]
    %v523 = vld [vmem:[#allocation12 + $0x1d8] sm:$0xff]
    %v524 = vld [vmem:[#allocation12 + $0x1e0] sm:$0xff]
    %v525 = vld [vmem:[#allocation12 + $0x1e8] sm:$0xff]
    %v526 = vld [vmem:[#allocation12 + $0x1f0] sm:$0xff]
    %v527 = vld [vmem:[#allocation12 + $0x1f8] sm:$0xff]
    %v528 = vld [vmem:[#allocation7] sm:$0xff]
    %v529 = vld [vmem:[#allocation9] sm:$0xff]
    %v530 = vld [vmem:[#allocation2] ss:$8 sm:$0xf]
    %s531 = scalar_lea.vmem [#allocation2], 32
    %v532 = vld [vmem:[%s531] ss:$8 sm:$0xf]
    %s533 = scalar_lea.vmem [#allocation2], 64
    %v534 = vld [vmem:[%s533] ss:$8 sm:$0xf]
    %s535 = scalar_lea.vmem [#allocation2], 96
    %v536 = vld [vmem:[%s535] ss:$8 sm:$0xf]
    %s537 = scalar_lea.vmem [#allocation2], 128
    %v538 = vld [vmem:[%s537] ss:$8 sm:$0xf]
    %s539 = scalar_lea.vmem [#allocation2], 160
    %v540 = vld [vmem:[%s539] ss:$8 sm:$0xf]
    %s541 = scalar_lea.vmem [#allocation2], 192
    %v542 = vld [vmem:[%s541] ss:$8 sm:$0xf]
    %s543 = scalar_lea.vmem [#allocation2], 224
    %v544 = vld [vmem:[%s543] ss:$8 sm:$0xf]
    %545 = vmatprep.subr.mxu0 %v525
    %546 = vmatpush1.msra.mxu0 %v524
    %547 = vmatprep.subr.mxu0 %v521
    %548 = vmatpush1.msra.mxu0 %v520
    %549 = vmatprep.subr.mxu0 %v517
    %550 = vmatpush1.msra.mxu0 %v516
    %551 = vmatprep.subr.mxu0 %v513
    %552 = vmatpush1.msra.mxu0 %v512
    %553 = vmatprep.subr.mxu0 %v509
    %554 = vmatpush1.msra.mxu0 %v508
    %555 = vmatprep.subr.mxu0 %v505
    %556 = vmatpush1.msra.mxu0 %v504
    %557 = vmatprep.subr.mxu0 %v501
    %558 = vmatpush1.msra.mxu0 %v500
    %559 = vmatprep.subr.mxu0 %v497
    %560 = vmatpush1.msra.mxu0 %v496
    %561 = vmatprep.subr.mxu0 %v493
    %562 = vmatpush1.msra.mxu0 %v492
    %563 = vmatprep.subr.mxu0 %v489
    %564 = vmatpush1.msra.mxu0 %v488
    %565 = vmatprep.subr.mxu0 %v485
    %566 = vmatpush1.msra.mxu0 %v484
    %567 = vmatprep.subr.mxu0 %v481
    %568 = vmatpush1.msra.mxu0 %v480
    %569 = vmatprep.subr.mxu0 %v477
    %570 = vmatpush1.msra.mxu0 %v476
    %571 = vmatprep.subr.mxu0 %v473
    %572 = vmatpush1.msra.mxu0 %v472
    %573 = vmatprep.subr.mxu0 %v469
    %574 = vmatpush1.msra.mxu0 %v468
    %575 = vmatprep.subr.mxu0 %v465
    %576 = vmatpush1.msra.mxu0 %v464
    %577 = vmatprep.subr.mxu0 0.0
    %578 = vmatpush2.msra.mxu0 0.0
    %579 = vmatprep.subr.mxu0 0.0
    %580 = vmatpush2.msra.mxu0 0.0
    %581 = vmatprep.subr.mxu0 0.0
    %582 = vmatpush2.msra.mxu0 0.0
    %583 = vmatprep.subr.mxu0 0.0
    %584 = vmatpush2.msra.mxu0 0.0
    %585 = vmatprep.subr.mxu0 0.0
    %586 = vmatpush2.msra.mxu0 0.0
    %587 = vmatprep.subr.mxu0 0.0
    %588 = vmatpush2.msra.mxu0 0.0
    %589 = vmatprep.subr.mxu0 0.0
    %590 = vmatpush2.msra.mxu0 0.0
    %591 = vmatprep.subr.mxu0 0.0
    %592 = vmatpush2.msra.mxu0 0.0
    %593 = vmatprep.subr.mxu0 0.0
    %594 = vmatpush2.msra.mxu0 0.0
    %595 = vmatprep.subr.mxu0 0.0
    %596 = vmatpush2.msra.mxu0 0.0
    %597 = vmatprep.subr.mxu0 0.0
    %598 = vmatpush2.msra.mxu0 0.0
    %599 = vmatprep.subr.mxu0 0.0
    %600 = vmatpush2.msra.mxu0 0.0
    %601 = vmatprep.subr.mxu0 0.0
    %602 = vmatpush2.msra.mxu0 0.0
    %603 = vmatprep.subr.mxu0 0.0
    %604 = vmatpush2.msra.mxu0 0.0
    %605 = vmatprep.subr.mxu0 0.0
    %606 = vmatpush2.msra.mxu0 0.0
    %607 = vmatprep.subr.mxu0 0.0
    %608 = vmatpush2.msra.mxu0 0.0
    %609 = vmatprep.mubr.f32.mxu0 0.0
    %610 = vmatmul.mubr.f32.gmra.mxu0 %v528
    %v611 = vpop.f32.mrf.mxu0
    %v612 = vadd.f32 0.0, %v611
    %v613 = vpop.f32.mrf.mxu0
    %v614 = vadd.f32 0.0, %v613
    %615 = vdwg.mxu0
    %616 = vmatprep.subr.mxu0 %v527
    %617 = vmatpush1.msra.mxu0 %v526
    %618 = vmatprep.subr.mxu0 %v523
    %619 = vmatpush1.msra.mxu0 %v522
    %620 = vmatprep.subr.mxu0 %v519
    %621 = vmatpush1.msra.mxu0 %v518
    %622 = vmatprep.subr.mxu0 %v515
    %623 = vmatpush1.msra.mxu0 %v514
    %624 = vmatprep.subr.mxu0 %v511
    %625 = vmatpush1.msra.mxu0 %v510
    %626 = vmatprep.subr.mxu0 %v507
    %627 = vmatpush1.msra.mxu0 %v506
    %628 = vmatprep.subr.mxu0 %v503
    %629 = vmatpush1.msra.mxu0 %v502
    %630 = vmatprep.subr.mxu0 %v499
    %631 = vmatpush1.msra.mxu0 %v498
    %632 = vmatprep.subr.mxu0 %v495
    %633 = vmatpush1.msra.mxu0 %v494
    %634 = vmatprep.subr.mxu0 %v491
    %635 = vmatpush1.msra.mxu0 %v490
    %636 = vmatprep.subr.mxu0 %v487
    %637 = vmatpush1.msra.mxu0 %v486
    %638 = vmatprep.subr.mxu0 %v483
    %639 = vmatpush1.msra.mxu0 %v482
    %640 = vmatprep.subr.mxu0 %v479
    %641 = vmatpush1.msra.mxu0 %v478
    %642 = vmatprep.subr.mxu0 %v475
    %643 = vmatpush1.msra.mxu0 %v474
    %644 = vmatprep.subr.mxu0 %v471
    %645 = vmatpush1.msra.mxu0 %v470
    %646 = vmatprep.subr.mxu0 %v467
    %647 = vmatpush1.msra.mxu0 %v466
    %648 = vmatprep.subr.mxu0 0.0
    %649 = vmatpush2.msra.mxu0 0.0
    %650 = vmatprep.subr.mxu0 0.0
    %651 = vmatpush2.msra.mxu0 0.0
    %652 = vmatprep.subr.mxu0 0.0
    %653 = vmatpush2.msra.mxu0 0.0
    %654 = vmatprep.subr.mxu0 0.0
    %655 = vmatpush2.msra.mxu0 0.0
    %656 = vmatprep.subr.mxu0 0.0
    %657 = vmatpush2.msra.mxu0 0.0
    %658 = vmatprep.subr.mxu0 0.0
    %659 = vmatpush2.msra.mxu0 0.0
    %660 = vmatprep.subr.mxu0 0.0
    %661 = vmatpush2.msra.mxu0 0.0
    %662 = vmatprep.subr.mxu0 0.0
    %663 = vmatpush2.msra.mxu0 0.0
    %664 = vmatprep.subr.mxu0 0.0
    %665 = vmatpush2.msra.mxu0 0.0
    %666 = vmatprep.subr.mxu0 0.0
    %667 = vmatpush2.msra.mxu0 0.0
    %668 = vmatprep.subr.mxu0 0.0
    %669 = vmatpush2.msra.mxu0 0.0
    %670 = vmatprep.subr.mxu0 0.0
    %671 = vmatpush2.msra.mxu0 0.0
    %672 = vmatprep.subr.mxu0 0.0
    %673 = vmatpush2.msra.mxu0 0.0
    %674 = vmatprep.subr.mxu0 0.0
    %675 = vmatpush2.msra.mxu0 0.0
    %676 = vmatprep.subr.mxu0 0.0
    %677 = vmatpush2.msra.mxu0 0.0
    %678 = vmatprep.subr.mxu0 0.0
    %679 = vmatpush2.msra.mxu0 0.0
    %680 = vmatprep.mubr.f32.mxu0 0.0
    %681 = vmatmul.mubr.f32.gmra.mxu0 %v528
    %v682 = vpop.f32.mrf.mxu0
    %v683 = vadd.f32 0.0, %v682
    %v684 = vpop.f32.mrf.mxu0
    %v685 = vadd.f32 0.0, %v684
    %686 = vdwg.mxu0
    %v691 = vcombine.low %v612, %v614
    %v692 = vcombine.high %v612, %v614
    %v693 = vcombine.low %v683, %v685
    %v694 = vcombine.high %v683, %v685
    %v696 = vunpack.c.l.s4 1966171168
    %v697 = vunpack.c.0.s8 %v696
    %v698 = vlaneseq
    %v699 = vshrl.u32 %v698, 7
    %v700 = vsub.s32 %v697, %v699
    %v701 = vrot.slane %v691, %v700
    %v703 = vunpack.c.l.s4 1966171168
    %v704 = vunpack.c.0.s8 %v703
    %v705 = vlaneseq
    %v706 = vshrl.u32 %v705, 7
    %v707 = vsub.s32 %v704, %v706
    %v708 = vrot.slane %v692, %v707
    %v710 = vunpack.c.l.s4 1966171168
    %v711 = vunpack.c.0.s8 %v710
    %v712 = vlaneseq
    %v713 = vshrl.u32 %v712, 7
    %v714 = vsub.s32 %v711, %v713
    %v715 = vrot.slane %v693, %v714
    %v717 = vunpack.c.l.s4 1966171168
    %v718 = vunpack.c.0.s8 %v717
    %v719 = vlaneseq
    %v720 = vshrl.u32 %v719, 7
    %v721 = vsub.s32 %v718, %v720
    %v722 = vrot.slane %v694, %v721
    %v723 = vcombine.low %v701, %v715
    %v724 = vcombine.high %v701, %v715
    %v725 = vcombine.low %v708, %v722
    %v726 = vcombine.high %v708, %v722
    %v728 = vunpack.c.l.s4 1966171168
    %v729 = vunpack.c.0.s8 %v728
    %v730 = vlaneseq
    %v731 = vshrl.u32 %v730, 7
    %v732 = vsub.s32 %v729, %v731
    %v733 = vrot.slane %v723, %v732
    %v735 = vunpack.c.l.s4 1966171168
    %v736 = vunpack.c.0.s8 %v735
    %v737 = vlaneseq
    %v738 = vshrl.u32 %v737, 7
    %v739 = vsub.s32 %v736, %v738
    %v740 = vrot.slane %v725, %v739
    %v742 = vunpack.c.l.s4 1966171168
    %v743 = vunpack.c.0.s8 %v742
    %v744 = vlaneseq
    %v745 = vshrl.u32 %v744, 7
    %v746 = vsub.s32 %v743, %v745
    %v747 = vrot.slane %v724, %v746
    %v749 = vunpack.c.l.s4 1966171168
    %v750 = vunpack.c.0.s8 %v749
    %v751 = vlaneseq
    %v752 = vshrl.u32 %v751, 7
    %v753 = vsub.s32 %v750, %v752
    %v754 = vrot.slane %v726, %v753
    %v755 = vcombine.high %v733, %v733
    %v756 = vcombine.high %v740, %v740
    %v757 = vcombine.high %v747, %v747
    %v758 = vcombine.high %v754, %v754
    %v767 = vadd.f32 %v530, %v733
    %v768 = vadd.f32 %v532, %v747
    %v769 = vadd.f32 %v534, %v755
    %v770 = vadd.f32 %v536, %v757
    %v771 = vadd.f32 %v538, %v740
    %v772 = vadd.f32 %v540, %v754
    %v773 = vadd.f32 %v542, %v756
    %v774 = vadd.f32 %v544, %v758
    %v775 = vxor.u32 %v767, 2147483648
    %v776 = vxor.u32 %v768, 2147483648
    %v777 = vxor.u32 %v769, 2147483648
    %v778 = vxor.u32 %v770, 2147483648
    %v779 = vxor.u32 %v771, 2147483648
    %v780 = vxor.u32 %v772, 2147483648
    %v781 = vxor.u32 %v773, 2147483648
    %v782 = vxor.u32 %v774, 2147483648
    %v783 = vmul.f32 %v775, 1.442695
    %v784 = vpow.pop %v783
    %v785 = vmul.f32 %v776, 1.442695
    %v786 = vpow.pop %v785
    %v787 = vmul.f32 %v777, 1.442695
    %v788 = vpow.pop %v787
    %v789 = vmul.f32 %v778, 1.442695
    %v790 = vpow.pop %v789
    %v791 = vmul.f32 %v779, 1.442695
    %v792 = vpow.pop %v791
    %v793 = vmul.f32 %v780, 1.442695
    %v794 = vpow.pop %v793
    %v795 = vmul.f32 %v781, 1.442695
    %v796 = vpow.pop %v795
    %v797 = vmul.f32 %v782, 1.442695
    %v798 = vpow.pop %v797
    %v799 = vadd.f32 %v784, 1.0
    %v800 = vadd.f32 %v786, 1.0
    %v801 = vadd.f32 %v788, 1.0
    %v802 = vadd.f32 %v790, 1.0
    %v803 = vadd.f32 %v792, 1.0
    %v804 = vadd.f32 %v794, 1.0
    %v805 = vadd.f32 %v796, 1.0
    %v806 = vadd.f32 %v798, 1.0
    %v807 = vrcp.pop %v799
    %v808 = vmul.f32 1.0, %v807
    %v809 = vrcp.pop %v800
    %v810 = vmul.f32 1.0, %v809
    %v811 = vrcp.pop %v801
    %v812 = vmul.f32 1.0, %v811
    %v813 = vrcp.pop %v802
    %v814 = vmul.f32 1.0, %v813
    %v815 = vrcp.pop %v803
    %v816 = vmul.f32 1.0, %v815
    %v817 = vrcp.pop %v804
    %v818 = vmul.f32 1.0, %v817
    %v819 = vrcp.pop %v805
    %v820 = vmul.f32 1.0, %v819
    %v821 = vrcp.pop %v806
    %v822 = vmul.f32 1.0, %v821
    %v831 = vrot.slane %v767, 1
    %v832 = vrot.slane %v768, 1
    %v833 = vrot.slane %v769, 1
    %v834 = vrot.slane %v770, 1
    %v835 = vrot.slane %v771, 1
    %v836 = vrot.slane %v772, 1
    %v837 = vrot.slane %v773, 1
    %v838 = vrot.slane %v774, 1
    %v847 = vxor.u32 %v831, 2147483648
    %v848 = vxor.u32 %v832, 2147483648
    %v849 = vxor.u32 %v833, 2147483648
    %v850 = vxor.u32 %v834, 2147483648
    %v851 = vxor.u32 %v835, 2147483648
    %v852 = vxor.u32 %v836, 2147483648
    %v853 = vxor.u32 %v837, 2147483648
    %v854 = vxor.u32 %v838, 2147483648
    %v855 = vmul.f32 %v847, 1.442695
    %v856 = vpow.pop %v855
    %v857 = vmul.f32 %v848, 1.442695
    %v858 = vpow.pop %v857
    %v859 = vmul.f32 %v849, 1.442695
    %v860 = vpow.pop %v859
    %v861 = vmul.f32 %v850, 1.442695
    %v862 = vpow.pop %v861
    %v863 = vmul.f32 %v851, 1.442695
    %v864 = vpow.pop %v863
    %v865 = vmul.f32 %v852, 1.442695
    %v866 = vpow.pop %v865
    %v867 = vmul.f32 %v853, 1.442695
    %v868 = vpow.pop %v867
    %v869 = vmul.f32 %v854, 1.442695
    %v870 = vpow.pop %v869
    %v871 = vadd.f32 %v856, 1.0
    %v872 = vadd.f32 %v858, 1.0
    %v873 = vadd.f32 %v860, 1.0
    %v874 = vadd.f32 %v862, 1.0
    %v875 = vadd.f32 %v864, 1.0
    %v876 = vadd.f32 %v866, 1.0
    %v877 = vadd.f32 %v868, 1.0
    %v878 = vadd.f32 %v870, 1.0
    %v879 = vrcp.pop %v871
    %v880 = vmul.f32 1.0, %v879
    %v881 = vrcp.pop %v872
    %v882 = vmul.f32 1.0, %v881
    %v883 = vrcp.pop %v873
    %v884 = vmul.f32 1.0, %v883
    %v885 = vrcp.pop %v874
    %v886 = vmul.f32 1.0, %v885
    %v887 = vrcp.pop %v875
    %v888 = vmul.f32 1.0, %v887
    %v889 = vrcp.pop %v876
    %v890 = vmul.f32 1.0, %v889
    %v891 = vrcp.pop %v877
    %v892 = vmul.f32 1.0, %v891
    %v893 = vrcp.pop %v878
    %v894 = vmul.f32 1.0, %v893
    %v895 = vrot.slane %v767, 2
    %v896 = vrot.slane %v768, 2
    %v897 = vrot.slane %v769, 2
    %v898 = vrot.slane %v770, 2
    %v899 = vrot.slane %v771, 2
    %v900 = vrot.slane %v772, 2
    %v901 = vrot.slane %v773, 2
    %v902 = vrot.slane %v774, 2
    %v911 = vtanh.pop %v895
    %v912 = vtanh.pop %v896
    %v913 = vtanh.pop %v897
    %v914 = vtanh.pop %v898
    %v915 = vtanh.pop %v899
    %v916 = vtanh.pop %v900
    %v917 = vtanh.pop %v901
    %v918 = vtanh.pop %v902
    %v919 = vrot.slane %v767, 3
    %v920 = vrot.slane %v768, 3
    %v921 = vrot.slane %v769, 3
    %v922 = vrot.slane %v770, 3
    %v923 = vrot.slane %v771, 3
    %v924 = vrot.slane %v772, 3
    %v925 = vrot.slane %v773, 3
    %v926 = vrot.slane %v774, 3
    %v935 = vxor.u32 %v919, 2147483648
    %v936 = vxor.u32 %v920, 2147483648
    %v937 = vxor.u32 %v921, 2147483648
    %v938 = vxor.u32 %v922, 2147483648
    %v939 = vxor.u32 %v923, 2147483648
    %v940 = vxor.u32 %v924, 2147483648
    %v941 = vxor.u32 %v925, 2147483648
    %v942 = vxor.u32 %v926, 2147483648
    %v943 = vmul.f32 %v935, 1.442695
    %v944 = vpow.pop %v943
    %v945 = vmul.f32 %v936, 1.442695
    %v946 = vpow.pop %v945
    %v947 = vmul.f32 %v937, 1.442695
    %v948 = vpow.pop %v947
    %v949 = vmul.f32 %v938, 1.442695
    %v950 = vpow.pop %v949
    %v951 = vmul.f32 %v939, 1.442695
    %v952 = vpow.pop %v951
    %v953 = vmul.f32 %v940, 1.442695
    %v954 = vpow.pop %v953
    %v955 = vmul.f32 %v941, 1.442695
    %v956 = vpow.pop %v955
    %v957 = vmul.f32 %v942, 1.442695
    %v958 = vpow.pop %v957
    %v959 = vadd.f32 %v944, 1.0
    %v960 = vadd.f32 %v946, 1.0
    %v961 = vadd.f32 %v948, 1.0
    %v962 = vadd.f32 %v950, 1.0
    %v963 = vadd.f32 %v952, 1.0
    %v964 = vadd.f32 %v954, 1.0
    %v965 = vadd.f32 %v956, 1.0
    %v966 = vadd.f32 %v958, 1.0
    %v967 = vrcp.pop %v959
    %v968 = vmul.f32 1.0, %v967
    %v969 = vrcp.pop %v960
    %v970 = vmul.f32 1.0, %v969
    %v971 = vrcp.pop %v961
    %v972 = vmul.f32 1.0, %v971
    %v973 = vrcp.pop %v962
    %v974 = vmul.f32 1.0, %v973
    %v975 = vrcp.pop %v963
    %v976 = vmul.f32 1.0, %v975
    %v977 = vrcp.pop %v964
    %v978 = vmul.f32 1.0, %v977
    %v979 = vrcp.pop %v965
    %v980 = vmul.f32 1.0, %v979
    %v981 = vrcp.pop %v966
    %v982 = vmul.f32 1.0, %v981
    %v984 = vcombine.high %v529, %v529
    %v986 = vunpack.c.l.s4 1966171168
    %v987 = vunpack.c.0.s8 %v986
    %v988 = vlaneseq
    %v989 = vshrl.u32 %v988, 7
    %v990 = vsub.s32 %v987, %v989
    %v991 = vrot.slane %v529, %v990
    %v993 = vunpack.c.l.s4 1966171168
    %v994 = vunpack.c.0.s8 %v993
    %v995 = vlaneseq
    %v996 = vshrl.u32 %v995, 7
    %v997 = vsub.s32 %v994, %v996
    %v998 = vrot.slane %v984, %v997
    %v999 = vcombine.high %v991, %v991
    %v1000 = vcombine.high %v998, %v998
    %v1002 = vunpack.c.l.s4 1966171168
    %v1003 = vunpack.c.0.s8 %v1002
    %v1004 = vlaneseq
    %v1005 = vshrl.u32 %v1004, 7
    %v1006 = vsub.s32 %v1003, %v1005
    %v1007 = vrot.slane %v991, %v1006
    %v1009 = vunpack.c.l.s4 1966171168
    %v1010 = vunpack.c.0.s8 %v1009
    %v1011 = vlaneseq
    %v1012 = vshrl.u32 %v1011, 7
    %v1013 = vsub.s32 %v1010, %v1012
    %v1014 = vrot.slane %v998, %v1013
    %v1016 = vunpack.c.l.s4 1966171168
    %v1017 = vunpack.c.0.s8 %v1016
    %v1018 = vlaneseq
    %v1019 = vshrl.u32 %v1018, 7
    %v1020 = vsub.s32 %v1017, %v1019
    %v1021 = vrot.slane %v999, %v1020
    %v1023 = vunpack.c.l.s4 1966171168
    %v1024 = vunpack.c.0.s8 %v1023
    %v1025 = vlaneseq
    %v1026 = vshrl.u32 %v1025, 7
    %v1027 = vsub.s32 %v1024, %v1026
    %v1028 = vrot.slane %v1000, %v1027
    %v1029 = vcombine.high %v1007, %v1007
    %v1030 = vcombine.high %v1014, %v1014
    %v1031 = vcombine.high %v1021, %v1021
    %v1032 = vcombine.high %v1028, %v1028
    %v1041 = vmul.f32 %v880, %v1007
    %v1042 = vmul.f32 %v882, %v1021
    %v1043 = vmul.f32 %v884, %v1029
    %v1044 = vmul.f32 %v886, %v1031
    %v1045 = vmul.f32 %v888, %v1014
    %v1046 = vmul.f32 %v890, %v1028
    %v1047 = vmul.f32 %v892, %v1030
    %v1048 = vmul.f32 %v894, %v1032
    %v1049 = vmul.f32 %v808, %v911
    %v1050 = vmul.f32 %v810, %v912
    %v1051 = vmul.f32 %v812, %v913
    %v1052 = vmul.f32 %v814, %v914
    %v1053 = vmul.f32 %v816, %v915
    %v1054 = vmul.f32 %v818, %v916
    %v1055 = vmul.f32 %v820, %v917
    %v1056 = vmul.f32 %v822, %v918
    %v1057 = vadd.f32 %v1041, %v1049
    %v1058 = vadd.f32 %v1042, %v1050
    %v1059 = vadd.f32 %v1043, %v1051
    %v1060 = vadd.f32 %v1044, %v1052
    %v1061 = vadd.f32 %v1045, %v1053
    %v1062 = vadd.f32 %v1046, %v1054
    %v1063 = vadd.f32 %v1047, %v1055
    %v1064 = vadd.f32 %v1048, %v1056
    %v1065 = vtanh.pop %v1057
    %v1066 = vtanh.pop %v1058
    %v1067 = vtanh.pop %v1059
    %v1068 = vtanh.pop %v1060
    %v1069 = vtanh.pop %v1061
    %v1070 = vtanh.pop %v1062
    %v1071 = vtanh.pop %v1063
    %v1072 = vtanh.pop %v1064
    %v1073 = vmul.f32 %v968, %v1065
    %v1074 = vmul.f32 %v970, %v1066
    %v1075 = vmul.f32 %v972, %v1067
    %v1076 = vmul.f32 %v974, %v1068
    %v1077 = vmul.f32 %v976, %v1069
    %v1078 = vmul.f32 %v978, %v1070
    %v1079 = vmul.f32 %v980, %v1071
    %v1080 = vmul.f32 %v982, %v1072
    %1081 = vst [vmem:[#allocation3] sm:$0x1] %v1073
    %1082 = vst [vmem:[#allocation3 + $0x8] sm:$0x1] %v1074
    %1083 = vst [vmem:[#allocation3 + $0x10] sm:$0x1] %v1075
    %1084 = vst [vmem:[#allocation3 + $0x18] sm:$0x1] %v1076
    %1085 = vst [vmem:[#allocation3 + $0x20] sm:$0x1] %v1077
    %1086 = vst [vmem:[#allocation3 + $0x28] sm:$0x1] %v1078
    %1087 = vst [vmem:[#allocation3 + $0x30] sm:$0x1] %v1079
    %1088 = vst [vmem:[#allocation3 + $0x38] sm:$0x1] %v1080
    %s1089 = scalar_lea.vmem [#allocation2], 1
    %v1090 = vld [vmem:[%s1089] ss:$8 sm:$0xf]
    %s1091 = scalar_lea.vmem [#allocation2], 33
    %v1092 = vld [vmem:[%s1091] ss:$8 sm:$0xf]
    %s1093 = scalar_lea.vmem [#allocation2], 65
    %v1094 = vld [vmem:[%s1093] ss:$8 sm:$0xf]
    %s1095 = scalar_lea.vmem [#allocation2], 97
    %v1096 = vld [vmem:[%s1095] ss:$8 sm:$0xf]
    %s1097 = scalar_lea.vmem [#allocation2], 129
    %v1098 = vld [vmem:[%s1097] ss:$8 sm:$0xf]
    %s1099 = scalar_lea.vmem [#allocation2], 161
    %v1100 = vld [vmem:[%s1099] ss:$8 sm:$0xf]
    %s1101 = scalar_lea.vmem [#allocation2], 193
    %v1102 = vld [vmem:[%s1101] ss:$8 sm:$0xf]
    %s1103 = scalar_lea.vmem [#allocation2], 225
    %v1104 = vld [vmem:[%s1103] ss:$8 sm:$0xf]
    %v1113 = vcombine.low %v1073, %v1074
    %v1114 = vcombine.low %v1075, %v1076
    %v1115 = vcombine.low %v1077, %v1078
    %v1116 = vcombine.low %v1079, %v1080
    %v1118 = vunpack.c.l.s4 1966171168
    %v1119 = vunpack.c.0.s8 %v1118
    %v1120 = vlaneseq
    %v1121 = vshrl.u32 %v1120, 7
    %v1122 = vsub.s32 %v1119, %v1121
    %v1123 = vrot.slane %v1113, %v1122
    %v1125 = vunpack.c.l.s4 1966171168
    %v1126 = vunpack.c.0.s8 %v1125
    %v1127 = vlaneseq
    %v1128 = vshrl.u32 %v1127, 7
    %v1129 = vsub.s32 %v1126, %v1128
    %v1130 = vrot.slane %v1114, %v1129
    %v1132 = vunpack.c.l.s4 1966171168
    %v1133 = vunpack.c.0.s8 %v1132
    %v1134 = vlaneseq
    %v1135 = vshrl.u32 %v1134, 7
    %v1136 = vsub.s32 %v1133, %v1135
    %v1137 = vrot.slane %v1115, %v1136
    %v1139 = vunpack.c.l.s4 1966171168
    %v1140 = vunpack.c.0.s8 %v1139
    %v1141 = vlaneseq
    %v1142 = vshrl.u32 %v1141, 7
    %v1143 = vsub.s32 %v1140, %v1142
    %v1144 = vrot.slane %v1116, %v1143
    %v1145 = vcombine.low %v1123, %v1130
    %v1146 = vcombine.low %v1137, %v1144
    %v1148 = vunpack.c.l.s4 1966171168
    %v1149 = vunpack.c.0.s8 %v1148
    %v1150 = vlaneseq
    %v1151 = vshrl.u32 %v1150, 7
    %v1152 = vsub.s32 %v1149, %v1151
    %v1153 = vrot.slane %v1145, %v1152
    %v1155 = vunpack.c.l.s4 1966171168
    %v1156 = vunpack.c.0.s8 %v1155
    %v1157 = vlaneseq
    %v1158 = vshrl.u32 %v1157, 7
    %v1159 = vsub.s32 %v1156, %v1158
    %v1160 = vrot.slane %v1146, %v1159
    %v1161 = vcombine.low %v1153, %v1160
    %1163 = vmatprep.subr.mxu0 %v525
    %1164 = vmatpush1.msra.mxu0 %v524
    %1165 = vmatprep.subr.mxu0 %v521
    %1166 = vmatpush1.msra.mxu0 %v520
    %1167 = vmatprep.subr.mxu0 %v517
    %1168 = vmatpush1.msra.mxu0 %v516
    %1169 = vmatprep.subr.mxu0 %v513
    %1170 = vmatpush1.msra.mxu0 %v512
    %1171 = vmatprep.subr.mxu0 %v509
    %1172 = vmatpush1.msra.mxu0 %v508
    %1173 = vmatprep.subr.mxu0 %v505
    %1174 = vmatpush1.msra.mxu0 %v504
    %1175 = vmatprep.subr.mxu0 %v501
    %1176 = vmatpush1.msra.mxu0 %v500
    %1177 = vmatprep.subr.mxu0 %v497
    %1178 = vmatpush1.msra.mxu0 %v496
    %1179 = vmatprep.subr.mxu0 %v493
    %1180 = vmatpush1.msra.mxu0 %v492
    %1181 = vmatprep.subr.mxu0 %v489
    %1182 = vmatpush1.msra.mxu0 %v488
    %1183 = vmatprep.subr.mxu0 %v485
    %1184 = vmatpush1.msra.mxu0 %v484
    %1185 = vmatprep.subr.mxu0 %v481
    %1186 = vmatpush1.msra.mxu0 %v480
    %1187 = vmatprep.subr.mxu0 %v477
    %1188 = vmatpush1.msra.mxu0 %v476
    %1189 = vmatprep.subr.mxu0 %v473
    %1190 = vmatpush1.msra.mxu0 %v472
    %1191 = vmatprep.subr.mxu0 %v469
    %1192 = vmatpush1.msra.mxu0 %v468
    %1193 = vmatprep.subr.mxu0 %v465
    %1194 = vmatpush1.msra.mxu0 %v464
    %1195 = vmatprep.subr.mxu0 0.0
    %1196 = vmatpush2.msra.mxu0 0.0
    %1197 = vmatprep.subr.mxu0 0.0
    %1198 = vmatpush2.msra.mxu0 0.0
    %1199 = vmatprep.subr.mxu0 0.0
    %1200 = vmatpush2.msra.mxu0 0.0
    %1201 = vmatprep.subr.mxu0 0.0
    %1202 = vmatpush2.msra.mxu0 0.0
    %1203 = vmatprep.subr.mxu0 0.0
    %1204 = vmatpush2.msra.mxu0 0.0
    %1205 = vmatprep.subr.mxu0 0.0
    %1206 = vmatpush2.msra.mxu0 0.0
    %1207 = vmatprep.subr.mxu0 0.0
    %1208 = vmatpush2.msra.mxu0 0.0
    %1209 = vmatprep.subr.mxu0 0.0
    %1210 = vmatpush2.msra.mxu0 0.0
    %1211 = vmatprep.subr.mxu0 0.0
    %1212 = vmatpush2.msra.mxu0 0.0
    %1213 = vmatprep.subr.mxu0 0.0
    %1214 = vmatpush2.msra.mxu0 0.0
    %1215 = vmatprep.subr.mxu0 0.0
    %1216 = vmatpush2.msra.mxu0 0.0
    %1217 = vmatprep.subr.mxu0 0.0
    %1218 = vmatpush2.msra.mxu0 0.0
    %1219 = vmatprep.subr.mxu0 0.0
    %1220 = vmatpush2.msra.mxu0 0.0
    %1221 = vmatprep.subr.mxu0 0.0
    %1222 = vmatpush2.msra.mxu0 0.0
    %1223 = vmatprep.subr.mxu0 0.0
    %1224 = vmatpush2.msra.mxu0 0.0
    %1225 = vmatprep.subr.mxu0 0.0
    %1226 = vmatpush2.msra.mxu0 0.0
    %1227 = vmatprep.mubr.f32.mxu0 0.0
    %1228 = vmatmul.mubr.f32.gmra.mxu0 %v1161
    %v1229 = vpop.f32.mrf.mxu0
    %v1230 = vadd.f32 0.0, %v1229
    %v1231 = vpop.f32.mrf.mxu0
    %v1232 = vadd.f32 0.0, %v1231
    %1233 = vdwg.mxu0
    %1234 = vmatprep.subr.mxu0 %v527
    %1235 = vmatpush1.msra.mxu0 %v526
    %1236 = vmatprep.subr.mxu0 %v523
    %1237 = vmatpush1.msra.mxu0 %v522
    %1238 = vmatprep.subr.mxu0 %v519
    %1239 = vmatpush1.msra.mxu0 %v518
    %1240 = vmatprep.subr.mxu0 %v515
    %1241 = vmatpush1.msra.mxu0 %v514
    %1242 = vmatprep.subr.mxu0 %v511
    %1243 = vmatpush1.msra.mxu0 %v510
    %1244 = vmatprep.subr.mxu0 %v507
    %1245 = vmatpush1.msra.mxu0 %v506
    %1246 = vmatprep.subr.mxu0 %v503
    %1247 = vmatpush1.msra.mxu0 %v502
    %1248 = vmatprep.subr.mxu0 %v499
    %1249 = vmatpush1.msra.mxu0 %v498
    %1250 = vmatprep.subr.mxu0 %v495
    %1251 = vmatpush1.msra.mxu0 %v494
    %1252 = vmatprep.subr.mxu0 %v491
    %1253 = vmatpush1.msra.mxu0 %v490
    %1254 = vmatprep.subr.mxu0 %v487
    %1255 = vmatpush1.msra.mxu0 %v486
    %1256 = vmatprep.subr.mxu0 %v483
    %1257 = vmatpush1.msra.mxu0 %v482
    %1258 = vmatprep.subr.mxu0 %v479
    %1259 = vmatpush1.msra.mxu0 %v478
    %1260 = vmatprep.subr.mxu0 %v475
    %1261 = vmatpush1.msra.mxu0 %v474
    %1262 = vmatprep.subr.mxu0 %v471
    %1263 = vmatpush1.msra.mxu0 %v470
    %1264 = vmatprep.subr.mxu0 %v467
    %1265 = vmatpush1.msra.mxu0 %v466
    %1266 = vmatprep.subr.mxu0 0.0
    %1267 = vmatpush2.msra.mxu0 0.0
    %1268 = vmatprep.subr.mxu0 0.0
    %1269 = vmatpush2.msra.mxu0 0.0
    %1270 = vmatprep.subr.mxu0 0.0
    %1271 = vmatpush2.msra.mxu0 0.0
    %1272 = vmatprep.subr.mxu0 0.0
    %1273 = vmatpush2.msra.mxu0 0.0
    %1274 = vmatprep.subr.mxu0 0.0
    %1275 = vmatpush2.msra.mxu0 0.0
    %1276 = vmatprep.subr.mxu0 0.0
    %1277 = vmatpush2.msra.mxu0 0.0
    %1278 = vmatprep.subr.mxu0 0.0
    %1279 = vmatpush2.msra.mxu0 0.0
    %1280 = vmatprep.subr.mxu0 0.0
    %1281 = vmatpush2.msra.mxu0 0.0
    %1282 = vmatprep.subr.mxu0 0.0
    %1283 = vmatpush2.msra.mxu0 0.0
    %1284 = vmatprep.subr.mxu0 0.0
    %1285 = vmatpush2.msra.mxu0 0.0
    %1286 = vmatprep.subr.mxu0 0.0
    %1287 = vmatpush2.msra.mxu0 0.0
    %1288 = vmatprep.subr.mxu0 0.0
    %1289 = vmatpush2.msra.mxu0 0.0
    %1290 = vmatprep.subr.mxu0 0.0
    %1291 = vmatpush2.msra.mxu0 0.0
    %1292 = vmatprep.subr.mxu0 0.0
    %1293 = vmatpush2.msra.mxu0 0.0
    %1294 = vmatprep.subr.mxu0 0.0
    %1295 = vmatpush2.msra.mxu0 0.0
    %1296 = vmatprep.subr.mxu0 0.0
    %1297 = vmatpush2.msra.mxu0 0.0
    %1298 = vmatprep.mubr.f32.mxu0 0.0
    %1299 = vmatmul.mubr.f32.gmra.mxu0 %v1161
    %v1300 = vpop.f32.mrf.mxu0
    %v1301 = vadd.f32 0.0, %v1300
    %v1302 = vpop.f32.mrf.mxu0
    %v1303 = vadd.f32 0.0, %v1302
    %1304 = vdwg.mxu0
    %v1309 = vcombine.low %v1230, %v1232
    %v1310 = vcombine.high %v1230, %v1232
    %v1311 = vcombine.low %v1301, %v1303
    %v1312 = vcombine.high %v1301, %v1303
    %v1314 = vunpack.c.l.s4 1966171168
    %v1315 = vunpack.c.0.s8 %v1314
    %v1316 = vlaneseq
    %v1317 = vshrl.u32 %v1316, 7
    %v1318 = vsub.s32 %v1315, %v1317
    %v1319 = vrot.slane %v1309, %v1318
    %v1321 = vunpack.c.l.s4 1966171168
    %v1322 = vunpack.c.0.s8 %v1321
    %v1323 = vlaneseq
    %v1324 = vshrl.u32 %v1323, 7
    %v1325 = vsub.s32 %v1322, %v1324
    %v1326 = vrot.slane %v1310, %v1325
    %v1328 = vunpack.c.l.s4 1966171168
    %v1329 = vunpack.c.0.s8 %v1328
    %v1330 = vlaneseq
    %v1331 = vshrl.u32 %v1330, 7
    %v1332 = vsub.s32 %v1329, %v1331
    %v1333 = vrot.slane %v1311, %v1332
    %v1335 = vunpack.c.l.s4 1966171168
    %v1336 = vunpack.c.0.s8 %v1335
    %v1337 = vlaneseq
    %v1338 = vshrl.u32 %v1337, 7
    %v1339 = vsub.s32 %v1336, %v1338
    %v1340 = vrot.slane %v1312, %v1339
    %v1341 = vcombine.low %v1319, %v1333
    %v1342 = vcombine.high %v1319, %v1333
    %v1343 = vcombine.low %v1326, %v1340
    %v1344 = vcombine.high %v1326, %v1340
    %v1346 = vunpack.c.l.s4 1966171168
    %v1347 = vunpack.c.0.s8 %v1346
    %v1348 = vlaneseq
    %v1349 = vshrl.u32 %v1348, 7
    %v1350 = vsub.s32 %v1347, %v1349
    %v1351 = vrot.slane %v1341, %v1350
    %v1353 = vunpack.c.l.s4 1966171168
    %v1354 = vunpack.c.0.s8 %v1353
    %v1355 = vlaneseq
    %v1356 = vshrl.u32 %v1355, 7
    %v1357 = vsub.s32 %v1354, %v1356
    %v1358 = vrot.slane %v1343, %v1357
    %v1360 = vunpack.c.l.s4 1966171168
    %v1361 = vunpack.c.0.s8 %v1360
    %v1362 = vlaneseq
    %v1363 = vshrl.u32 %v1362, 7
    %v1364 = vsub.s32 %v1361, %v1363
    %v1365 = vrot.slane %v1342, %v1364
    %v1367 = vunpack.c.l.s4 1966171168
    %v1368 = vunpack.c.0.s8 %v1367
    %v1369 = vlaneseq
    %v1370 = vshrl.u32 %v1369, 7
    %v1371 = vsub.s32 %v1368, %v1370
    %v1372 = vrot.slane %v1344, %v1371
    %v1373 = vcombine.high %v1351, %v1351
    %v1374 = vcombine.high %v1358, %v1358
    %v1375 = vcombine.high %v1365, %v1365
    %v1376 = vcombine.high %v1372, %v1372
    %v1385 = vadd.f32 %v1090, %v1351
    %v1386 = vadd.f32 %v1092, %v1365
    %v1387 = vadd.f32 %v1094, %v1373
    %v1388 = vadd.f32 %v1096, %v1375
    %v1389 = vadd.f32 %v1098, %v1358
    %v1390 = vadd.f32 %v1100, %v1372
    %v1391 = vadd.f32 %v1102, %v1374
    %v1392 = vadd.f32 %v1104, %v1376
    %v1393 = vxor.u32 %v1385, 2147483648
    %v1394 = vxor.u32 %v1386, 2147483648
    %v1395 = vxor.u32 %v1387, 2147483648
    %v1396 = vxor.u32 %v1388, 2147483648
    %v1397 = vxor.u32 %v1389, 2147483648
    %v1398 = vxor.u32 %v1390, 2147483648
    %v1399 = vxor.u32 %v1391, 2147483648
    %v1400 = vxor.u32 %v1392, 2147483648
    %v1401 = vmul.f32 %v1393, 1.442695
    %v1402 = vpow.pop %v1401
    %v1403 = vmul.f32 %v1394, 1.442695
    %v1404 = vpow.pop %v1403
    %v1405 = vmul.f32 %v1395, 1.442695
    %v1406 = vpow.pop %v1405
    %v1407 = vmul.f32 %v1396, 1.442695
    %v1408 = vpow.pop %v1407
    %v1409 = vmul.f32 %v1397, 1.442695
    %v1410 = vpow.pop %v1409
    %v1411 = vmul.f32 %v1398, 1.442695
    %v1412 = vpow.pop %v1411
    %v1413 = vmul.f32 %v1399, 1.442695
    %v1414 = vpow.pop %v1413
    %v1415 = vmul.f32 %v1400, 1.442695
    %v1416 = vpow.pop %v1415
    %v1417 = vadd.f32 %v1402, 1.0
    %v1418 = vadd.f32 %v1404, 1.0
    %v1419 = vadd.f32 %v1406, 1.0
    %v1420 = vadd.f32 %v1408, 1.0
    %v1421 = vadd.f32 %v1410, 1.0
    %v1422 = vadd.f32 %v1412, 1.0
    %v1423 = vadd.f32 %v1414, 1.0
    %v1424 = vadd.f32 %v1416, 1.0
    %v1425 = vrcp.pop %v1417
    %v1426 = vmul.f32 1.0, %v1425
    %v1427 = vrcp.pop %v1418
    %v1428 = vmul.f32 1.0, %v1427
    %v1429 = vrcp.pop %v1419
    %v1430 = vmul.f32 1.0, %v1429
    %v1431 = vrcp.pop %v1420
    %v1432 = vmul.f32 1.0, %v1431
    %v1433 = vrcp.pop %v1421
    %v1434 = vmul.f32 1.0, %v1433
    %v1435 = vrcp.pop %v1422
    %v1436 = vmul.f32 1.0, %v1435
    %v1437 = vrcp.pop %v1423
    %v1438 = vmul.f32 1.0, %v1437
    %v1439 = vrcp.pop %v1424
    %v1440 = vmul.f32 1.0, %v1439
    %v1449 = vrot.slane %v1385, 1
    %v1450 = vrot.slane %v1386, 1
    %v1451 = vrot.slane %v1387, 1
    %v1452 = vrot.slane %v1388, 1
    %v1453 = vrot.slane %v1389, 1
    %v1454 = vrot.slane %v1390, 1
    %v1455 = vrot.slane %v1391, 1
    %v1456 = vrot.slane %v1392, 1
    %v1465 = vxor.u32 %v1449, 2147483648
    %v1466 = vxor.u32 %v1450, 2147483648
    %v1467 = vxor.u32 %v1451, 2147483648
    %v1468 = vxor.u32 %v1452, 2147483648
    %v1469 = vxor.u32 %v1453, 2147483648
    %v1470 = vxor.u32 %v1454, 2147483648
    %v1471 = vxor.u32 %v1455, 2147483648
    %v1472 = vxor.u32 %v1456, 2147483648
    %v1473 = vmul.f32 %v1465, 1.442695
    %v1474 = vpow.pop %v1473
    %v1475 = vmul.f32 %v1466, 1.442695
    %v1476 = vpow.pop %v1475
    %v1477 = vmul.f32 %v1467, 1.442695
    %v1478 = vpow.pop %v1477
    %v1479 = vmul.f32 %v1468, 1.442695
    %v1480 = vpow.pop %v1479
    %v1481 = vmul.f32 %v1469, 1.442695
    %v1482 = vpow.pop %v1481
    %v1483 = vmul.f32 %v1470, 1.442695
    %v1484 = vpow.pop %v1483
    %v1485 = vmul.f32 %v1471, 1.442695
    %v1486 = vpow.pop %v1485
    %v1487 = vmul.f32 %v1472, 1.442695
    %v1488 = vpow.pop %v1487
    %v1489 = vadd.f32 %v1474, 1.0
    %v1490 = vadd.f32 %v1476, 1.0
    %v1491 = vadd.f32 %v1478, 1.0
    %v1492 = vadd.f32 %v1480, 1.0
    %v1493 = vadd.f32 %v1482, 1.0
    %v1494 = vadd.f32 %v1484, 1.0
    %v1495 = vadd.f32 %v1486, 1.0
    %v1496 = vadd.f32 %v1488, 1.0
    %v1497 = vrcp.pop %v1489
    %v1498 = vmul.f32 1.0, %v1497
    %v1499 = vrcp.pop %v1490
    %v1500 = vmul.f32 1.0, %v1499
    %v1501 = vrcp.pop %v1491
    %v1502 = vmul.f32 1.0, %v1501
    %v1503 = vrcp.pop %v1492
    %v1504 = vmul.f32 1.0, %v1503
    %v1505 = vrcp.pop %v1493
    %v1506 = vmul.f32 1.0, %v1505
    %v1507 = vrcp.pop %v1494
    %v1508 = vmul.f32 1.0, %v1507
    %v1509 = vrcp.pop %v1495
    %v1510 = vmul.f32 1.0, %v1509
    %v1511 = vrcp.pop %v1496
    %v1512 = vmul.f32 1.0, %v1511
    %v1513 = vrot.slane %v1385, 2
    %v1514 = vrot.slane %v1386, 2
    %v1515 = vrot.slane %v1387, 2
    %v1516 = vrot.slane %v1388, 2
    %v1517 = vrot.slane %v1389, 2
    %v1518 = vrot.slane %v1390, 2
    %v1519 = vrot.slane %v1391, 2
    %v1520 = vrot.slane %v1392, 2
    %v1529 = vtanh.pop %v1513
    %v1530 = vtanh.pop %v1514
    %v1531 = vtanh.pop %v1515
    %v1532 = vtanh.pop %v1516
    %v1533 = vtanh.pop %v1517
    %v1534 = vtanh.pop %v1518
    %v1535 = vtanh.pop %v1519
    %v1536 = vtanh.pop %v1520
    %v1537 = vrot.slane %v1385, 3
    %v1538 = vrot.slane %v1386, 3
    %v1539 = vrot.slane %v1387, 3
    %v1540 = vrot.slane %v1388, 3
    %v1541 = vrot.slane %v1389, 3
    %v1542 = vrot.slane %v1390, 3
    %v1543 = vrot.slane %v1391, 3
    %v1544 = vrot.slane %v1392, 3
    %v1553 = vxor.u32 %v1537, 2147483648
    %v1554 = vxor.u32 %v1538, 2147483648
    %v1555 = vxor.u32 %v1539, 2147483648
    %v1556 = vxor.u32 %v1540, 2147483648
    %v1557 = vxor.u32 %v1541, 2147483648
    %v1558 = vxor.u32 %v1542, 2147483648
    %v1559 = vxor.u32 %v1543, 2147483648
    %v1560 = vxor.u32 %v1544, 2147483648
    %v1561 = vmul.f32 %v1553, 1.442695
    %v1562 = vpow.pop %v1561
    %v1563 = vmul.f32 %v1554, 1.442695
    %v1564 = vpow.pop %v1563
    %v1565 = vmul.f32 %v1555, 1.442695
    %v1566 = vpow.pop %v1565
    %v1567 = vmul.f32 %v1556, 1.442695
    %v1568 = vpow.pop %v1567
    %v1569 = vmul.f32 %v1557, 1.442695
    %v1570 = vpow.pop %v1569
    %v1571 = vmul.f32 %v1558, 1.442695
    %v1572 = vpow.pop %v1571
    %v1573 = vmul.f32 %v1559, 1.442695
    %v1574 = vpow.pop %v1573
    %v1575 = vmul.f32 %v1560, 1.442695
    %v1576 = vpow.pop %v1575
    %v1577 = vadd.f32 %v1562, 1.0
    %v1578 = vadd.f32 %v1564, 1.0
    %v1579 = vadd.f32 %v1566, 1.0
    %v1580 = vadd.f32 %v1568, 1.0
    %v1581 = vadd.f32 %v1570, 1.0
    %v1582 = vadd.f32 %v1572, 1.0
    %v1583 = vadd.f32 %v1574, 1.0
    %v1584 = vadd.f32 %v1576, 1.0
    %v1585 = vrcp.pop %v1577
    %v1586 = vmul.f32 1.0, %v1585
    %v1587 = vrcp.pop %v1578
    %v1588 = vmul.f32 1.0, %v1587
    %v1589 = vrcp.pop %v1579
    %v1590 = vmul.f32 1.0, %v1589
    %v1591 = vrcp.pop %v1580
    %v1592 = vmul.f32 1.0, %v1591
    %v1593 = vrcp.pop %v1581
    %v1594 = vmul.f32 1.0, %v1593
    %v1595 = vrcp.pop %v1582
    %v1596 = vmul.f32 1.0, %v1595
    %v1597 = vrcp.pop %v1583
    %v1598 = vmul.f32 1.0, %v1597
    %v1599 = vrcp.pop %v1584
    %v1600 = vmul.f32 1.0, %v1599
    %v1601 = vmul.f32 %v1498, %v1057
    %v1602 = vmul.f32 %v1500, %v1058
    %v1603 = vmul.f32 %v1502, %v1059
    %v1604 = vmul.f32 %v1504, %v1060
    %v1605 = vmul.f32 %v1506, %v1061
    %v1606 = vmul.f32 %v1508, %v1062
    %v1607 = vmul.f32 %v1510, %v1063
    %v1608 = vmul.f32 %v1512, %v1064
    %v1609 = vmul.f32 %v1426, %v1529
    %v1610 = vmul.f32 %v1428, %v1530
    %v1611 = vmul.f32 %v1430, %v1531
    %v1612 = vmul.f32 %v1432, %v1532
    %v1613 = vmul.f32 %v1434, %v1533
    %v1614 = vmul.f32 %v1436, %v1534
    %v1615 = vmul.f32 %v1438, %v1535
    %v1616 = vmul.f32 %v1440, %v1536
    %v1617 = vadd.f32 %v1601, %v1609
    %v1618 = vadd.f32 %v1602, %v1610
    %v1619 = vadd.f32 %v1603, %v1611
    %v1620 = vadd.f32 %v1604, %v1612
    %v1621 = vadd.f32 %v1605, %v1613
    %v1622 = vadd.f32 %v1606, %v1614
    %v1623 = vadd.f32 %v1607, %v1615
    %v1624 = vadd.f32 %v1608, %v1616
    %v1625 = vtanh.pop %v1617
    %v1626 = vtanh.pop %v1618
    %v1627 = vtanh.pop %v1619
    %v1628 = vtanh.pop %v1620
    %v1629 = vtanh.pop %v1621
    %v1630 = vtanh.pop %v1622
    %v1631 = vtanh.pop %v1623
    %v1632 = vtanh.pop %v1624
    %v1633 = vmul.f32 %v1586, %v1625
    %v1634 = vmul.f32 %v1588, %v1626
    %v1635 = vmul.f32 %v1590, %v1627
    %v1636 = vmul.f32 %v1592, %v1628
    %v1637 = vmul.f32 %v1594, %v1629
    %v1638 = vmul.f32 %v1596, %v1630
    %v1639 = vmul.f32 %v1598, %v1631
    %v1640 = vmul.f32 %v1600, %v1632
    %1641 = vst [vmem:[#allocation3 + $0x1] sm:$0x1] %v1633
    %1642 = vst [vmem:[#allocation3 + $0x9] sm:$0x1] %v1634
    %1643 = vst [vmem:[#allocation3 + $0x11] sm:$0x1] %v1635
    %1644 = vst [vmem:[#allocation3 + $0x19] sm:$0x1] %v1636
    %1645 = vst [vmem:[#allocation3 + $0x21] sm:$0x1] %v1637
    %1646 = vst [vmem:[#allocation3 + $0x29] sm:$0x1] %v1638
    %1647 = vst [vmem:[#allocation3 + $0x31] sm:$0x1] %v1639
    %1648 = vst [vmem:[#allocation3 + $0x39] sm:$0x1] %v1640
    %s1649 = scalar_lea.vmem [#allocation2], 2
    %v1650 = vld [vmem:[%s1649] ss:$8 sm:$0xf]
    %s1651 = scalar_lea.vmem [#allocation2], 34
    %v1652 = vld [vmem:[%s1651] ss:$8 sm:$0xf]
    %s1653 = scalar_lea.vmem [#allocation2], 66
    %v1654 = vld [vmem:[%s1653] ss:$8 sm:$0xf]
    %s1655 = scalar_lea.vmem [#allocation2], 98
    %v1656 = vld [vmem:[%s1655] ss:$8 sm:$0xf]
    %s1657 = scalar_lea.vmem [#allocation2], 130
    %v1658 = vld [vmem:[%s1657] ss:$8 sm:$0xf]
    %s1659 = scalar_lea.vmem [#allocation2], 162
    %v1660 = vld [vmem:[%s1659] ss:$8 sm:$0xf]
    %s1661 = scalar_lea.vmem [#allocation2], 194
    %v1662 = vld [vmem:[%s1661] ss:$8 sm:$0xf]
    %s1663 = scalar_lea.vmem [#allocation2], 226
    %v1664 = vld [vmem:[%s1663] ss:$8 sm:$0xf]
    %v1673 = vcombine.low %v1633, %v1634
    %v1674 = vcombine.low %v1635, %v1636
    %v1675 = vcombine.low %v1637, %v1638
    %v1676 = vcombine.low %v1639, %v1640
    %v1678 = vunpack.c.l.s4 1966171168
    %v1679 = vunpack.c.0.s8 %v1678
    %v1680 = vlaneseq
    %v1681 = vshrl.u32 %v1680, 7
    %v1682 = vsub.s32 %v1679, %v1681
    %v1683 = vrot.slane %v1673, %v1682
    %v1685 = vunpack.c.l.s4 1966171168
    %v1686 = vunpack.c.0.s8 %v1685
    %v1687 = vlaneseq
    %v1688 = vshrl.u32 %v1687, 7
    %v1689 = vsub.s32 %v1686, %v1688
    %v1690 = vrot.slane %v1674, %v1689
    %v1692 = vunpack.c.l.s4 1966171168
    %v1693 = vunpack.c.0.s8 %v1692
    %v1694 = vlaneseq
    %v1695 = vshrl.u32 %v1694, 7
    %v1696 = vsub.s32 %v1693, %v1695
    %v1697 = vrot.slane %v1675, %v1696
    %v1699 = vunpack.c.l.s4 1966171168
    %v1700 = vunpack.c.0.s8 %v1699
    %v1701 = vlaneseq
    %v1702 = vshrl.u32 %v1701, 7
    %v1703 = vsub.s32 %v1700, %v1702
    %v1704 = vrot.slane %v1676, %v1703
    %v1705 = vcombine.low %v1683, %v1690
    %v1706 = vcombine.low %v1697, %v1704
    %v1708 = vunpack.c.l.s4 1966171168
    %v1709 = vunpack.c.0.s8 %v1708
    %v1710 = vlaneseq
    %v1711 = vshrl.u32 %v1710, 7
    %v1712 = vsub.s32 %v1709, %v1711
    %v1713 = vrot.slane %v1705, %v1712
    %v1715 = vunpack.c.l.s4 1966171168
    %v1716 = vunpack.c.0.s8 %v1715
    %v1717 = vlaneseq
    %v1718 = vshrl.u32 %v1717, 7
    %v1719 = vsub.s32 %v1716, %v1718
    %v1720 = vrot.slane %v1706, %v1719
    %v1721 = vcombine.low %v1713, %v1720
    %1723 = vmatprep.subr.mxu0 %v525
    %1724 = vmatpush1.msra.mxu0 %v524
    %1725 = vmatprep.subr.mxu0 %v521
    %1726 = vmatpush1.msra.mxu0 %v520
    %1727 = vmatprep.subr.mxu0 %v517
    %1728 = vmatpush1.msra.mxu0 %v516
    %1729 = vmatprep.subr.mxu0 %v513
    %1730 = vmatpush1.msra.mxu0 %v512
    %1731 = vmatprep.subr.mxu0 %v509
    %1732 = vmatpush1.msra.mxu0 %v508
    %1733 = vmatprep.subr.mxu0 %v505
    %1734 = vmatpush1.msra.mxu0 %v504
    %1735 = vmatprep.subr.mxu0 %v501
    %1736 = vmatpush1.msra.mxu0 %v500
    %1737 = vmatprep.subr.mxu0 %v497
    %1738 = vmatpush1.msra.mxu0 %v496
    %1739 = vmatprep.subr.mxu0 %v493
    %1740 = vmatpush1.msra.mxu0 %v492
    %1741 = vmatprep.subr.mxu0 %v489
    %1742 = vmatpush1.msra.mxu0 %v488
    %1743 = vmatprep.subr.mxu0 %v485
    %1744 = vmatpush1.msra.mxu0 %v484
    %1745 = vmatprep.subr.mxu0 %v481
    %1746 = vmatpush1.msra.mxu0 %v480
    %1747 = vmatprep.subr.mxu0 %v477
    %1748 = vmatpush1.msra.mxu0 %v476
    %1749 = vmatprep.subr.mxu0 %v473
    %1750 = vmatpush1.msra.mxu0 %v472
    %1751 = vmatprep.subr.mxu0 %v469
    %1752 = vmatpush1.msra.mxu0 %v468
    %1753 = vmatprep.subr.mxu0 %v465
    %1754 = vmatpush1.msra.mxu0 %v464
    %1755 = vmatprep.subr.mxu0 0.0
    %1756 = vmatpush2.msra.mxu0 0.0
    %1757 = vmatprep.subr.mxu0 0.0
    %1758 = vmatpush2.msra.mxu0 0.0
    %1759 = vmatprep.subr.mxu0 0.0
    %1760 = vmatpush2.msra.mxu0 0.0
    %1761 = vmatprep.subr.mxu0 0.0
    %1762 = vmatpush2.msra.mxu0 0.0
    %1763 = vmatprep.subr.mxu0 0.0
    %1764 = vmatpush2.msra.mxu0 0.0
    %1765 = vmatprep.subr.mxu0 0.0
    %1766 = vmatpush2.msra.mxu0 0.0
    %1767 = vmatprep.subr.mxu0 0.0
    %1768 = vmatpush2.msra.mxu0 0.0
    %1769 = vmatprep.subr.mxu0 0.0
    %1770 = vmatpush2.msra.mxu0 0.0
    %1771 = vmatprep.subr.mxu0 0.0
    %1772 = vmatpush2.msra.mxu0 0.0
    %1773 = vmatprep.subr.mxu0 0.0
    %1774 = vmatpush2.msra.mxu0 0.0
    %1775 = vmatprep.subr.mxu0 0.0
    %1776 = vmatpush2.msra.mxu0 0.0
    %1777 = vmatprep.subr.mxu0 0.0
    %1778 = vmatpush2.msra.mxu0 0.0
    %1779 = vmatprep.subr.mxu0 0.0
    %1780 = vmatpush2.msra.mxu0 0.0
    %1781 = vmatprep.subr.mxu0 0.0
    %1782 = vmatpush2.msra.mxu0 0.0
    %1783 = vmatprep.subr.mxu0 0.0
    %1784 = vmatpush2.msra.mxu0 0.0
    %1785 = vmatprep.subr.mxu0 0.0
    %1786 = vmatpush2.msra.mxu0 0.0
    %1787 = vmatprep.mubr.f32.mxu0 0.0
    %1788 = vmatmul.mubr.f32.gmra.mxu0 %v1721
    %v1789 = vpop.f32.mrf.mxu0
    %v1790 = vadd.f32 0.0, %v1789
    %v1791 = vpop.f32.mrf.mxu0
    %v1792 = vadd.f32 0.0, %v1791
    %1793 = vdwg.mxu0
    %1794 = vmatprep.subr.mxu0 %v527
    %1795 = vmatpush1.msra.mxu0 %v526
    %1796 = vmatprep.subr.mxu0 %v523
    %1797 = vmatpush1.msra.mxu0 %v522
    %1798 = vmatprep.subr.mxu0 %v519
    %1799 = vmatpush1.msra.mxu0 %v518
    %1800 = vmatprep.subr.mxu0 %v515
    %1801 = vmatpush1.msra.mxu0 %v514
    %1802 = vmatprep.subr.mxu0 %v511
    %1803 = vmatpush1.msra.mxu0 %v510
    %1804 = vmatprep.subr.mxu0 %v507
    %1805 = vmatpush1.msra.mxu0 %v506
    %1806 = vmatprep.subr.mxu0 %v503
    %1807 = vmatpush1.msra.mxu0 %v502
    %1808 = vmatprep.subr.mxu0 %v499
    %1809 = vmatpush1.msra.mxu0 %v498
    %1810 = vmatprep.subr.mxu0 %v495
    %1811 = vmatpush1.msra.mxu0 %v494
    %1812 = vmatprep.subr.mxu0 %v491
    %1813 = vmatpush1.msra.mxu0 %v490
    %1814 = vmatprep.subr.mxu0 %v487
    %1815 = vmatpush1.msra.mxu0 %v486
    %1816 = vmatprep.subr.mxu0 %v483
    %1817 = vmatpush1.msra.mxu0 %v482
    %1818 = vmatprep.subr.mxu0 %v479
    %1819 = vmatpush1.msra.mxu0 %v478
    %1820 = vmatprep.subr.mxu0 %v475
    %1821 = vmatpush1.msra.mxu0 %v474
    %1822 = vmatprep.subr.mxu0 %v471
    %1823 = vmatpush1.msra.mxu0 %v470
    %1824 = vmatprep.subr.mxu0 %v467
    %1825 = vmatpush1.msra.mxu0 %v466
    %1826 = vmatprep.subr.mxu0 0.0
    %1827 = vmatpush2.msra.mxu0 0.0
    %1828 = vmatprep.subr.mxu0 0.0
    %1829 = vmatpush2.msra.mxu0 0.0
    %1830 = vmatprep.subr.mxu0 0.0
    %1831 = vmatpush2.msra.mxu0 0.0
    %1832 = vmatprep.subr.mxu0 0.0
    %1833 = vmatpush2.msra.mxu0 0.0
    %1834 = vmatprep.subr.mxu0 0.0
    %1835 = vmatpush2.msra.mxu0 0.0
    %1836 = vmatprep.subr.mxu0 0.0
    %1837 = vmatpush2.msra.mxu0 0.0
    %1838 = vmatprep.subr.mxu0 0.0
    %1839 = vmatpush2.msra.mxu0 0.0
    %1840 = vmatprep.subr.mxu0 0.0
    %1841 = vmatpush2.msra.mxu0 0.0
    %1842 = vmatprep.subr.mxu0 0.0
    %1843 = vmatpush2.msra.mxu0 0.0
    %1844 = vmatprep.subr.mxu0 0.0
    %1845 = vmatpush2.msra.mxu0 0.0
    %1846 = vmatprep.subr.mxu0 0.0
    %1847 = vmatpush2.msra.mxu0 0.0
    %1848 = vmatprep.subr.mxu0 0.0
    %1849 = vmatpush2.msra.mxu0 0.0
    %1850 = vmatprep.subr.mxu0 0.0
    %1851 = vmatpush2.msra.mxu0 0.0
    %1852 = vmatprep.subr.mxu0 0.0
    %1853 = vmatpush2.msra.mxu0 0.0
    %1854 = vmatprep.subr.mxu0 0.0
    %1855 = vmatpush2.msra.mxu0 0.0
    %1856 = vmatprep.subr.mxu0 0.0
    %1857 = vmatpush2.msra.mxu0 0.0
    %1858 = vmatprep.mubr.f32.mxu0 0.0
    %1859 = vmatmul.mubr.f32.gmra.mxu0 %v1721
    %v1860 = vpop.f32.mrf.mxu0
    %v1861 = vadd.f32 0.0, %v1860
    %v1862 = vpop.f32.mrf.mxu0
    %v1863 = vadd.f32 0.0, %v1862
    %1864 = vdwg.mxu0
    %v1869 = vcombine.low %v1790, %v1792
    %v1870 = vcombine.high %v1790, %v1792
    %v1871 = vcombine.low %v1861, %v1863
    %v1872 = vcombine.high %v1861, %v1863
    %v1874 = vunpack.c.l.s4 1966171168
    %v1875 = vunpack.c.0.s8 %v1874
    %v1876 = vlaneseq
    %v1877 = vshrl.u32 %v1876, 7
    %v1878 = vsub.s32 %v1875, %v1877
    %v1879 = vrot.slane %v1869, %v1878
    %v1881 = vunpack.c.l.s4 1966171168
    %v1882 = vunpack.c.0.s8 %v1881
    %v1883 = vlaneseq
    %v1884 = vshrl.u32 %v1883, 7
    %v1885 = vsub.s32 %v1882, %v1884
    %v1886 = vrot.slane %v1870, %v1885
    %v1888 = vunpack.c.l.s4 1966171168
    %v1889 = vunpack.c.0.s8 %v1888
    %v1890 = vlaneseq
    %v1891 = vshrl.u32 %v1890, 7
    %v1892 = vsub.s32 %v1889, %v1891
    %v1893 = vrot.slane %v1871, %v1892
    %v1895 = vunpack.c.l.s4 1966171168
    %v1896 = vunpack.c.0.s8 %v1895
    %v1897 = vlaneseq
    %v1898 = vshrl.u32 %v1897, 7
    %v1899 = vsub.s32 %v1896, %v1898
    %v1900 = vrot.slane %v1872, %v1899
    %v1901 = vcombine.low %v1879, %v1893
    %v1902 = vcombine.high %v1879, %v1893
    %v1903 = vcombine.low %v1886, %v1900
    %v1904 = vcombine.high %v1886, %v1900
    %v1906 = vunpack.c.l.s4 1966171168
    %v1907 = vunpack.c.0.s8 %v1906
    %v1908 = vlaneseq
    %v1909 = vshrl.u32 %v1908, 7
    %v1910 = vsub.s32 %v1907, %v1909
    %v1911 = vrot.slane %v1901, %v1910
    %v1913 = vunpack.c.l.s4 1966171168
    %v1914 = vunpack.c.0.s8 %v1913
    %v1915 = vlaneseq
    %v1916 = vshrl.u32 %v1915, 7
    %v1917 = vsub.s32 %v1914, %v1916
    %v1918 = vrot.slane %v1903, %v1917
    %v1920 = vunpack.c.l.s4 1966171168
    %v1921 = vunpack.c.0.s8 %v1920
    %v1922 = vlaneseq
    %v1923 = vshrl.u32 %v1922, 7
    %v1924 = vsub.s32 %v1921, %v1923
    %v1925 = vrot.slane %v1902, %v1924
    %v1927 = vunpack.c.l.s4 1966171168
    %v1928 = vunpack.c.0.s8 %v1927
    %v1929 = vlaneseq
    %v1930 = vshrl.u32 %v1929, 7
    %v1931 = vsub.s32 %v1928, %v1930
    %v1932 = vrot.slane %v1904, %v1931
    %v1933 = vcombine.high %v1911, %v1911
    %v1934 = vcombine.high %v1918, %v1918
    %v1935 = vcombine.high %v1925, %v1925
    %v1936 = vcombine.high %v1932, %v1932
    %v1945 = vadd.f32 %v1650, %v1911
    %v1946 = vadd.f32 %v1652, %v1925
    %v1947 = vadd.f32 %v1654, %v1933
    %v1948 = vadd.f32 %v1656, %v1935
    %v1949 = vadd.f32 %v1658, %v1918
    %v1950 = vadd.f32 %v1660, %v1932
    %v1951 = vadd.f32 %v1662, %v1934
    %v1952 = vadd.f32 %v1664, %v1936
    %v1953 = vxor.u32 %v1945, 2147483648
    %v1954 = vxor.u32 %v1946, 2147483648
    %v1955 = vxor.u32 %v1947, 2147483648
    %v1956 = vxor.u32 %v1948, 2147483648
    %v1957 = vxor.u32 %v1949, 2147483648
    %v1958 = vxor.u32 %v1950, 2147483648
    %v1959 = vxor.u32 %v1951, 2147483648
    %v1960 = vxor.u32 %v1952, 2147483648
    %v1961 = vmul.f32 %v1953, 1.442695
    %v1962 = vpow.pop %v1961
    %v1963 = vmul.f32 %v1954, 1.442695
    %v1964 = vpow.pop %v1963
    %v1965 = vmul.f32 %v1955, 1.442695
    %v1966 = vpow.pop %v1965
    %v1967 = vmul.f32 %v1956, 1.442695
    %v1968 = vpow.pop %v1967
    %v1969 = vmul.f32 %v1957, 1.442695
    %v1970 = vpow.pop %v1969
    %v1971 = vmul.f32 %v1958, 1.442695
    %v1972 = vpow.pop %v1971
    %v1973 = vmul.f32 %v1959, 1.442695
    %v1974 = vpow.pop %v1973
    %v1975 = vmul.f32 %v1960, 1.442695
    %v1976 = vpow.pop %v1975
    %v1977 = vadd.f32 %v1962, 1.0
    %v1978 = vadd.f32 %v1964, 1.0
    %v1979 = vadd.f32 %v1966, 1.0
    %v1980 = vadd.f32 %v1968, 1.0
    %v1981 = vadd.f32 %v1970, 1.0
    %v1982 = vadd.f32 %v1972, 1.0
    %v1983 = vadd.f32 %v1974, 1.0
    %v1984 = vadd.f32 %v1976, 1.0
    %v1985 = vrcp.pop %v1977
    %v1986 = vmul.f32 1.0, %v1985
    %v1987 = vrcp.pop %v1978
    %v1988 = vmul.f32 1.0, %v1987
    %v1989 = vrcp.pop %v1979
    %v1990 = vmul.f32 1.0, %v1989
    %v1991 = vrcp.pop %v1980
    %v1992 = vmul.f32 1.0, %v1991
    %v1993 = vrcp.pop %v1981
    %v1994 = vmul.f32 1.0, %v1993
    %v1995 = vrcp.pop %v1982
    %v1996 = vmul.f32 1.0, %v1995
    %v1997 = vrcp.pop %v1983
    %v1998 = vmul.f32 1.0, %v1997
    %v1999 = vrcp.pop %v1984
    %v2000 = vmul.f32 1.0, %v1999
    %v2009 = vrot.slane %v1945, 1
    %v2010 = vrot.slane %v1946, 1
    %v2011 = vrot.slane %v1947, 1
    %v2012 = vrot.slane %v1948, 1
    %v2013 = vrot.slane %v1949, 1
    %v2014 = vrot.slane %v1950, 1
    %v2015 = vrot.slane %v1951, 1
    %v2016 = vrot.slane %v1952, 1
    %v2025 = vxor.u32 %v2009, 2147483648
    %v2026 = vxor.u32 %v2010, 2147483648
    %v2027 = vxor.u32 %v2011, 2147483648
    %v2028 = vxor.u32 %v2012, 2147483648
    %v2029 = vxor.u32 %v2013, 2147483648
    %v2030 = vxor.u32 %v2014, 2147483648
    %v2031 = vxor.u32 %v2015, 2147483648
    %v2032 = vxor.u32 %v2016, 2147483648
    %v2033 = vmul.f32 %v2025, 1.442695
    %v2034 = vpow.pop %v2033
    %v2035 = vmul.f32 %v2026, 1.442695
    %v2036 = vpow.pop %v2035
    %v2037 = vmul.f32 %v2027, 1.442695
    %v2038 = vpow.pop %v2037
    %v2039 = vmul.f32 %v2028, 1.442695
    %v2040 = vpow.pop %v2039
    %v2041 = vmul.f32 %v2029, 1.442695
    %v2042 = vpow.pop %v2041
    %v2043 = vmul.f32 %v2030, 1.442695
    %v2044 = vpow.pop %v2043
    %v2045 = vmul.f32 %v2031, 1.442695
    %v2046 = vpow.pop %v2045
    %v2047 = vmul.f32 %v2032, 1.442695
    %v2048 = vpow.pop %v2047
    %v2049 = vadd.f32 %v2034, 1.0
    %v2050 = vadd.f32 %v2036, 1.0
    %v2051 = vadd.f32 %v2038, 1.0
    %v2052 = vadd.f32 %v2040, 1.0
    %v2053 = vadd.f32 %v2042, 1.0
    %v2054 = vadd.f32 %v2044, 1.0
    %v2055 = vadd.f32 %v2046, 1.0
    %v2056 = vadd.f32 %v2048, 1.0
    %v2057 = vrcp.pop %v2049
    %v2058 = vmul.f32 1.0, %v2057
    %v2059 = vrcp.pop %v2050
    %v2060 = vmul.f32 1.0, %v2059
    %v2061 = vrcp.pop %v2051
    %v2062 = vmul.f32 1.0, %v2061
    %v2063 = vrcp.pop %v2052
    %v2064 = vmul.f32 1.0, %v2063
    %v2065 = vrcp.pop %v2053
    %v2066 = vmul.f32 1.0, %v2065
    %v2067 = vrcp.pop %v2054
    %v2068 = vmul.f32 1.0, %v2067
    %v2069 = vrcp.pop %v2055
    %v2070 = vmul.f32 1.0, %v2069
    %v2071 = vrcp.pop %v2056
    %v2072 = vmul.f32 1.0, %v2071
    %v2073 = vrot.slane %v1945, 2
    %v2074 = vrot.slane %v1946, 2
    %v2075 = vrot.slane %v1947, 2
    %v2076 = vrot.slane %v1948, 2
    %v2077 = vrot.slane %v1949, 2
    %v2078 = vrot.slane %v1950, 2
    %v2079 = vrot.slane %v1951, 2
    %v2080 = vrot.slane %v1952, 2
    %v2089 = vtanh.pop %v2073
    %v2090 = vtanh.pop %v2074
    %v2091 = vtanh.pop %v2075
    %v2092 = vtanh.pop %v2076
    %v2093 = vtanh.pop %v2077
    %v2094 = vtanh.pop %v2078
    %v2095 = vtanh.pop %v2079
    %v2096 = vtanh.pop %v2080
    %v2097 = vrot.slane %v1945, 3
    %v2098 = vrot.slane %v1946, 3
    %v2099 = vrot.slane %v1947, 3
    %v2100 = vrot.slane %v1948, 3
    %v2101 = vrot.slane %v1949, 3
    %v2102 = vrot.slane %v1950, 3
    %v2103 = vrot.slane %v1951, 3
    %v2104 = vrot.slane %v1952, 3
    %v2113 = vxor.u32 %v2097, 2147483648
    %v2114 = vxor.u32 %v2098, 2147483648
    %v2115 = vxor.u32 %v2099, 2147483648
    %v2116 = vxor.u32 %v2100, 2147483648
    %v2117 = vxor.u32 %v2101, 2147483648
    %v2118 = vxor.u32 %v2102, 2147483648
    %v2119 = vxor.u32 %v2103, 2147483648
    %v2120 = vxor.u32 %v2104, 2147483648
    %v2121 = vmul.f32 %v2113, 1.442695
    %v2122 = vpow.pop %v2121
    %v2123 = vmul.f32 %v2114, 1.442695
    %v2124 = vpow.pop %v2123
    %v2125 = vmul.f32 %v2115, 1.442695
    %v2126 = vpow.pop %v2125
    %v2127 = vmul.f32 %v2116, 1.442695
    %v2128 = vpow.pop %v2127
    %v2129 = vmul.f32 %v2117, 1.442695
    %v2130 = vpow.pop %v2129
    %v2131 = vmul.f32 %v2118, 1.442695
    %v2132 = vpow.pop %v2131
    %v2133 = vmul.f32 %v2119, 1.442695
    %v2134 = vpow.pop %v2133
    %v2135 = vmul.f32 %v2120, 1.442695
    %v2136 = vpow.pop %v2135
    %v2137 = vadd.f32 %v2122, 1.0
    %v2138 = vadd.f32 %v2124, 1.0
    %v2139 = vadd.f32 %v2126, 1.0
    %v2140 = vadd.f32 %v2128, 1.0
    %v2141 = vadd.f32 %v2130, 1.0
    %v2142 = vadd.f32 %v2132, 1.0
    %v2143 = vadd.f32 %v2134, 1.0
    %v2144 = vadd.f32 %v2136, 1.0
    %v2145 = vrcp.pop %v2137
    %v2146 = vmul.f32 1.0, %v2145
    %v2147 = vrcp.pop %v2138
    %v2148 = vmul.f32 1.0, %v2147
    %v2149 = vrcp.pop %v2139
    %v2150 = vmul.f32 1.0, %v2149
    %v2151 = vrcp.pop %v2140
    %v2152 = vmul.f32 1.0, %v2151
    %v2153 = vrcp.pop %v2141
    %v2154 = vmul.f32 1.0, %v2153
    %v2155 = vrcp.pop %v2142
    %v2156 = vmul.f32 1.0, %v2155
    %v2157 = vrcp.pop %v2143
    %v2158 = vmul.f32 1.0, %v2157
    %v2159 = vrcp.pop %v2144
    %v2160 = vmul.f32 1.0, %v2159
    %v2161 = vmul.f32 %v2058, %v1617
    %v2162 = vmul.f32 %v2060, %v1618
    %v2163 = vmul.f32 %v2062, %v1619
    %v2164 = vmul.f32 %v2064, %v1620
    %v2165 = vmul.f32 %v2066, %v1621
    %v2166 = vmul.f32 %v2068, %v1622
    %v2167 = vmul.f32 %v2070, %v1623
    %v2168 = vmul.f32 %v2072, %v1624
    %v2169 = vmul.f32 %v1986, %v2089
    %v2170 = vmul.f32 %v1988, %v2090
    %v2171 = vmul.f32 %v1990, %v2091
    %v2172 = vmul.f32 %v1992, %v2092
    %v2173 = vmul.f32 %v1994, %v2093
    %v2174 = vmul.f32 %v1996, %v2094
    %v2175 = vmul.f32 %v1998, %v2095
    %v2176 = vmul.f32 %v2000, %v2096
    %v2177 = vadd.f32 %v2161, %v2169
    %v2178 = vadd.f32 %v2162, %v2170
    %v2179 = vadd.f32 %v2163, %v2171
    %v2180 = vadd.f32 %v2164, %v2172
    %v2181 = vadd.f32 %v2165, %v2173
    %v2182 = vadd.f32 %v2166, %v2174
    %v2183 = vadd.f32 %v2167, %v2175
    %v2184 = vadd.f32 %v2168, %v2176
    %v2185 = vtanh.pop %v2177
    %v2186 = vtanh.pop %v2178
    %v2187 = vtanh.pop %v2179
    %v2188 = vtanh.pop %v2180
    %v2189 = vtanh.pop %v2181
    %v2190 = vtanh.pop %v2182
    %v2191 = vtanh.pop %v2183
    %v2192 = vtanh.pop %v2184
    %v2193 = vmul.f32 %v2146, %v2185
    %v2194 = vmul.f32 %v2148, %v2186
    %v2195 = vmul.f32 %v2150, %v2187
    %v2196 = vmul.f32 %v2152, %v2188
    %v2197 = vmul.f32 %v2154, %v2189
    %v2198 = vmul.f32 %v2156, %v2190
    %v2199 = vmul.f32 %v2158, %v2191
    %v2200 = vmul.f32 %v2160, %v2192
    %2201 = vst [vmem:[#allocation3 + $0x2] sm:$0x1] %v2193
    %2202 = vst [vmem:[#allocation3 + $0xa] sm:$0x1] %v2194
    %2203 = vst [vmem:[#allocation3 + $0x12] sm:$0x1] %v2195
    %2204 = vst [vmem:[#allocation3 + $0x1a] sm:$0x1] %v2196
    %2205 = vst [vmem:[#allocation3 + $0x22] sm:$0x1] %v2197
    %2206 = vst [vmem:[#allocation3 + $0x2a] sm:$0x1] %v2198
    %2207 = vst [vmem:[#allocation3 + $0x32] sm:$0x1] %v2199
    %2208 = vst [vmem:[#allocation3 + $0x3a] sm:$0x1] %v2200
    %s2209 = scalar_lea.vmem [#allocation2], 3
    %v2210 = vld [vmem:[%s2209] ss:$8 sm:$0xf]
    %s2211 = scalar_lea.vmem [#allocation2], 35
    %v2212 = vld [vmem:[%s2211] ss:$8 sm:$0xf]
    %s2213 = scalar_lea.vmem [#allocation2], 67
    %v2214 = vld [vmem:[%s2213] ss:$8 sm:$0xf]
    %s2215 = scalar_lea.vmem [#allocation2], 99
    %v2216 = vld [vmem:[%s2215] ss:$8 sm:$0xf]
    %s2217 = scalar_lea.vmem [#allocation2], 131
    %v2218 = vld [vmem:[%s2217] ss:$8 sm:$0xf]
    %s2219 = scalar_lea.vmem [#allocation2], 163
    %v2220 = vld [vmem:[%s2219] ss:$8 sm:$0xf]
    %s2221 = scalar_lea.vmem [#allocation2], 195
    %v2222 = vld [vmem:[%s2221] ss:$8 sm:$0xf]
    %s2223 = scalar_lea.vmem [#allocation2], 227
    %v2224 = vld [vmem:[%s2223] ss:$8 sm:$0xf]
    %v2233 = vcombine.low %v2193, %v2194
    %v2234 = vcombine.low %v2195, %v2196
    %v2235 = vcombine.low %v2197, %v2198
    %v2236 = vcombine.low %v2199, %v2200
    %v2238 = vunpack.c.l.s4 1966171168
    %v2239 = vunpack.c.0.s8 %v2238
    %v2240 = vlaneseq
    %v2241 = vshrl.u32 %v2240, 7
    %v2242 = vsub.s32 %v2239, %v2241
    %v2243 = vrot.slane %v2233, %v2242
    %v2245 = vunpack.c.l.s4 1966171168
    %v2246 = vunpack.c.0.s8 %v2245
    %v2247 = vlaneseq
    %v2248 = vshrl.u32 %v2247, 7
    %v2249 = vsub.s32 %v2246, %v2248
    %v2250 = vrot.slane %v2234, %v2249
    %v2252 = vunpack.c.l.s4 1966171168
    %v2253 = vunpack.c.0.s8 %v2252
    %v2254 = vlaneseq
    %v2255 = vshrl.u32 %v2254, 7
    %v2256 = vsub.s32 %v2253, %v2255
    %v2257 = vrot.slane %v2235, %v2256
    %v2259 = vunpack.c.l.s4 1966171168
    %v2260 = vunpack.c.0.s8 %v2259
    %v2261 = vlaneseq
    %v2262 = vshrl.u32 %v2261, 7
    %v2263 = vsub.s32 %v2260, %v2262
    %v2264 = vrot.slane %v2236, %v2263
    %v2265 = vcombine.low %v2243, %v2250
    %v2266 = vcombine.low %v2257, %v2264
    %v2268 = vunpack.c.l.s4 1966171168
    %v2269 = vunpack.c.0.s8 %v2268
    %v2270 = vlaneseq
    %v2271 = vshrl.u32 %v2270, 7
    %v2272 = vsub.s32 %v2269, %v2271
    %v2273 = vrot.slane %v2265, %v2272
    %v2275 = vunpack.c.l.s4 1966171168
    %v2276 = vunpack.c.0.s8 %v2275
    %v2277 = vlaneseq
    %v2278 = vshrl.u32 %v2277, 7
    %v2279 = vsub.s32 %v2276, %v2278
    %v2280 = vrot.slane %v2266, %v2279
    %v2281 = vcombine.low %v2273, %v2280
    %2283 = vmatprep.subr.mxu0 %v525
    %2284 = vmatpush1.msra.mxu0 %v524
    %2285 = vmatprep.subr.mxu0 %v521
    %2286 = vmatpush1.msra.mxu0 %v520
    %2287 = vmatprep.subr.mxu0 %v517
    %2288 = vmatpush1.msra.mxu0 %v516
    %2289 = vmatprep.subr.mxu0 %v513
    %2290 = vmatpush1.msra.mxu0 %v512
    %2291 = vmatprep.subr.mxu0 %v509
    %2292 = vmatpush1.msra.mxu0 %v508
    %2293 = vmatprep.subr.mxu0 %v505
    %2294 = vmatpush1.msra.mxu0 %v504
    %2295 = vmatprep.subr.mxu0 %v501
    %2296 = vmatpush1.msra.mxu0 %v500
    %2297 = vmatprep.subr.mxu0 %v497
    %2298 = vmatpush1.msra.mxu0 %v496
    %2299 = vmatprep.subr.mxu0 %v493
    %2300 = vmatpush1.msra.mxu0 %v492
    %2301 = vmatprep.subr.mxu0 %v489
    %2302 = vmatpush1.msra.mxu0 %v488
    %2303 = vmatprep.subr.mxu0 %v485
    %2304 = vmatpush1.msra.mxu0 %v484
    %2305 = vmatprep.subr.mxu0 %v481
    %2306 = vmatpush1.msra.mxu0 %v480
    %2307 = vmatprep.subr.mxu0 %v477
    %2308 = vmatpush1.msra.mxu0 %v476
    %2309 = vmatprep.subr.mxu0 %v473
    %2310 = vmatpush1.msra.mxu0 %v472
    %2311 = vmatprep.subr.mxu0 %v469
    %2312 = vmatpush1.msra.mxu0 %v468
    %2313 = vmatprep.subr.mxu0 %v465
    %2314 = vmatpush1.msra.mxu0 %v464
    %2315 = vmatprep.subr.mxu0 0.0
    %2316 = vmatpush2.msra.mxu0 0.0
    %2317 = vmatprep.subr.mxu0 0.0
    %2318 = vmatpush2.msra.mxu0 0.0
    %2319 = vmatprep.subr.mxu0 0.0
    %2320 = vmatpush2.msra.mxu0 0.0
    %2321 = vmatprep.subr.mxu0 0.0
    %2322 = vmatpush2.msra.mxu0 0.0
    %2323 = vmatprep.subr.mxu0 0.0
    %2324 = vmatpush2.msra.mxu0 0.0
    %2325 = vmatprep.subr.mxu0 0.0
    %2326 = vmatpush2.msra.mxu0 0.0
    %2327 = vmatprep.subr.mxu0 0.0
    %2328 = vmatpush2.msra.mxu0 0.0
    %2329 = vmatprep.subr.mxu0 0.0
    %2330 = vmatpush2.msra.mxu0 0.0
    %2331 = vmatprep.subr.mxu0 0.0
    %2332 = vmatpush2.msra.mxu0 0.0
    %2333 = vmatprep.subr.mxu0 0.0
    %2334 = vmatpush2.msra.mxu0 0.0
    %2335 = vmatprep.subr.mxu0 0.0
    %2336 = vmatpush2.msra.mxu0 0.0
    %2337 = vmatprep.subr.mxu0 0.0
    %2338 = vmatpush2.msra.mxu0 0.0
    %2339 = vmatprep.subr.mxu0 0.0
    %2340 = vmatpush2.msra.mxu0 0.0
    %2341 = vmatprep.subr.mxu0 0.0
    %2342 = vmatpush2.msra.mxu0 0.0
    %2343 = vmatprep.subr.mxu0 0.0
    %2344 = vmatpush2.msra.mxu0 0.0
    %2345 = vmatprep.subr.mxu0 0.0
    %2346 = vmatpush2.msra.mxu0 0.0
    %2347 = vmatprep.mubr.f32.mxu0 0.0
    %2348 = vmatmul.mubr.f32.gmra.mxu0 %v2281
    %v2349 = vpop.f32.mrf.mxu0
    %v2350 = vadd.f32 0.0, %v2349
    %v2351 = vpop.f32.mrf.mxu0
    %v2352 = vadd.f32 0.0, %v2351
    %2353 = vdwg.mxu0
    %2354 = vmatprep.subr.mxu0 %v527
    %2355 = vmatpush1.msra.mxu0 %v526
    %2356 = vmatprep.subr.mxu0 %v523
    %2357 = vmatpush1.msra.mxu0 %v522
    %2358 = vmatprep.subr.mxu0 %v519
    %2359 = vmatpush1.msra.mxu0 %v518
    %2360 = vmatprep.subr.mxu0 %v515
    %2361 = vmatpush1.msra.mxu0 %v514
    %2362 = vmatprep.subr.mxu0 %v511
    %2363 = vmatpush1.msra.mxu0 %v510
    %2364 = vmatprep.subr.mxu0 %v507
    %2365 = vmatpush1.msra.mxu0 %v506
    %2366 = vmatprep.subr.mxu0 %v503
    %2367 = vmatpush1.msra.mxu0 %v502
    %2368 = vmatprep.subr.mxu0 %v499
    %2369 = vmatpush1.msra.mxu0 %v498
    %2370 = vmatprep.subr.mxu0 %v495
    %2371 = vmatpush1.msra.mxu0 %v494
    %2372 = vmatprep.subr.mxu0 %v491
    %2373 = vmatpush1.msra.mxu0 %v490
    %2374 = vmatprep.subr.mxu0 %v487
    %2375 = vmatpush1.msra.mxu0 %v486
    %2376 = vmatprep.subr.mxu0 %v483
    %2377 = vmatpush1.msra.mxu0 %v482
    %2378 = vmatprep.subr.mxu0 %v479
    %2379 = vmatpush1.msra.mxu0 %v478
    %2380 = vmatprep.subr.mxu0 %v475
    %2381 = vmatpush1.msra.mxu0 %v474
    %2382 = vmatprep.subr.mxu0 %v471
    %2383 = vmatpush1.msra.mxu0 %v470
    %2384 = vmatprep.subr.mxu0 %v467
    %2385 = vmatpush1.msra.mxu0 %v466
    %2386 = vmatprep.subr.mxu0 0.0
    %2387 = vmatpush2.msra.mxu0 0.0
    %2388 = vmatprep.subr.mxu0 0.0
    %2389 = vmatpush2.msra.mxu0 0.0
    %2390 = vmatprep.subr.mxu0 0.0
    %2391 = vmatpush2.msra.mxu0 0.0
    %2392 = vmatprep.subr.mxu0 0.0
    %2393 = vmatpush2.msra.mxu0 0.0
    %2394 = vmatprep.subr.mxu0 0.0
    %2395 = vmatpush2.msra.mxu0 0.0
    %2396 = vmatprep.subr.mxu0 0.0
    %2397 = vmatpush2.msra.mxu0 0.0
    %2398 = vmatprep.subr.mxu0 0.0
    %2399 = vmatpush2.msra.mxu0 0.0
    %2400 = vmatprep.subr.mxu0 0.0
    %2401 = vmatpush2.msra.mxu0 0.0
    %2402 = vmatprep.subr.mxu0 0.0
    %2403 = vmatpush2.msra.mxu0 0.0
    %2404 = vmatprep.subr.mxu0 0.0
    %2405 = vmatpush2.msra.mxu0 0.0
    %2406 = vmatprep.subr.mxu0 0.0
    %2407 = vmatpush2.msra.mxu0 0.0
    %2408 = vmatprep.subr.mxu0 0.0
    %2409 = vmatpush2.msra.mxu0 0.0
    %2410 = vmatprep.subr.mxu0 0.0
    %2411 = vmatpush2.msra.mxu0 0.0
    %2412 = vmatprep.subr.mxu0 0.0
    %2413 = vmatpush2.msra.mxu0 0.0
    %2414 = vmatprep.subr.mxu0 0.0
    %2415 = vmatpush2.msra.mxu0 0.0
    %2416 = vmatprep.subr.mxu0 0.0
    %2417 = vmatpush2.msra.mxu0 0.0
    %2418 = vmatprep.mubr.f32.mxu0 0.0
    %2419 = vmatmul.mubr.f32.gmra.mxu0 %v2281
    %v2420 = vpop.f32.mrf.mxu0
    %v2421 = vadd.f32 0.0, %v2420
    %v2422 = vpop.f32.mrf.mxu0
    %v2423 = vadd.f32 0.0, %v2422
    %2424 = vdwg.mxu0
    %v2429 = vcombine.low %v2350, %v2352
    %v2430 = vcombine.high %v2350, %v2352
    %v2431 = vcombine.low %v2421, %v2423
    %v2432 = vcombine.high %v2421, %v2423
    %v2434 = vunpack.c.l.s4 1966171168
    %v2435 = vunpack.c.0.s8 %v2434
    %v2436 = vlaneseq
    %v2437 = vshrl.u32 %v2436, 7
    %v2438 = vsub.s32 %v2435, %v2437
    %v2439 = vrot.slane %v2429, %v2438
    %v2441 = vunpack.c.l.s4 1966171168
    %v2442 = vunpack.c.0.s8 %v2441
    %v2443 = vlaneseq
    %v2444 = vshrl.u32 %v2443, 7
    %v2445 = vsub.s32 %v2442, %v2444
    %v2446 = vrot.slane %v2430, %v2445
    %v2448 = vunpack.c.l.s4 1966171168
    %v2449 = vunpack.c.0.s8 %v2448
    %v2450 = vlaneseq
    %v2451 = vshrl.u32 %v2450, 7
    %v2452 = vsub.s32 %v2449, %v2451
    %v2453 = vrot.slane %v2431, %v2452
    %v2455 = vunpack.c.l.s4 1966171168
    %v2456 = vunpack.c.0.s8 %v2455
    %v2457 = vlaneseq
    %v2458 = vshrl.u32 %v2457, 7
    %v2459 = vsub.s32 %v2456, %v2458
    %v2460 = vrot.slane %v2432, %v2459
    %v2461 = vcombine.low %v2439, %v2453
    %v2462 = vcombine.high %v2439, %v2453
    %v2463 = vcombine.low %v2446, %v2460
    %v2464 = vcombine.high %v2446, %v2460
    %v2466 = vunpack.c.l.s4 1966171168
    %v2467 = vunpack.c.0.s8 %v2466
    %v2468 = vlaneseq
    %v2469 = vshrl.u32 %v2468, 7
    %v2470 = vsub.s32 %v2467, %v2469
    %v2471 = vrot.slane %v2461, %v2470
    %v2473 = vunpack.c.l.s4 1966171168
    %v2474 = vunpack.c.0.s8 %v2473
    %v2475 = vlaneseq
    %v2476 = vshrl.u32 %v2475, 7
    %v2477 = vsub.s32 %v2474, %v2476
    %v2478 = vrot.slane %v2463, %v2477
    %v2480 = vunpack.c.l.s4 1966171168
    %v2481 = vunpack.c.0.s8 %v2480
    %v2482 = vlaneseq
    %v2483 = vshrl.u32 %v2482, 7
    %v2484 = vsub.s32 %v2481, %v2483
    %v2485 = vrot.slane %v2462, %v2484
    %v2487 = vunpack.c.l.s4 1966171168
    %v2488 = vunpack.c.0.s8 %v2487
    %v2489 = vlaneseq
    %v2490 = vshrl.u32 %v2489, 7
    %v2491 = vsub.s32 %v2488, %v2490
    %v2492 = vrot.slane %v2464, %v2491
    %v2493 = vcombine.high %v2471, %v2471
    %v2494 = vcombine.high %v2478, %v2478
    %v2495 = vcombine.high %v2485, %v2485
    %v2496 = vcombine.high %v2492, %v2492
    %v2505 = vadd.f32 %v2210, %v2471
    %v2506 = vadd.f32 %v2212, %v2485
    %v2507 = vadd.f32 %v2214, %v2493
    %v2508 = vadd.f32 %v2216, %v2495
    %v2509 = vadd.f32 %v2218, %v2478
    %v2510 = vadd.f32 %v2220, %v2492
    %v2511 = vadd.f32 %v2222, %v2494
    %v2512 = vadd.f32 %v2224, %v2496
    %v2513 = vxor.u32 %v2505, 2147483648
    %v2514 = vxor.u32 %v2506, 2147483648
    %v2515 = vxor.u32 %v2507, 2147483648
    %v2516 = vxor.u32 %v2508, 2147483648
    %v2517 = vxor.u32 %v2509, 2147483648
    %v2518 = vxor.u32 %v2510, 2147483648
    %v2519 = vxor.u32 %v2511, 2147483648
    %v2520 = vxor.u32 %v2512, 2147483648
    %v2521 = vmul.f32 %v2513, 1.442695
    %v2522 = vpow.pop %v2521
    %v2523 = vmul.f32 %v2514, 1.442695
    %v2524 = vpow.pop %v2523
    %v2525 = vmul.f32 %v2515, 1.442695
    %v2526 = vpow.pop %v2525
    %v2527 = vmul.f32 %v2516, 1.442695
    %v2528 = vpow.pop %v2527
    %v2529 = vmul.f32 %v2517, 1.442695
    %v2530 = vpow.pop %v2529
    %v2531 = vmul.f32 %v2518, 1.442695
    %v2532 = vpow.pop %v2531
    %v2533 = vmul.f32 %v2519, 1.442695
    %v2534 = vpow.pop %v2533
    %v2535 = vmul.f32 %v2520, 1.442695
    %v2536 = vpow.pop %v2535
    %v2537 = vadd.f32 %v2522, 1.0
    %v2538 = vadd.f32 %v2524, 1.0
    %v2539 = vadd.f32 %v2526, 1.0
    %v2540 = vadd.f32 %v2528, 1.0
    %v2541 = vadd.f32 %v2530, 1.0
    %v2542 = vadd.f32 %v2532, 1.0
    %v2543 = vadd.f32 %v2534, 1.0
    %v2544 = vadd.f32 %v2536, 1.0
    %v2545 = vrcp.pop %v2537
    %v2546 = vmul.f32 1.0, %v2545
    %v2547 = vrcp.pop %v2538
    %v2548 = vmul.f32 1.0, %v2547
    %v2549 = vrcp.pop %v2539
    %v2550 = vmul.f32 1.0, %v2549
    %v2551 = vrcp.pop %v2540
    %v2552 = vmul.f32 1.0, %v2551
    %v2553 = vrcp.pop %v2541
    %v2554 = vmul.f32 1.0, %v2553
    %v2555 = vrcp.pop %v2542
    %v2556 = vmul.f32 1.0, %v2555
    %v2557 = vrcp.pop %v2543
    %v2558 = vmul.f32 1.0, %v2557
    %v2559 = vrcp.pop %v2544
    %v2560 = vmul.f32 1.0, %v2559
    %v2569 = vrot.slane %v2505, 1
    %v2570 = vrot.slane %v2506, 1
    %v2571 = vrot.slane %v2507, 1
    %v2572 = vrot.slane %v2508, 1
    %v2573 = vrot.slane %v2509, 1
    %v2574 = vrot.slane %v2510, 1
    %v2575 = vrot.slane %v2511, 1
    %v2576 = vrot.slane %v2512, 1
    %v2585 = vxor.u32 %v2569, 2147483648
    %v2586 = vxor.u32 %v2570, 2147483648
    %v2587 = vxor.u32 %v2571, 2147483648
    %v2588 = vxor.u32 %v2572, 2147483648
    %v2589 = vxor.u32 %v2573, 2147483648
    %v2590 = vxor.u32 %v2574, 2147483648
    %v2591 = vxor.u32 %v2575, 2147483648
    %v2592 = vxor.u32 %v2576, 2147483648
    %v2593 = vmul.f32 %v2585, 1.442695
    %v2594 = vpow.pop %v2593
    %v2595 = vmul.f32 %v2586, 1.442695
    %v2596 = vpow.pop %v2595
    %v2597 = vmul.f32 %v2587, 1.442695
    %v2598 = vpow.pop %v2597
    %v2599 = vmul.f32 %v2588, 1.442695
    %v2600 = vpow.pop %v2599
    %v2601 = vmul.f32 %v2589, 1.442695
    %v2602 = vpow.pop %v2601
    %v2603 = vmul.f32 %v2590, 1.442695
    %v2604 = vpow.pop %v2603
    %v2605 = vmul.f32 %v2591, 1.442695
    %v2606 = vpow.pop %v2605
    %v2607 = vmul.f32 %v2592, 1.442695
    %v2608 = vpow.pop %v2607
    %v2609 = vadd.f32 %v2594, 1.0
    %v2610 = vadd.f32 %v2596, 1.0
    %v2611 = vadd.f32 %v2598, 1.0
    %v2612 = vadd.f32 %v2600, 1.0
    %v2613 = vadd.f32 %v2602, 1.0
    %v2614 = vadd.f32 %v2604, 1.0
    %v2615 = vadd.f32 %v2606, 1.0
    %v2616 = vadd.f32 %v2608, 1.0
    %v2617 = vrcp.pop %v2609
    %v2618 = vmul.f32 1.0, %v2617
    %v2619 = vrcp.pop %v2610
    %v2620 = vmul.f32 1.0, %v2619
    %v2621 = vrcp.pop %v2611
    %v2622 = vmul.f32 1.0, %v2621
    %v2623 = vrcp.pop %v2612
    %v2624 = vmul.f32 1.0, %v2623
    %v2625 = vrcp.pop %v2613
    %v2626 = vmul.f32 1.0, %v2625
    %v2627 = vrcp.pop %v2614
    %v2628 = vmul.f32 1.0, %v2627
    %v2629 = vrcp.pop %v2615
    %v2630 = vmul.f32 1.0, %v2629
    %v2631 = vrcp.pop %v2616
    %v2632 = vmul.f32 1.0, %v2631
    %v2633 = vrot.slane %v2505, 2
    %v2634 = vrot.slane %v2506, 2
    %v2635 = vrot.slane %v2507, 2
    %v2636 = vrot.slane %v2508, 2
    %v2637 = vrot.slane %v2509, 2
    %v2638 = vrot.slane %v2510, 2
    %v2639 = vrot.slane %v2511, 2
    %v2640 = vrot.slane %v2512, 2
    %v2649 = vtanh.pop %v2633
    %v2650 = vtanh.pop %v2634
    %v2651 = vtanh.pop %v2635
    %v2652 = vtanh.pop %v2636
    %v2653 = vtanh.pop %v2637
    %v2654 = vtanh.pop %v2638
    %v2655 = vtanh.pop %v2639
    %v2656 = vtanh.pop %v2640
    %v2657 = vrot.slane %v2505, 3
    %v2658 = vrot.slane %v2506, 3
    %v2659 = vrot.slane %v2507, 3
    %v2660 = vrot.slane %v2508, 3
    %v2661 = vrot.slane %v2509, 3
    %v2662 = vrot.slane %v2510, 3
    %v2663 = vrot.slane %v2511, 3
    %v2664 = vrot.slane %v2512, 3
    %v2673 = vxor.u32 %v2657, 2147483648
    %v2674 = vxor.u32 %v2658, 2147483648
    %v2675 = vxor.u32 %v2659, 2147483648
    %v2676 = vxor.u32 %v2660, 2147483648
    %v2677 = vxor.u32 %v2661, 2147483648
    %v2678 = vxor.u32 %v2662, 2147483648
    %v2679 = vxor.u32 %v2663, 2147483648
    %v2680 = vxor.u32 %v2664, 2147483648
    %v2681 = vmul.f32 %v2673, 1.442695
    %v2682 = vpow.pop %v2681
    %v2683 = vmul.f32 %v2674, 1.442695
    %v2684 = vpow.pop %v2683
    %v2685 = vmul.f32 %v2675, 1.442695
    %v2686 = vpow.pop %v2685
    %v2687 = vmul.f32 %v2676, 1.442695
    %v2688 = vpow.pop %v2687
    %v2689 = vmul.f32 %v2677, 1.442695
    %v2690 = vpow.pop %v2689
    %v2691 = vmul.f32 %v2678, 1.442695
    %v2692 = vpow.pop %v2691
    %v2693 = vmul.f32 %v2679, 1.442695
    %v2694 = vpow.pop %v2693
    %v2695 = vmul.f32 %v2680, 1.442695
    %v2696 = vpow.pop %v2695
    %v2697 = vadd.f32 %v2682, 1.0
    %v2698 = vadd.f32 %v2684, 1.0
    %v2699 = vadd.f32 %v2686, 1.0
    %v2700 = vadd.f32 %v2688, 1.0
    %v2701 = vadd.f32 %v2690, 1.0
    %v2702 = vadd.f32 %v2692, 1.0
    %v2703 = vadd.f32 %v2694, 1.0
    %v2704 = vadd.f32 %v2696, 1.0
    %v2705 = vrcp.pop %v2697
    %v2706 = vmul.f32 1.0, %v2705
    %v2707 = vrcp.pop %v2698
    %v2708 = vmul.f32 1.0, %v2707
    %v2709 = vrcp.pop %v2699
    %v2710 = vmul.f32 1.0, %v2709
    %v2711 = vrcp.pop %v2700
    %v2712 = vmul.f32 1.0, %v2711
    %v2713 = vrcp.pop %v2701
    %v2714 = vmul.f32 1.0, %v2713
    %v2715 = vrcp.pop %v2702
    %v2716 = vmul.f32 1.0, %v2715
    %v2717 = vrcp.pop %v2703
    %v2718 = vmul.f32 1.0, %v2717
    %v2719 = vrcp.pop %v2704
    %v2720 = vmul.f32 1.0, %v2719
    %v2721 = vmul.f32 %v2618, %v2177
    %v2722 = vmul.f32 %v2620, %v2178
    %v2723 = vmul.f32 %v2622, %v2179
    %v2724 = vmul.f32 %v2624, %v2180
    %v2725 = vmul.f32 %v2626, %v2181
    %v2726 = vmul.f32 %v2628, %v2182
    %v2727 = vmul.f32 %v2630, %v2183
    %v2728 = vmul.f32 %v2632, %v2184
    %v2729 = vmul.f32 %v2546, %v2649
    %v2730 = vmul.f32 %v2548, %v2650
    %v2731 = vmul.f32 %v2550, %v2651
    %v2732 = vmul.f32 %v2552, %v2652
    %v2733 = vmul.f32 %v2554, %v2653
    %v2734 = vmul.f32 %v2556, %v2654
    %v2735 = vmul.f32 %v2558, %v2655
    %v2736 = vmul.f32 %v2560, %v2656
    %v2737 = vadd.f32 %v2721, %v2729
    %v2738 = vadd.f32 %v2722, %v2730
    %v2739 = vadd.f32 %v2723, %v2731
    %v2740 = vadd.f32 %v2724, %v2732
    %v2741 = vadd.f32 %v2725, %v2733
    %v2742 = vadd.f32 %v2726, %v2734
    %v2743 = vadd.f32 %v2727, %v2735
    %v2744 = vadd.f32 %v2728, %v2736
    %v2745 = vtanh.pop %v2737
    %v2746 = vtanh.pop %v2738
    %v2747 = vtanh.pop %v2739
    %v2748 = vtanh.pop %v2740
    %v2749 = vtanh.pop %v2741
    %v2750 = vtanh.pop %v2742
    %v2751 = vtanh.pop %v2743
    %v2752 = vtanh.pop %v2744
    %v2753 = vmul.f32 %v2706, %v2745
    %v2754 = vmul.f32 %v2708, %v2746
    %v2755 = vmul.f32 %v2710, %v2747
    %v2756 = vmul.f32 %v2712, %v2748
    %v2757 = vmul.f32 %v2714, %v2749
    %v2758 = vmul.f32 %v2716, %v2750
    %v2759 = vmul.f32 %v2718, %v2751
    %v2760 = vmul.f32 %v2720, %v2752
    %2761 = vst [vmem:[#allocation3 + $0x3] sm:$0x1] %v2753
    %2762 = vst [vmem:[#allocation3 + $0xb] sm:$0x1] %v2754
    %2763 = vst [vmem:[#allocation3 + $0x13] sm:$0x1] %v2755
    %2764 = vst [vmem:[#allocation3 + $0x1b] sm:$0x1] %v2756
    %2765 = vst [vmem:[#allocation3 + $0x23] sm:$0x1] %v2757
    %2766 = vst [vmem:[#allocation3 + $0x2b] sm:$0x1] %v2758
    %2767 = vst [vmem:[#allocation3 + $0x33] sm:$0x1] %v2759
    %2768 = vst [vmem:[#allocation3 + $0x3b] sm:$0x1] %v2760
    %s2769 = scalar_lea.vmem [#allocation2], 4
    %v2770 = vld [vmem:[%s2769] ss:$8 sm:$0xf]
    %s2771 = scalar_lea.vmem [#allocation2], 36
    %v2772 = vld [vmem:[%s2771] ss:$8 sm:$0xf]
    %s2773 = scalar_lea.vmem [#allocation2], 68
    %v2774 = vld [vmem:[%s2773] ss:$8 sm:$0xf]
    %s2775 = scalar_lea.vmem [#allocation2], 100
    %v2776 = vld [vmem:[%s2775] ss:$8 sm:$0xf]
    %s2777 = scalar_lea.vmem [#allocation2], 132
    %v2778 = vld [vmem:[%s2777] ss:$8 sm:$0xf]
    %s2779 = scalar_lea.vmem [#allocation2], 164
    %v2780 = vld [vmem:[%s2779] ss:$8 sm:$0xf]
    %s2781 = scalar_lea.vmem [#allocation2], 196
    %v2782 = vld [vmem:[%s2781] ss:$8 sm:$0xf]
    %s2783 = scalar_lea.vmem [#allocation2], 228
    %v2784 = vld [vmem:[%s2783] ss:$8 sm:$0xf]
    %v2793 = vcombine.low %v2753, %v2754
    %v2794 = vcombine.low %v2755, %v2756
    %v2795 = vcombine.low %v2757, %v2758
    %v2796 = vcombine.low %v2759, %v2760
    %v2798 = vunpack.c.l.s4 1966171168
    %v2799 = vunpack.c.0.s8 %v2798
    %v2800 = vlaneseq
    %v2801 = vshrl.u32 %v2800, 7
    %v2802 = vsub.s32 %v2799, %v2801
    %v2803 = vrot.slane %v2793, %v2802
    %v2805 = vunpack.c.l.s4 1966171168
    %v2806 = vunpack.c.0.s8 %v2805
    %v2807 = vlaneseq
    %v2808 = vshrl.u32 %v2807, 7
    %v2809 = vsub.s32 %v2806, %v2808
    %v2810 = vrot.slane %v2794, %v2809
    %v2812 = vunpack.c.l.s4 1966171168
    %v2813 = vunpack.c.0.s8 %v2812
    %v2814 = vlaneseq
    %v2815 = vshrl.u32 %v2814, 7
    %v2816 = vsub.s32 %v2813, %v2815
    %v2817 = vrot.slane %v2795, %v2816
    %v2819 = vunpack.c.l.s4 1966171168
    %v2820 = vunpack.c.0.s8 %v2819
    %v2821 = vlaneseq
    %v2822 = vshrl.u32 %v2821, 7
    %v2823 = vsub.s32 %v2820, %v2822
    %v2824 = vrot.slane %v2796, %v2823
    %v2825 = vcombine.low %v2803, %v2810
    %v2826 = vcombine.low %v2817, %v2824
    %v2828 = vunpack.c.l.s4 1966171168
    %v2829 = vunpack.c.0.s8 %v2828
    %v2830 = vlaneseq
    %v2831 = vshrl.u32 %v2830, 7
    %v2832 = vsub.s32 %v2829, %v2831
    %v2833 = vrot.slane %v2825, %v2832
    %v2835 = vunpack.c.l.s4 1966171168
    %v2836 = vunpack.c.0.s8 %v2835
    %v2837 = vlaneseq
    %v2838 = vshrl.u32 %v2837, 7
    %v2839 = vsub.s32 %v2836, %v2838
    %v2840 = vrot.slane %v2826, %v2839
    %v2841 = vcombine.low %v2833, %v2840
    %2843 = vmatprep.subr.mxu0 %v525
    %2844 = vmatpush1.msra.mxu0 %v524
    %2845 = vmatprep.subr.mxu0 %v521
    %2846 = vmatpush1.msra.mxu0 %v520
    %2847 = vmatprep.subr.mxu0 %v517
    %2848 = vmatpush1.msra.mxu0 %v516
    %2849 = vmatprep.subr.mxu0 %v513
    %2850 = vmatpush1.msra.mxu0 %v512
    %2851 = vmatprep.subr.mxu0 %v509
    %2852 = vmatpush1.msra.mxu0 %v508
    %2853 = vmatprep.subr.mxu0 %v505
    %2854 = vmatpush1.msra.mxu0 %v504
    %2855 = vmatprep.subr.mxu0 %v501
    %2856 = vmatpush1.msra.mxu0 %v500
    %2857 = vmatprep.subr.mxu0 %v497
    %2858 = vmatpush1.msra.mxu0 %v496
    %2859 = vmatprep.subr.mxu0 %v493
    %2860 = vmatpush1.msra.mxu0 %v492
    %2861 = vmatprep.subr.mxu0 %v489
    %2862 = vmatpush1.msra.mxu0 %v488
    %2863 = vmatprep.subr.mxu0 %v485
    %2864 = vmatpush1.msra.mxu0 %v484
    %2865 = vmatprep.subr.mxu0 %v481
    %2866 = vmatpush1.msra.mxu0 %v480
    %2867 = vmatprep.subr.mxu0 %v477
    %2868 = vmatpush1.msra.mxu0 %v476
    %2869 = vmatprep.subr.mxu0 %v473
    %2870 = vmatpush1.msra.mxu0 %v472
    %2871 = vmatprep.subr.mxu0 %v469
    %2872 = vmatpush1.msra.mxu0 %v468
    %2873 = vmatprep.subr.mxu0 %v465
    %2874 = vmatpush1.msra.mxu0 %v464
    %2875 = vmatprep.subr.mxu0 0.0
    %2876 = vmatpush2.msra.mxu0 0.0
    %2877 = vmatprep.subr.mxu0 0.0
    %2878 = vmatpush2.msra.mxu0 0.0
    %2879 = vmatprep.subr.mxu0 0.0
    %2880 = vmatpush2.msra.mxu0 0.0
    %2881 = vmatprep.subr.mxu0 0.0
    %2882 = vmatpush2.msra.mxu0 0.0
    %2883 = vmatprep.subr.mxu0 0.0
    %2884 = vmatpush2.msra.mxu0 0.0
    %2885 = vmatprep.subr.mxu0 0.0
    %2886 = vmatpush2.msra.mxu0 0.0
    %2887 = vmatprep.subr.mxu0 0.0
    %2888 = vmatpush2.msra.mxu0 0.0
    %2889 = vmatprep.subr.mxu0 0.0
    %2890 = vmatpush2.msra.mxu0 0.0
    %2891 = vmatprep.subr.mxu0 0.0
    %2892 = vmatpush2.msra.mxu0 0.0
    %2893 = vmatprep.subr.mxu0 0.0
    %2894 = vmatpush2.msra.mxu0 0.0
    %2895 = vmatprep.subr.mxu0 0.0
    %2896 = vmatpush2.msra.mxu0 0.0
    %2897 = vmatprep.subr.mxu0 0.0
    %2898 = vmatpush2.msra.mxu0 0.0
    %2899 = vmatprep.subr.mxu0 0.0
    %2900 = vmatpush2.msra.mxu0 0.0
    %2901 = vmatprep.subr.mxu0 0.0
    %2902 = vmatpush2.msra.mxu0 0.0
    %2903 = vmatprep.subr.mxu0 0.0
    %2904 = vmatpush2.msra.mxu0 0.0
    %2905 = vmatprep.subr.mxu0 0.0
    %2906 = vmatpush2.msra.mxu0 0.0
    %2907 = vmatprep.mubr.f32.mxu0 0.0
    %2908 = vmatmul.mubr.f32.gmra.mxu0 %v2841
    %v2909 = vpop.f32.mrf.mxu0
    %v2910 = vadd.f32 0.0, %v2909
    %v2911 = vpop.f32.mrf.mxu0
    %v2912 = vadd.f32 0.0, %v2911
    %2913 = vdwg.mxu0
    %2914 = vmatprep.subr.mxu0 %v527
    %2915 = vmatpush1.msra.mxu0 %v526
    %2916 = vmatprep.subr.mxu0 %v523
    %2917 = vmatpush1.msra.mxu0 %v522
    %2918 = vmatprep.subr.mxu0 %v519
    %2919 = vmatpush1.msra.mxu0 %v518
    %2920 = vmatprep.subr.mxu0 %v515
    %2921 = vmatpush1.msra.mxu0 %v514
    %2922 = vmatprep.subr.mxu0 %v511
    %2923 = vmatpush1.msra.mxu0 %v510
    %2924 = vmatprep.subr.mxu0 %v507
    %2925 = vmatpush1.msra.mxu0 %v506
    %2926 = vmatprep.subr.mxu0 %v503
    %2927 = vmatpush1.msra.mxu0 %v502
    %2928 = vmatprep.subr.mxu0 %v499
    %2929 = vmatpush1.msra.mxu0 %v498
    %2930 = vmatprep.subr.mxu0 %v495
    %2931 = vmatpush1.msra.mxu0 %v494
    %2932 = vmatprep.subr.mxu0 %v491
    %2933 = vmatpush1.msra.mxu0 %v490
    %2934 = vmatprep.subr.mxu0 %v487
    %2935 = vmatpush1.msra.mxu0 %v486
    %2936 = vmatprep.subr.mxu0 %v483
    %2937 = vmatpush1.msra.mxu0 %v482
    %2938 = vmatprep.subr.mxu0 %v479
    %2939 = vmatpush1.msra.mxu0 %v478
    %2940 = vmatprep.subr.mxu0 %v475
    %2941 = vmatpush1.msra.mxu0 %v474
    %2942 = vmatprep.subr.mxu0 %v471
    %2943 = vmatpush1.msra.mxu0 %v470
    %2944 = vmatprep.subr.mxu0 %v467
    %2945 = vmatpush1.msra.mxu0 %v466
    %2946 = vmatprep.subr.mxu0 0.0
    %2947 = vmatpush2.msra.mxu0 0.0
    %2948 = vmatprep.subr.mxu0 0.0
    %2949 = vmatpush2.msra.mxu0 0.0
    %2950 = vmatprep.subr.mxu0 0.0
    %2951 = vmatpush2.msra.mxu0 0.0
    %2952 = vmatprep.subr.mxu0 0.0
    %2953 = vmatpush2.msra.mxu0 0.0
    %2954 = vmatprep.subr.mxu0 0.0
    %2955 = vmatpush2.msra.mxu0 0.0
    %2956 = vmatprep.subr.mxu0 0.0
    %2957 = vmatpush2.msra.mxu0 0.0
    %2958 = vmatprep.subr.mxu0 0.0
    %2959 = vmatpush2.msra.mxu0 0.0
    %2960 = vmatprep.subr.mxu0 0.0
    %2961 = vmatpush2.msra.mxu0 0.0
    %2962 = vmatprep.subr.mxu0 0.0
    %2963 = vmatpush2.msra.mxu0 0.0
    %2964 = vmatprep.subr.mxu0 0.0
    %2965 = vmatpush2.msra.mxu0 0.0
    %2966 = vmatprep.subr.mxu0 0.0
    %2967 = vmatpush2.msra.mxu0 0.0
    %2968 = vmatprep.subr.mxu0 0.0
    %2969 = vmatpush2.msra.mxu0 0.0
    %2970 = vmatprep.subr.mxu0 0.0
    %2971 = vmatpush2.msra.mxu0 0.0
    %2972 = vmatprep.subr.mxu0 0.0
    %2973 = vmatpush2.msra.mxu0 0.0
    %2974 = vmatprep.subr.mxu0 0.0
    %2975 = vmatpush2.msra.mxu0 0.0
    %2976 = vmatprep.subr.mxu0 0.0
    %2977 = vmatpush2.msra.mxu0 0.0
    %2978 = vmatprep.mubr.f32.mxu0 0.0
    %2979 = vmatmul.mubr.f32.gmra.mxu0 %v2841
    %v2980 = vpop.f32.mrf.mxu0
    %v2981 = vadd.f32 0.0, %v2980
    %v2982 = vpop.f32.mrf.mxu0
    %v2983 = vadd.f32 0.0, %v2982
    %2984 = vdwg.mxu0
    %v2989 = vcombine.low %v2910, %v2912
    %v2990 = vcombine.high %v2910, %v2912
    %v2991 = vcombine.low %v2981, %v2983
    %v2992 = vcombine.high %v2981, %v2983
    %v2994 = vunpack.c.l.s4 1966171168
    %v2995 = vunpack.c.0.s8 %v2994
    %v2996 = vlaneseq
    %v2997 = vshrl.u32 %v2996, 7
    %v2998 = vsub.s32 %v2995, %v2997
    %v2999 = vrot.slane %v2989, %v2998
    %v3001 = vunpack.c.l.s4 1966171168
    %v3002 = vunpack.c.0.s8 %v3001
    %v3003 = vlaneseq
    %v3004 = vshrl.u32 %v3003, 7
    %v3005 = vsub.s32 %v3002, %v3004
    %v3006 = vrot.slane %v2990, %v3005
    %v3008 = vunpack.c.l.s4 1966171168
    %v3009 = vunpack.c.0.s8 %v3008
    %v3010 = vlaneseq
    %v3011 = vshrl.u32 %v3010, 7
    %v3012 = vsub.s32 %v3009, %v3011
    %v3013 = vrot.slane %v2991, %v3012
    %v3015 = vunpack.c.l.s4 1966171168
    %v3016 = vunpack.c.0.s8 %v3015
    %v3017 = vlaneseq
    %v3018 = vshrl.u32 %v3017, 7
    %v3019 = vsub.s32 %v3016, %v3018
    %v3020 = vrot.slane %v2992, %v3019
    %v3021 = vcombine.low %v2999, %v3013
    %v3022 = vcombine.high %v2999, %v3013
    %v3023 = vcombine.low %v3006, %v3020
    %v3024 = vcombine.high %v3006, %v3020
    %v3026 = vunpack.c.l.s4 1966171168
    %v3027 = vunpack.c.0.s8 %v3026
    %v3028 = vlaneseq
    %v3029 = vshrl.u32 %v3028, 7
    %v3030 = vsub.s32 %v3027, %v3029
    %v3031 = vrot.slane %v3021, %v3030
    %v3033 = vunpack.c.l.s4 1966171168
    %v3034 = vunpack.c.0.s8 %v3033
    %v3035 = vlaneseq
    %v3036 = vshrl.u32 %v3035, 7
    %v3037 = vsub.s32 %v3034, %v3036
    %v3038 = vrot.slane %v3023, %v3037
    %v3040 = vunpack.c.l.s4 1966171168
    %v3041 = vunpack.c.0.s8 %v3040
    %v3042 = vlaneseq
    %v3043 = vshrl.u32 %v3042, 7
    %v3044 = vsub.s32 %v3041, %v3043
    %v3045 = vrot.slane %v3022, %v3044
    %v3047 = vunpack.c.l.s4 1966171168
    %v3048 = vunpack.c.0.s8 %v3047
    %v3049 = vlaneseq
    %v3050 = vshrl.u32 %v3049, 7
    %v3051 = vsub.s32 %v3048, %v3050
    %v3052 = vrot.slane %v3024, %v3051
    %v3053 = vcombine.high %v3031, %v3031
    %v3054 = vcombine.high %v3038, %v3038
    %v3055 = vcombine.high %v3045, %v3045
    %v3056 = vcombine.high %v3052, %v3052
    %v3065 = vadd.f32 %v2770, %v3031
    %v3066 = vadd.f32 %v2772, %v3045
    %v3067 = vadd.f32 %v2774, %v3053
    %v3068 = vadd.f32 %v2776, %v3055
    %v3069 = vadd.f32 %v2778, %v3038
    %v3070 = vadd.f32 %v2780, %v3052
    %v3071 = vadd.f32 %v2782, %v3054
    %v3072 = vadd.f32 %v2784, %v3056
    %v3073 = vxor.u32 %v3065, 2147483648
    %v3074 = vxor.u32 %v3066, 2147483648
    %v3075 = vxor.u32 %v3067, 2147483648
    %v3076 = vxor.u32 %v3068, 2147483648
    %v3077 = vxor.u32 %v3069, 2147483648
    %v3078 = vxor.u32 %v3070, 2147483648
    %v3079 = vxor.u32 %v3071, 2147483648
    %v3080 = vxor.u32 %v3072, 2147483648
    %v3081 = vmul.f32 %v3073, 1.442695
    %v3082 = vpow.pop %v3081
    %v3083 = vmul.f32 %v3074, 1.442695
    %v3084 = vpow.pop %v3083
    %v3085 = vmul.f32 %v3075, 1.442695
    %v3086 = vpow.pop %v3085
    %v3087 = vmul.f32 %v3076, 1.442695
    %v3088 = vpow.pop %v3087
    %v3089 = vmul.f32 %v3077, 1.442695
    %v3090 = vpow.pop %v3089
    %v3091 = vmul.f32 %v3078, 1.442695
    %v3092 = vpow.pop %v3091
    %v3093 = vmul.f32 %v3079, 1.442695
    %v3094 = vpow.pop %v3093
    %v3095 = vmul.f32 %v3080, 1.442695
    %v3096 = vpow.pop %v3095
    %v3097 = vadd.f32 %v3082, 1.0
    %v3098 = vadd.f32 %v3084, 1.0
    %v3099 = vadd.f32 %v3086, 1.0
    %v3100 = vadd.f32 %v3088, 1.0
    %v3101 = vadd.f32 %v3090, 1.0
    %v3102 = vadd.f32 %v3092, 1.0
    %v3103 = vadd.f32 %v3094, 1.0
    %v3104 = vadd.f32 %v3096, 1.0
    %v3105 = vrcp.pop %v3097
    %v3106 = vmul.f32 1.0, %v3105
    %v3107 = vrcp.pop %v3098
    %v3108 = vmul.f32 1.0, %v3107
    %v3109 = vrcp.pop %v3099
    %v3110 = vmul.f32 1.0, %v3109
    %v3111 = vrcp.pop %v3100
    %v3112 = vmul.f32 1.0, %v3111
    %v3113 = vrcp.pop %v3101
    %v3114 = vmul.f32 1.0, %v3113
    %v3115 = vrcp.pop %v3102
    %v3116 = vmul.f32 1.0, %v3115
    %v3117 = vrcp.pop %v3103
    %v3118 = vmul.f32 1.0, %v3117
    %v3119 = vrcp.pop %v3104
    %v3120 = vmul.f32 1.0, %v3119
    %v3129 = vrot.slane %v3065, 1
    %v3130 = vrot.slane %v3066, 1
    %v3131 = vrot.slane %v3067, 1
    %v3132 = vrot.slane %v3068, 1
    %v3133 = vrot.slane %v3069, 1
    %v3134 = vrot.slane %v3070, 1
    %v3135 = vrot.slane %v3071, 1
    %v3136 = vrot.slane %v3072, 1
    %v3145 = vxor.u32 %v3129, 2147483648
    %v3146 = vxor.u32 %v3130, 2147483648
    %v3147 = vxor.u32 %v3131, 2147483648
    %v3148 = vxor.u32 %v3132, 2147483648
    %v3149 = vxor.u32 %v3133, 2147483648
    %v3150 = vxor.u32 %v3134, 2147483648
    %v3151 = vxor.u32 %v3135, 2147483648
    %v3152 = vxor.u32 %v3136, 2147483648
    %v3153 = vmul.f32 %v3145, 1.442695
    %v3154 = vpow.pop %v3153
    %v3155 = vmul.f32 %v3146, 1.442695
    %v3156 = vpow.pop %v3155
    %v3157 = vmul.f32 %v3147, 1.442695
    %v3158 = vpow.pop %v3157
    %v3159 = vmul.f32 %v3148, 1.442695
    %v3160 = vpow.pop %v3159
    %v3161 = vmul.f32 %v3149, 1.442695
    %v3162 = vpow.pop %v3161
    %v3163 = vmul.f32 %v3150, 1.442695
    %v3164 = vpow.pop %v3163
    %v3165 = vmul.f32 %v3151, 1.442695
    %v3166 = vpow.pop %v3165
    %v3167 = vmul.f32 %v3152, 1.442695
    %v3168 = vpow.pop %v3167
    %v3169 = vadd.f32 %v3154, 1.0
    %v3170 = vadd.f32 %v3156, 1.0
    %v3171 = vadd.f32 %v3158, 1.0
    %v3172 = vadd.f32 %v3160, 1.0
    %v3173 = vadd.f32 %v3162, 1.0
    %v3174 = vadd.f32 %v3164, 1.0
    %v3175 = vadd.f32 %v3166, 1.0
    %v3176 = vadd.f32 %v3168, 1.0
    %v3177 = vrcp.pop %v3169
    %v3178 = vmul.f32 1.0, %v3177
    %v3179 = vrcp.pop %v3170
    %v3180 = vmul.f32 1.0, %v3179
    %v3181 = vrcp.pop %v3171
    %v3182 = vmul.f32 1.0, %v3181
    %v3183 = vrcp.pop %v3172
    %v3184 = vmul.f32 1.0, %v3183
    %v3185 = vrcp.pop %v3173
    %v3186 = vmul.f32 1.0, %v3185
    %v3187 = vrcp.pop %v3174
    %v3188 = vmul.f32 1.0, %v3187
    %v3189 = vrcp.pop %v3175
    %v3190 = vmul.f32 1.0, %v3189
    %v3191 = vrcp.pop %v3176
    %v3192 = vmul.f32 1.0, %v3191
    %v3193 = vrot.slane %v3065, 2
    %v3194 = vrot.slane %v3066, 2
    %v3195 = vrot.slane %v3067, 2
    %v3196 = vrot.slane %v3068, 2
    %v3197 = vrot.slane %v3069, 2
    %v3198 = vrot.slane %v3070, 2
    %v3199 = vrot.slane %v3071, 2
    %v3200 = vrot.slane %v3072, 2
    %v3209 = vtanh.pop %v3193
    %v3210 = vtanh.pop %v3194
    %v3211 = vtanh.pop %v3195
    %v3212 = vtanh.pop %v3196
    %v3213 = vtanh.pop %v3197
    %v3214 = vtanh.pop %v3198
    %v3215 = vtanh.pop %v3199
    %v3216 = vtanh.pop %v3200
    %v3217 = vrot.slane %v3065, 3
    %v3218 = vrot.slane %v3066, 3
    %v3219 = vrot.slane %v3067, 3
    %v3220 = vrot.slane %v3068, 3
    %v3221 = vrot.slane %v3069, 3
    %v3222 = vrot.slane %v3070, 3
    %v3223 = vrot.slane %v3071, 3
    %v3224 = vrot.slane %v3072, 3
    %v3233 = vxor.u32 %v3217, 2147483648
    %v3234 = vxor.u32 %v3218, 2147483648
    %v3235 = vxor.u32 %v3219, 2147483648
    %v3236 = vxor.u32 %v3220, 2147483648
    %v3237 = vxor.u32 %v3221, 2147483648
    %v3238 = vxor.u32 %v3222, 2147483648
    %v3239 = vxor.u32 %v3223, 2147483648
    %v3240 = vxor.u32 %v3224, 2147483648
    %v3241 = vmul.f32 %v3233, 1.442695
    %v3242 = vpow.pop %v3241
    %v3243 = vmul.f32 %v3234, 1.442695
    %v3244 = vpow.pop %v3243
    %v3245 = vmul.f32 %v3235, 1.442695
    %v3246 = vpow.pop %v3245
    %v3247 = vmul.f32 %v3236, 1.442695
    %v3248 = vpow.pop %v3247
    %v3249 = vmul.f32 %v3237, 1.442695
    %v3250 = vpow.pop %v3249
    %v3251 = vmul.f32 %v3238, 1.442695
    %v3252 = vpow.pop %v3251
    %v3253 = vmul.f32 %v3239, 1.442695
    %v3254 = vpow.pop %v3253
    %v3255 = vmul.f32 %v3240, 1.442695
    %v3256 = vpow.pop %v3255
    %v3257 = vadd.f32 %v3242, 1.0
    %v3258 = vadd.f32 %v3244, 1.0
    %v3259 = vadd.f32 %v3246, 1.0
    %v3260 = vadd.f32 %v3248, 1.0
    %v3261 = vadd.f32 %v3250, 1.0
    %v3262 = vadd.f32 %v3252, 1.0
    %v3263 = vadd.f32 %v3254, 1.0
    %v3264 = vadd.f32 %v3256, 1.0
    %v3265 = vrcp.pop %v3257
    %v3266 = vmul.f32 1.0, %v3265
    %v3267 = vrcp.pop %v3258
    %v3268 = vmul.f32 1.0, %v3267
    %v3269 = vrcp.pop %v3259
    %v3270 = vmul.f32 1.0, %v3269
    %v3271 = vrcp.pop %v3260
    %v3272 = vmul.f32 1.0, %v3271
    %v3273 = vrcp.pop %v3261
    %v3274 = vmul.f32 1.0, %v3273
    %v3275 = vrcp.pop %v3262
    %v3276 = vmul.f32 1.0, %v3275
    %v3277 = vrcp.pop %v3263
    %v3278 = vmul.f32 1.0, %v3277
    %v3279 = vrcp.pop %v3264
    %v3280 = vmul.f32 1.0, %v3279
    %v3281 = vmul.f32 %v3178, %v2737
    %v3282 = vmul.f32 %v3180, %v2738
    %v3283 = vmul.f32 %v3182, %v2739
    %v3284 = vmul.f32 %v3184, %v2740
    %v3285 = vmul.f32 %v3186, %v2741
    %v3286 = vmul.f32 %v3188, %v2742
    %v3287 = vmul.f32 %v3190, %v2743
    %v3288 = vmul.f32 %v3192, %v2744
    %v3289 = vmul.f32 %v3106, %v3209
    %v3290 = vmul.f32 %v3108, %v3210
    %v3291 = vmul.f32 %v3110, %v3211
    %v3292 = vmul.f32 %v3112, %v3212
    %v3293 = vmul.f32 %v3114, %v3213
    %v3294 = vmul.f32 %v3116, %v3214
    %v3295 = vmul.f32 %v3118, %v3215
    %v3296 = vmul.f32 %v3120, %v3216
    %v3297 = vadd.f32 %v3281, %v3289
    %v3298 = vadd.f32 %v3282, %v3290
    %v3299 = vadd.f32 %v3283, %v3291
    %v3300 = vadd.f32 %v3284, %v3292
    %v3301 = vadd.f32 %v3285, %v3293
    %v3302 = vadd.f32 %v3286, %v3294
    %v3303 = vadd.f32 %v3287, %v3295
    %v3304 = vadd.f32 %v3288, %v3296
    %v3305 = vtanh.pop %v3297
    %v3306 = vtanh.pop %v3298
    %v3307 = vtanh.pop %v3299
    %v3308 = vtanh.pop %v3300
    %v3309 = vtanh.pop %v3301
    %v3310 = vtanh.pop %v3302
    %v3311 = vtanh.pop %v3303
    %v3312 = vtanh.pop %v3304
    %v3313 = vmul.f32 %v3266, %v3305
    %v3314 = vmul.f32 %v3268, %v3306
    %v3315 = vmul.f32 %v3270, %v3307
    %v3316 = vmul.f32 %v3272, %v3308
    %v3317 = vmul.f32 %v3274, %v3309
    %v3318 = vmul.f32 %v3276, %v3310
    %v3319 = vmul.f32 %v3278, %v3311
    %v3320 = vmul.f32 %v3280, %v3312
    %3321 = vst [vmem:[#allocation3 + $0x4] sm:$0x1] %v3313
    %3322 = vst [vmem:[#allocation3 + $0xc] sm:$0x1] %v3314
    %3323 = vst [vmem:[#allocation3 + $0x14] sm:$0x1] %v3315
    %3324 = vst [vmem:[#allocation3 + $0x1c] sm:$0x1] %v3316
    %3325 = vst [vmem:[#allocation3 + $0x24] sm:$0x1] %v3317
    %3326 = vst [vmem:[#allocation3 + $0x2c] sm:$0x1] %v3318
    %3327 = vst [vmem:[#allocation3 + $0x34] sm:$0x1] %v3319
    %3328 = vst [vmem:[#allocation3 + $0x3c] sm:$0x1] %v3320
    %s3329 = scalar_lea.vmem [#allocation2], 5
    %v3330 = vld [vmem:[%s3329] ss:$8 sm:$0xf]
    %s3331 = scalar_lea.vmem [#allocation2], 37
    %v3332 = vld [vmem:[%s3331] ss:$8 sm:$0xf]
    %s3333 = scalar_lea.vmem [#allocation2], 69
    %v3334 = vld [vmem:[%s3333] ss:$8 sm:$0xf]
    %s3335 = scalar_lea.vmem [#allocation2], 101
    %v3336 = vld [vmem:[%s3335] ss:$8 sm:$0xf]
    %s3337 = scalar_lea.vmem [#allocation2], 133
    %v3338 = vld [vmem:[%s3337] ss:$8 sm:$0xf]
    %s3339 = scalar_lea.vmem [#allocation2], 165
    %v3340 = vld [vmem:[%s3339] ss:$8 sm:$0xf]
    %s3341 = scalar_lea.vmem [#allocation2], 197
    %v3342 = vld [vmem:[%s3341] ss:$8 sm:$0xf]
    %s3343 = scalar_lea.vmem [#allocation2], 229
    %v3344 = vld [vmem:[%s3343] ss:$8 sm:$0xf]
    %v3353 = vcombine.low %v3313, %v3314
    %v3354 = vcombine.low %v3315, %v3316
    %v3355 = vcombine.low %v3317, %v3318
    %v3356 = vcombine.low %v3319, %v3320
    %v3358 = vunpack.c.l.s4 1966171168
    %v3359 = vunpack.c.0.s8 %v3358
    %v3360 = vlaneseq
    %v3361 = vshrl.u32 %v3360, 7
    %v3362 = vsub.s32 %v3359, %v3361
    %v3363 = vrot.slane %v3353, %v3362
    %v3365 = vunpack.c.l.s4 1966171168
    %v3366 = vunpack.c.0.s8 %v3365
    %v3367 = vlaneseq
    %v3368 = vshrl.u32 %v3367, 7
    %v3369 = vsub.s32 %v3366, %v3368
    %v3370 = vrot.slane %v3354, %v3369
    %v3372 = vunpack.c.l.s4 1966171168
    %v3373 = vunpack.c.0.s8 %v3372
    %v3374 = vlaneseq
    %v3375 = vshrl.u32 %v3374, 7
    %v3376 = vsub.s32 %v3373, %v3375
    %v3377 = vrot.slane %v3355, %v3376
    %v3379 = vunpack.c.l.s4 1966171168
    %v3380 = vunpack.c.0.s8 %v3379
    %v3381 = vlaneseq
    %v3382 = vshrl.u32 %v3381, 7
    %v3383 = vsub.s32 %v3380, %v3382
    %v3384 = vrot.slane %v3356, %v3383
    %v3385 = vcombine.low %v3363, %v3370
    %v3386 = vcombine.low %v3377, %v3384
    %v3388 = vunpack.c.l.s4 1966171168
    %v3389 = vunpack.c.0.s8 %v3388
    %v3390 = vlaneseq
    %v3391 = vshrl.u32 %v3390, 7
    %v3392 = vsub.s32 %v3389, %v3391
    %v3393 = vrot.slane %v3385, %v3392
    %v3395 = vunpack.c.l.s4 1966171168
    %v3396 = vunpack.c.0.s8 %v3395
    %v3397 = vlaneseq
    %v3398 = vshrl.u32 %v3397, 7
    %v3399 = vsub.s32 %v3396, %v3398
    %v3400 = vrot.slane %v3386, %v3399
    %v3401 = vcombine.low %v3393, %v3400
    %3403 = vmatprep.subr.mxu0 %v525
    %3404 = vmatpush1.msra.mxu0 %v524
    %3405 = vmatprep.subr.mxu0 %v521
    %3406 = vmatpush1.msra.mxu0 %v520
    %3407 = vmatprep.subr.mxu0 %v517
    %3408 = vmatpush1.msra.mxu0 %v516
    %3409 = vmatprep.subr.mxu0 %v513
    %3410 = vmatpush1.msra.mxu0 %v512
    %3411 = vmatprep.subr.mxu0 %v509
    %3412 = vmatpush1.msra.mxu0 %v508
    %3413 = vmatprep.subr.mxu0 %v505
    %3414 = vmatpush1.msra.mxu0 %v504
    %3415 = vmatprep.subr.mxu0 %v501
    %3416 = vmatpush1.msra.mxu0 %v500
    %3417 = vmatprep.subr.mxu0 %v497
    %3418 = vmatpush1.msra.mxu0 %v496
    %3419 = vmatprep.subr.mxu0 %v493
    %3420 = vmatpush1.msra.mxu0 %v492
    %3421 = vmatprep.subr.mxu0 %v489
    %3422 = vmatpush1.msra.mxu0 %v488
    %3423 = vmatprep.subr.mxu0 %v485
    %3424 = vmatpush1.msra.mxu0 %v484
    %3425 = vmatprep.subr.mxu0 %v481
    %3426 = vmatpush1.msra.mxu0 %v480
    %3427 = vmatprep.subr.mxu0 %v477
    %3428 = vmatpush1.msra.mxu0 %v476
    %3429 = vmatprep.subr.mxu0 %v473
    %3430 = vmatpush1.msra.mxu0 %v472
    %3431 = vmatprep.subr.mxu0 %v469
    %3432 = vmatpush1.msra.mxu0 %v468
    %3433 = vmatprep.subr.mxu0 %v465
    %3434 = vmatpush1.msra.mxu0 %v464
    %3435 = vmatprep.subr.mxu0 0.0
    %3436 = vmatpush2.msra.mxu0 0.0
    %3437 = vmatprep.subr.mxu0 0.0
    %3438 = vmatpush2.msra.mxu0 0.0
    %3439 = vmatprep.subr.mxu0 0.0
    %3440 = vmatpush2.msra.mxu0 0.0
    %3441 = vmatprep.subr.mxu0 0.0
    %3442 = vmatpush2.msra.mxu0 0.0
    %3443 = vmatprep.subr.mxu0 0.0
    %3444 = vmatpush2.msra.mxu0 0.0
    %3445 = vmatprep.subr.mxu0 0.0
    %3446 = vmatpush2.msra.mxu0 0.0
    %3447 = vmatprep.subr.mxu0 0.0
    %3448 = vmatpush2.msra.mxu0 0.0
    %3449 = vmatprep.subr.mxu0 0.0
    %3450 = vmatpush2.msra.mxu0 0.0
    %3451 = vmatprep.subr.mxu0 0.0
    %3452 = vmatpush2.msra.mxu0 0.0
    %3453 = vmatprep.subr.mxu0 0.0
    %3454 = vmatpush2.msra.mxu0 0.0
    %3455 = vmatprep.subr.mxu0 0.0
    %3456 = vmatpush2.msra.mxu0 0.0
    %3457 = vmatprep.subr.mxu0 0.0
    %3458 = vmatpush2.msra.mxu0 0.0
    %3459 = vmatprep.subr.mxu0 0.0
    %3460 = vmatpush2.msra.mxu0 0.0
    %3461 = vmatprep.subr.mxu0 0.0
    %3462 = vmatpush2.msra.mxu0 0.0
    %3463 = vmatprep.subr.mxu0 0.0
    %3464 = vmatpush2.msra.mxu0 0.0
    %3465 = vmatprep.subr.mxu0 0.0
    %3466 = vmatpush2.msra.mxu0 0.0
    %3467 = vmatprep.mubr.f32.mxu0 0.0
    %3468 = vmatmul.mubr.f32.gmra.mxu0 %v3401
    %v3469 = vpop.f32.mrf.mxu0
    %v3470 = vadd.f32 0.0, %v3469
    %v3471 = vpop.f32.mrf.mxu0
    %v3472 = vadd.f32 0.0, %v3471
    %3473 = vdwg.mxu0
    %3474 = vmatprep.subr.mxu0 %v527
    %3475 = vmatpush1.msra.mxu0 %v526
    %3476 = vmatprep.subr.mxu0 %v523
    %3477 = vmatpush1.msra.mxu0 %v522
    %3478 = vmatprep.subr.mxu0 %v519
    %3479 = vmatpush1.msra.mxu0 %v518
    %3480 = vmatprep.subr.mxu0 %v515
    %3481 = vmatpush1.msra.mxu0 %v514
    %3482 = vmatprep.subr.mxu0 %v511
    %3483 = vmatpush1.msra.mxu0 %v510
    %3484 = vmatprep.subr.mxu0 %v507
    %3485 = vmatpush1.msra.mxu0 %v506
    %3486 = vmatprep.subr.mxu0 %v503
    %3487 = vmatpush1.msra.mxu0 %v502
    %3488 = vmatprep.subr.mxu0 %v499
    %3489 = vmatpush1.msra.mxu0 %v498
    %3490 = vmatprep.subr.mxu0 %v495
    %3491 = vmatpush1.msra.mxu0 %v494
    %3492 = vmatprep.subr.mxu0 %v491
    %3493 = vmatpush1.msra.mxu0 %v490
    %3494 = vmatprep.subr.mxu0 %v487
    %3495 = vmatpush1.msra.mxu0 %v486
    %3496 = vmatprep.subr.mxu0 %v483
    %3497 = vmatpush1.msra.mxu0 %v482
    %3498 = vmatprep.subr.mxu0 %v479
    %3499 = vmatpush1.msra.mxu0 %v478
    %3500 = vmatprep.subr.mxu0 %v475
    %3501 = vmatpush1.msra.mxu0 %v474
    %3502 = vmatprep.subr.mxu0 %v471
    %3503 = vmatpush1.msra.mxu0 %v470
    %3504 = vmatprep.subr.mxu0 %v467
    %3505 = vmatpush1.msra.mxu0 %v466
    %3506 = vmatprep.subr.mxu0 0.0
    %3507 = vmatpush2.msra.mxu0 0.0
    %3508 = vmatprep.subr.mxu0 0.0
    %3509 = vmatpush2.msra.mxu0 0.0
    %3510 = vmatprep.subr.mxu0 0.0
    %3511 = vmatpush2.msra.mxu0 0.0
    %3512 = vmatprep.subr.mxu0 0.0
    %3513 = vmatpush2.msra.mxu0 0.0
    %3514 = vmatprep.subr.mxu0 0.0
    %3515 = vmatpush2.msra.mxu0 0.0
    %3516 = vmatprep.subr.mxu0 0.0
    %3517 = vmatpush2.msra.mxu0 0.0
    %3518 = vmatprep.subr.mxu0 0.0
    %3519 = vmatpush2.msra.mxu0 0.0
    %3520 = vmatprep.subr.mxu0 0.0
    %3521 = vmatpush2.msra.mxu0 0.0
    %3522 = vmatprep.subr.mxu0 0.0
    %3523 = vmatpush2.msra.mxu0 0.0
    %3524 = vmatprep.subr.mxu0 0.0
    %3525 = vmatpush2.msra.mxu0 0.0
    %3526 = vmatprep.subr.mxu0 0.0
    %3527 = vmatpush2.msra.mxu0 0.0
    %3528 = vmatprep.subr.mxu0 0.0
    %3529 = vmatpush2.msra.mxu0 0.0
    %3530 = vmatprep.subr.mxu0 0.0
    %3531 = vmatpush2.msra.mxu0 0.0
    %3532 = vmatprep.subr.mxu0 0.0
    %3533 = vmatpush2.msra.mxu0 0.0
    %3534 = vmatprep.subr.mxu0 0.0
    %3535 = vmatpush2.msra.mxu0 0.0
    %3536 = vmatprep.subr.mxu0 0.0
    %3537 = vmatpush2.msra.mxu0 0.0
    %3538 = vmatprep.mubr.f32.mxu0 0.0
    %3539 = vmatmul.mubr.f32.gmra.mxu0 %v3401
    %v3540 = vpop.f32.mrf.mxu0
    %v3541 = vadd.f32 0.0, %v3540
    %v3542 = vpop.f32.mrf.mxu0
    %v3543 = vadd.f32 0.0, %v3542
    %3544 = vdwg.mxu0
    %v3549 = vcombine.low %v3470, %v3472
    %v3550 = vcombine.high %v3470, %v3472
    %v3551 = vcombine.low %v3541, %v3543
    %v3552 = vcombine.high %v3541, %v3543
    %v3554 = vunpack.c.l.s4 1966171168
    %v3555 = vunpack.c.0.s8 %v3554
    %v3556 = vlaneseq
    %v3557 = vshrl.u32 %v3556, 7
    %v3558 = vsub.s32 %v3555, %v3557
    %v3559 = vrot.slane %v3549, %v3558
    %v3561 = vunpack.c.l.s4 1966171168
    %v3562 = vunpack.c.0.s8 %v3561
    %v3563 = vlaneseq
    %v3564 = vshrl.u32 %v3563, 7
    %v3565 = vsub.s32 %v3562, %v3564
    %v3566 = vrot.slane %v3550, %v3565
    %v3568 = vunpack.c.l.s4 1966171168
    %v3569 = vunpack.c.0.s8 %v3568
    %v3570 = vlaneseq
    %v3571 = vshrl.u32 %v3570, 7
    %v3572 = vsub.s32 %v3569, %v3571
    %v3573 = vrot.slane %v3551, %v3572
    %v3575 = vunpack.c.l.s4 1966171168
    %v3576 = vunpack.c.0.s8 %v3575
    %v3577 = vlaneseq
    %v3578 = vshrl.u32 %v3577, 7
    %v3579 = vsub.s32 %v3576, %v3578
    %v3580 = vrot.slane %v3552, %v3579
    %v3581 = vcombine.low %v3559, %v3573
    %v3582 = vcombine.high %v3559, %v3573
    %v3583 = vcombine.low %v3566, %v3580
    %v3584 = vcombine.high %v3566, %v3580
    %v3586 = vunpack.c.l.s4 1966171168
    %v3587 = vunpack.c.0.s8 %v3586
    %v3588 = vlaneseq
    %v3589 = vshrl.u32 %v3588, 7
    %v3590 = vsub.s32 %v3587, %v3589
    %v3591 = vrot.slane %v3581, %v3590
    %v3593 = vunpack.c.l.s4 1966171168
    %v3594 = vunpack.c.0.s8 %v3593
    %v3595 = vlaneseq
    %v3596 = vshrl.u32 %v3595, 7
    %v3597 = vsub.s32 %v3594, %v3596
    %v3598 = vrot.slane %v3583, %v3597
    %v3600 = vunpack.c.l.s4 1966171168
    %v3601 = vunpack.c.0.s8 %v3600
    %v3602 = vlaneseq
    %v3603 = vshrl.u32 %v3602, 7
    %v3604 = vsub.s32 %v3601, %v3603
    %v3605 = vrot.slane %v3582, %v3604
    %v3607 = vunpack.c.l.s4 1966171168
    %v3608 = vunpack.c.0.s8 %v3607
    %v3609 = vlaneseq
    %v3610 = vshrl.u32 %v3609, 7
    %v3611 = vsub.s32 %v3608, %v3610
    %v3612 = vrot.slane %v3584, %v3611
    %v3613 = vcombine.high %v3591, %v3591
    %v3614 = vcombine.high %v3598, %v3598
    %v3615 = vcombine.high %v3605, %v3605
    %v3616 = vcombine.high %v3612, %v3612
    %v3625 = vadd.f32 %v3330, %v3591
    %v3626 = vadd.f32 %v3332, %v3605
    %v3627 = vadd.f32 %v3334, %v3613
    %v3628 = vadd.f32 %v3336, %v3615
    %v3629 = vadd.f32 %v3338, %v3598
    %v3630 = vadd.f32 %v3340, %v3612
    %v3631 = vadd.f32 %v3342, %v3614
    %v3632 = vadd.f32 %v3344, %v3616
    %v3633 = vxor.u32 %v3625, 2147483648
    %v3634 = vxor.u32 %v3626, 2147483648
    %v3635 = vxor.u32 %v3627, 2147483648
    %v3636 = vxor.u32 %v3628, 2147483648
    %v3637 = vxor.u32 %v3629, 2147483648
    %v3638 = vxor.u32 %v3630, 2147483648
    %v3639 = vxor.u32 %v3631, 2147483648
    %v3640 = vxor.u32 %v3632, 2147483648
    %v3641 = vmul.f32 %v3633, 1.442695
    %v3642 = vpow.pop %v3641
    %v3643 = vmul.f32 %v3634, 1.442695
    %v3644 = vpow.pop %v3643
    %v3645 = vmul.f32 %v3635, 1.442695
    %v3646 = vpow.pop %v3645
    %v3647 = vmul.f32 %v3636, 1.442695
    %v3648 = vpow.pop %v3647
    %v3649 = vmul.f32 %v3637, 1.442695
    %v3650 = vpow.pop %v3649
    %v3651 = vmul.f32 %v3638, 1.442695
    %v3652 = vpow.pop %v3651
    %v3653 = vmul.f32 %v3639, 1.442695
    %v3654 = vpow.pop %v3653
    %v3655 = vmul.f32 %v3640, 1.442695
    %v3656 = vpow.pop %v3655
    %v3657 = vadd.f32 %v3642, 1.0
    %v3658 = vadd.f32 %v3644, 1.0
    %v3659 = vadd.f32 %v3646, 1.0
    %v3660 = vadd.f32 %v3648, 1.0
    %v3661 = vadd.f32 %v3650, 1.0
    %v3662 = vadd.f32 %v3652, 1.0
    %v3663 = vadd.f32 %v3654, 1.0
    %v3664 = vadd.f32 %v3656, 1.0
    %v3665 = vrcp.pop %v3657
    %v3666 = vmul.f32 1.0, %v3665
    %v3667 = vrcp.pop %v3658
    %v3668 = vmul.f32 1.0, %v3667
    %v3669 = vrcp.pop %v3659
    %v3670 = vmul.f32 1.0, %v3669
    %v3671 = vrcp.pop %v3660
    %v3672 = vmul.f32 1.0, %v3671
    %v3673 = vrcp.pop %v3661
    %v3674 = vmul.f32 1.0, %v3673
    %v3675 = vrcp.pop %v3662
    %v3676 = vmul.f32 1.0, %v3675
    %v3677 = vrcp.pop %v3663
    %v3678 = vmul.f32 1.0, %v3677
    %v3679 = vrcp.pop %v3664
    %v3680 = vmul.f32 1.0, %v3679
    %v3689 = vrot.slane %v3625, 1
    %v3690 = vrot.slane %v3626, 1
    %v3691 = vrot.slane %v3627, 1
    %v3692 = vrot.slane %v3628, 1
    %v3693 = vrot.slane %v3629, 1
    %v3694 = vrot.slane %v3630, 1
    %v3695 = vrot.slane %v3631, 1
    %v3696 = vrot.slane %v3632, 1
    %v3705 = vxor.u32 %v3689, 2147483648
    %v3706 = vxor.u32 %v3690, 2147483648
    %v3707 = vxor.u32 %v3691, 2147483648
    %v3708 = vxor.u32 %v3692, 2147483648
    %v3709 = vxor.u32 %v3693, 2147483648
    %v3710 = vxor.u32 %v3694, 2147483648
    %v3711 = vxor.u32 %v3695, 2147483648
    %v3712 = vxor.u32 %v3696, 2147483648
    %v3713 = vmul.f32 %v3705, 1.442695
    %v3714 = vpow.pop %v3713
    %v3715 = vmul.f32 %v3706, 1.442695
    %v3716 = vpow.pop %v3715
    %v3717 = vmul.f32 %v3707, 1.442695
    %v3718 = vpow.pop %v3717
    %v3719 = vmul.f32 %v3708, 1.442695
    %v3720 = vpow.pop %v3719
    %v3721 = vmul.f32 %v3709, 1.442695
    %v3722 = vpow.pop %v3721
    %v3723 = vmul.f32 %v3710, 1.442695
    %v3724 = vpow.pop %v3723
    %v3725 = vmul.f32 %v3711, 1.442695
    %v3726 = vpow.pop %v3725
    %v3727 = vmul.f32 %v3712, 1.442695
    %v3728 = vpow.pop %v3727
    %v3729 = vadd.f32 %v3714, 1.0
    %v3730 = vadd.f32 %v3716, 1.0
    %v3731 = vadd.f32 %v3718, 1.0
    %v3732 = vadd.f32 %v3720, 1.0
    %v3733 = vadd.f32 %v3722, 1.0
    %v3734 = vadd.f32 %v3724, 1.0
    %v3735 = vadd.f32 %v3726, 1.0
    %v3736 = vadd.f32 %v3728, 1.0
    %v3737 = vrcp.pop %v3729
    %v3738 = vmul.f32 1.0, %v3737
    %v3739 = vrcp.pop %v3730
    %v3740 = vmul.f32 1.0, %v3739
    %v3741 = vrcp.pop %v3731
    %v3742 = vmul.f32 1.0, %v3741
    %v3743 = vrcp.pop %v3732
    %v3744 = vmul.f32 1.0, %v3743
    %v3745 = vrcp.pop %v3733
    %v3746 = vmul.f32 1.0, %v3745
    %v3747 = vrcp.pop %v3734
    %v3748 = vmul.f32 1.0, %v3747
    %v3749 = vrcp.pop %v3735
    %v3750 = vmul.f32 1.0, %v3749
    %v3751 = vrcp.pop %v3736
    %v3752 = vmul.f32 1.0, %v3751
    %v3753 = vrot.slane %v3625, 2
    %v3754 = vrot.slane %v3626, 2
    %v3755 = vrot.slane %v3627, 2
    %v3756 = vrot.slane %v3628, 2
    %v3757 = vrot.slane %v3629, 2
    %v3758 = vrot.slane %v3630, 2
    %v3759 = vrot.slane %v3631, 2
    %v3760 = vrot.slane %v3632, 2
    %v3769 = vtanh.pop %v3753
    %v3770 = vtanh.pop %v3754
    %v3771 = vtanh.pop %v3755
    %v3772 = vtanh.pop %v3756
    %v3773 = vtanh.pop %v3757
    %v3774 = vtanh.pop %v3758
    %v3775 = vtanh.pop %v3759
    %v3776 = vtanh.pop %v3760
    %v3777 = vrot.slane %v3625, 3
    %v3778 = vrot.slane %v3626, 3
    %v3779 = vrot.slane %v3627, 3
    %v3780 = vrot.slane %v3628, 3
    %v3781 = vrot.slane %v3629, 3
    %v3782 = vrot.slane %v3630, 3
    %v3783 = vrot.slane %v3631, 3
    %v3784 = vrot.slane %v3632, 3
    %v3793 = vxor.u32 %v3777, 2147483648
    %v3794 = vxor.u32 %v3778, 2147483648
    %v3795 = vxor.u32 %v3779, 2147483648
    %v3796 = vxor.u32 %v3780, 2147483648
    %v3797 = vxor.u32 %v3781, 2147483648
    %v3798 = vxor.u32 %v3782, 2147483648
    %v3799 = vxor.u32 %v3783, 2147483648
    %v3800 = vxor.u32 %v3784, 2147483648
    %v3801 = vmul.f32 %v3793, 1.442695
    %v3802 = vpow.pop %v3801
    %v3803 = vmul.f32 %v3794, 1.442695
    %v3804 = vpow.pop %v3803
    %v3805 = vmul.f32 %v3795, 1.442695
    %v3806 = vpow.pop %v3805
    %v3807 = vmul.f32 %v3796, 1.442695
    %v3808 = vpow.pop %v3807
    %v3809 = vmul.f32 %v3797, 1.442695
    %v3810 = vpow.pop %v3809
    %v3811 = vmul.f32 %v3798, 1.442695
    %v3812 = vpow.pop %v3811
    %v3813 = vmul.f32 %v3799, 1.442695
    %v3814 = vpow.pop %v3813
    %v3815 = vmul.f32 %v3800, 1.442695
    %v3816 = vpow.pop %v3815
    %v3817 = vadd.f32 %v3802, 1.0
    %v3818 = vadd.f32 %v3804, 1.0
    %v3819 = vadd.f32 %v3806, 1.0
    %v3820 = vadd.f32 %v3808, 1.0
    %v3821 = vadd.f32 %v3810, 1.0
    %v3822 = vadd.f32 %v3812, 1.0
    %v3823 = vadd.f32 %v3814, 1.0
    %v3824 = vadd.f32 %v3816, 1.0
    %v3825 = vrcp.pop %v3817
    %v3826 = vmul.f32 1.0, %v3825
    %v3827 = vrcp.pop %v3818
    %v3828 = vmul.f32 1.0, %v3827
    %v3829 = vrcp.pop %v3819
    %v3830 = vmul.f32 1.0, %v3829
    %v3831 = vrcp.pop %v3820
    %v3832 = vmul.f32 1.0, %v3831
    %v3833 = vrcp.pop %v3821
    %v3834 = vmul.f32 1.0, %v3833
    %v3835 = vrcp.pop %v3822
    %v3836 = vmul.f32 1.0, %v3835
    %v3837 = vrcp.pop %v3823
    %v3838 = vmul.f32 1.0, %v3837
    %v3839 = vrcp.pop %v3824
    %v3840 = vmul.f32 1.0, %v3839
    %v3841 = vmul.f32 %v3738, %v3297
    %v3842 = vmul.f32 %v3740, %v3298
    %v3843 = vmul.f32 %v3742, %v3299
    %v3844 = vmul.f32 %v3744, %v3300
    %v3845 = vmul.f32 %v3746, %v3301
    %v3846 = vmul.f32 %v3748, %v3302
    %v3847 = vmul.f32 %v3750, %v3303
    %v3848 = vmul.f32 %v3752, %v3304
    %v3849 = vmul.f32 %v3666, %v3769
    %v3850 = vmul.f32 %v3668, %v3770
    %v3851 = vmul.f32 %v3670, %v3771
    %v3852 = vmul.f32 %v3672, %v3772
    %v3853 = vmul.f32 %v3674, %v3773
    %v3854 = vmul.f32 %v3676, %v3774
    %v3855 = vmul.f32 %v3678, %v3775
    %v3856 = vmul.f32 %v3680, %v3776
    %v3857 = vadd.f32 %v3841, %v3849
    %v3858 = vadd.f32 %v3842, %v3850
    %v3859 = vadd.f32 %v3843, %v3851
    %v3860 = vadd.f32 %v3844, %v3852
    %v3861 = vadd.f32 %v3845, %v3853
    %v3862 = vadd.f32 %v3846, %v3854
    %v3863 = vadd.f32 %v3847, %v3855
    %v3864 = vadd.f32 %v3848, %v3856
    %v3865 = vtanh.pop %v3857
    %v3866 = vtanh.pop %v3858
    %v3867 = vtanh.pop %v3859
    %v3868 = vtanh.pop %v3860
    %v3869 = vtanh.pop %v3861
    %v3870 = vtanh.pop %v3862
    %v3871 = vtanh.pop %v3863
    %v3872 = vtanh.pop %v3864
    %v3873 = vmul.f32 %v3826, %v3865
    %v3874 = vmul.f32 %v3828, %v3866
    %v3875 = vmul.f32 %v3830, %v3867
    %v3876 = vmul.f32 %v3832, %v3868
    %v3877 = vmul.f32 %v3834, %v3869
    %v3878 = vmul.f32 %v3836, %v3870
    %v3879 = vmul.f32 %v3838, %v3871
    %v3880 = vmul.f32 %v3840, %v3872
    %3881 = vst [vmem:[#allocation3 + $0x5] sm:$0x1] %v3873
    %3882 = vst [vmem:[#allocation3 + $0xd] sm:$0x1] %v3874
    %3883 = vst [vmem:[#allocation3 + $0x15] sm:$0x1] %v3875
    %3884 = vst [vmem:[#allocation3 + $0x1d] sm:$0x1] %v3876
    %3885 = vst [vmem:[#allocation3 + $0x25] sm:$0x1] %v3877
    %3886 = vst [vmem:[#allocation3 + $0x2d] sm:$0x1] %v3878
    %3887 = vst [vmem:[#allocation3 + $0x35] sm:$0x1] %v3879
    %3888 = vst [vmem:[#allocation3 + $0x3d] sm:$0x1] %v3880
    %s3889 = scalar_lea.vmem [#allocation2], 6
    %v3890 = vld [vmem:[%s3889] ss:$8 sm:$0xf]
    %s3891 = scalar_lea.vmem [#allocation2], 38
    %v3892 = vld [vmem:[%s3891] ss:$8 sm:$0xf]
    %s3893 = scalar_lea.vmem [#allocation2], 70
    %v3894 = vld [vmem:[%s3893] ss:$8 sm:$0xf]
    %s3895 = scalar_lea.vmem [#allocation2], 102
    %v3896 = vld [vmem:[%s3895] ss:$8 sm:$0xf]
    %s3897 = scalar_lea.vmem [#allocation2], 134
    %v3898 = vld [vmem:[%s3897] ss:$8 sm:$0xf]
    %s3899 = scalar_lea.vmem [#allocation2], 166
    %v3900 = vld [vmem:[%s3899] ss:$8 sm:$0xf]
    %s3901 = scalar_lea.vmem [#allocation2], 198
    %v3902 = vld [vmem:[%s3901] ss:$8 sm:$0xf]
    %s3903 = scalar_lea.vmem [#allocation2], 230
    %v3904 = vld [vmem:[%s3903] ss:$8 sm:$0xf]
    %v3913 = vcombine.low %v3873, %v3874
    %v3914 = vcombine.low %v3875, %v3876
    %v3915 = vcombine.low %v3877, %v3878
    %v3916 = vcombine.low %v3879, %v3880
    %v3918 = vunpack.c.l.s4 1966171168
    %v3919 = vunpack.c.0.s8 %v3918
    %v3920 = vlaneseq
    %v3921 = vshrl.u32 %v3920, 7
    %v3922 = vsub.s32 %v3919, %v3921
    %v3923 = vrot.slane %v3913, %v3922
    %v3925 = vunpack.c.l.s4 1966171168
    %v3926 = vunpack.c.0.s8 %v3925
    %v3927 = vlaneseq
    %v3928 = vshrl.u32 %v3927, 7
    %v3929 = vsub.s32 %v3926, %v3928
    %v3930 = vrot.slane %v3914, %v3929
    %v3932 = vunpack.c.l.s4 1966171168
    %v3933 = vunpack.c.0.s8 %v3932
    %v3934 = vlaneseq
    %v3935 = vshrl.u32 %v3934, 7
    %v3936 = vsub.s32 %v3933, %v3935
    %v3937 = vrot.slane %v3915, %v3936
    %v3939 = vunpack.c.l.s4 1966171168
    %v3940 = vunpack.c.0.s8 %v3939
    %v3941 = vlaneseq
    %v3942 = vshrl.u32 %v3941, 7
    %v3943 = vsub.s32 %v3940, %v3942
    %v3944 = vrot.slane %v3916, %v3943
    %v3945 = vcombine.low %v3923, %v3930
    %v3946 = vcombine.low %v3937, %v3944
    %v3948 = vunpack.c.l.s4 1966171168
    %v3949 = vunpack.c.0.s8 %v3948
    %v3950 = vlaneseq
    %v3951 = vshrl.u32 %v3950, 7
    %v3952 = vsub.s32 %v3949, %v3951
    %v3953 = vrot.slane %v3945, %v3952
    %v3955 = vunpack.c.l.s4 1966171168
    %v3956 = vunpack.c.0.s8 %v3955
    %v3957 = vlaneseq
    %v3958 = vshrl.u32 %v3957, 7
    %v3959 = vsub.s32 %v3956, %v3958
    %v3960 = vrot.slane %v3946, %v3959
    %v3961 = vcombine.low %v3953, %v3960
    %3963 = vmatprep.subr.mxu0 %v525
    %3964 = vmatpush1.msra.mxu0 %v524
    %3965 = vmatprep.subr.mxu0 %v521
    %3966 = vmatpush1.msra.mxu0 %v520
    %3967 = vmatprep.subr.mxu0 %v517
    %3968 = vmatpush1.msra.mxu0 %v516
    %3969 = vmatprep.subr.mxu0 %v513
    %3970 = vmatpush1.msra.mxu0 %v512
    %3971 = vmatprep.subr.mxu0 %v509
    %3972 = vmatpush1.msra.mxu0 %v508
    %3973 = vmatprep.subr.mxu0 %v505
    %3974 = vmatpush1.msra.mxu0 %v504
    %3975 = vmatprep.subr.mxu0 %v501
    %3976 = vmatpush1.msra.mxu0 %v500
    %3977 = vmatprep.subr.mxu0 %v497
    %3978 = vmatpush1.msra.mxu0 %v496
    %3979 = vmatprep.subr.mxu0 %v493
    %3980 = vmatpush1.msra.mxu0 %v492
    %3981 = vmatprep.subr.mxu0 %v489
    %3982 = vmatpush1.msra.mxu0 %v488
    %3983 = vmatprep.subr.mxu0 %v485
    %3984 = vmatpush1.msra.mxu0 %v484
    %3985 = vmatprep.subr.mxu0 %v481
    %3986 = vmatpush1.msra.mxu0 %v480
    %3987 = vmatprep.subr.mxu0 %v477
    %3988 = vmatpush1.msra.mxu0 %v476
    %3989 = vmatprep.subr.mxu0 %v473
    %3990 = vmatpush1.msra.mxu0 %v472
    %3991 = vmatprep.subr.mxu0 %v469
    %3992 = vmatpush1.msra.mxu0 %v468
    %3993 = vmatprep.subr.mxu0 %v465
    %3994 = vmatpush1.msra.mxu0 %v464
    %3995 = vmatprep.subr.mxu0 0.0
    %3996 = vmatpush2.msra.mxu0 0.0
    %3997 = vmatprep.subr.mxu0 0.0
    %3998 = vmatpush2.msra.mxu0 0.0
    %3999 = vmatprep.subr.mxu0 0.0
    %4000 = vmatpush2.msra.mxu0 0.0
    %4001 = vmatprep.subr.mxu0 0.0
    %4002 = vmatpush2.msra.mxu0 0.0
    %4003 = vmatprep.subr.mxu0 0.0
    %4004 = vmatpush2.msra.mxu0 0.0
    %4005 = vmatprep.subr.mxu0 0.0
    %4006 = vmatpush2.msra.mxu0 0.0
    %4007 = vmatprep.subr.mxu0 0.0
    %4008 = vmatpush2.msra.mxu0 0.0
    %4009 = vmatprep.subr.mxu0 0.0
    %4010 = vmatpush2.msra.mxu0 0.0
    %4011 = vmatprep.subr.mxu0 0.0
    %4012 = vmatpush2.msra.mxu0 0.0
    %4013 = vmatprep.subr.mxu0 0.0
    %4014 = vmatpush2.msra.mxu0 0.0
    %4015 = vmatprep.subr.mxu0 0.0
    %4016 = vmatpush2.msra.mxu0 0.0
    %4017 = vmatprep.subr.mxu0 0.0
    %4018 = vmatpush2.msra.mxu0 0.0
    %4019 = vmatprep.subr.mxu0 0.0
    %4020 = vmatpush2.msra.mxu0 0.0
    %4021 = vmatprep.subr.mxu0 0.0
    %4022 = vmatpush2.msra.mxu0 0.0
    %4023 = vmatprep.subr.mxu0 0.0
    %4024 = vmatpush2.msra.mxu0 0.0
    %4025 = vmatprep.subr.mxu0 0.0
    %4026 = vmatpush2.msra.mxu0 0.0
    %4027 = vmatprep.mubr.f32.mxu0 0.0
    %4028 = vmatmul.mubr.f32.gmra.mxu0 %v3961
    %v4029 = vpop.f32.mrf.mxu0
    %v4030 = vadd.f32 0.0, %v4029
    %v4031 = vpop.f32.mrf.mxu0
    %v4032 = vadd.f32 0.0, %v4031
    %4033 = vdwg.mxu0
    %4034 = vmatprep.subr.mxu0 %v527
    %4035 = vmatpush1.msra.mxu0 %v526
    %4036 = vmatprep.subr.mxu0 %v523
    %4037 = vmatpush1.msra.mxu0 %v522
    %4038 = vmatprep.subr.mxu0 %v519
    %4039 = vmatpush1.msra.mxu0 %v518
    %4040 = vmatprep.subr.mxu0 %v515
    %4041 = vmatpush1.msra.mxu0 %v514
    %4042 = vmatprep.subr.mxu0 %v511
    %4043 = vmatpush1.msra.mxu0 %v510
    %4044 = vmatprep.subr.mxu0 %v507
    %4045 = vmatpush1.msra.mxu0 %v506
    %4046 = vmatprep.subr.mxu0 %v503
    %4047 = vmatpush1.msra.mxu0 %v502
    %4048 = vmatprep.subr.mxu0 %v499
    %4049 = vmatpush1.msra.mxu0 %v498
    %4050 = vmatprep.subr.mxu0 %v495
    %4051 = vmatpush1.msra.mxu0 %v494
    %4052 = vmatprep.subr.mxu0 %v491
    %4053 = vmatpush1.msra.mxu0 %v490
    %4054 = vmatprep.subr.mxu0 %v487
    %4055 = vmatpush1.msra.mxu0 %v486
    %4056 = vmatprep.subr.mxu0 %v483
    %4057 = vmatpush1.msra.mxu0 %v482
    %4058 = vmatprep.subr.mxu0 %v479
    %4059 = vmatpush1.msra.mxu0 %v478
    %4060 = vmatprep.subr.mxu0 %v475
    %4061 = vmatpush1.msra.mxu0 %v474
    %4062 = vmatprep.subr.mxu0 %v471
    %4063 = vmatpush1.msra.mxu0 %v470
    %4064 = vmatprep.subr.mxu0 %v467
    %4065 = vmatpush1.msra.mxu0 %v466
    %4066 = vmatprep.subr.mxu0 0.0
    %4067 = vmatpush2.msra.mxu0 0.0
    %4068 = vmatprep.subr.mxu0 0.0
    %4069 = vmatpush2.msra.mxu0 0.0
    %4070 = vmatprep.subr.mxu0 0.0
    %4071 = vmatpush2.msra.mxu0 0.0
    %4072 = vmatprep.subr.mxu0 0.0
    %4073 = vmatpush2.msra.mxu0 0.0
    %4074 = vmatprep.subr.mxu0 0.0
    %4075 = vmatpush2.msra.mxu0 0.0
    %4076 = vmatprep.subr.mxu0 0.0
    %4077 = vmatpush2.msra.mxu0 0.0
    %4078 = vmatprep.subr.mxu0 0.0
    %4079 = vmatpush2.msra.mxu0 0.0
    %4080 = vmatprep.subr.mxu0 0.0
    %4081 = vmatpush2.msra.mxu0 0.0
    %4082 = vmatprep.subr.mxu0 0.0
    %4083 = vmatpush2.msra.mxu0 0.0
    %4084 = vmatprep.subr.mxu0 0.0
    %4085 = vmatpush2.msra.mxu0 0.0
    %4086 = vmatprep.subr.mxu0 0.0
    %4087 = vmatpush2.msra.mxu0 0.0
    %4088 = vmatprep.subr.mxu0 0.0
    %4089 = vmatpush2.msra.mxu0 0.0
    %4090 = vmatprep.subr.mxu0 0.0
    %4091 = vmatpush2.msra.mxu0 0.0
    %4092 = vmatprep.subr.mxu0 0.0
    %4093 = vmatpush2.msra.mxu0 0.0
    %4094 = vmatprep.subr.mxu0 0.0
    %4095 = vmatpush2.msra.mxu0 0.0
    %4096 = vmatprep.subr.mxu0 0.0
    %4097 = vmatpush2.msra.mxu0 0.0
    %4098 = vmatprep.mubr.f32.mxu0 0.0
    %4099 = vmatmul.mubr.f32.gmra.mxu0 %v3961
    %v4100 = vpop.f32.mrf.mxu0
    %v4101 = vadd.f32 0.0, %v4100
    %v4102 = vpop.f32.mrf.mxu0
    %v4103 = vadd.f32 0.0, %v4102
    %4104 = vdwg.mxu0
    %v4109 = vcombine.low %v4030, %v4032
    %v4110 = vcombine.high %v4030, %v4032
    %v4111 = vcombine.low %v4101, %v4103
    %v4112 = vcombine.high %v4101, %v4103
    %v4114 = vunpack.c.l.s4 1966171168
    %v4115 = vunpack.c.0.s8 %v4114
    %v4116 = vlaneseq
    %v4117 = vshrl.u32 %v4116, 7
    %v4118 = vsub.s32 %v4115, %v4117
    %v4119 = vrot.slane %v4109, %v4118
    %v4121 = vunpack.c.l.s4 1966171168
    %v4122 = vunpack.c.0.s8 %v4121
    %v4123 = vlaneseq
    %v4124 = vshrl.u32 %v4123, 7
    %v4125 = vsub.s32 %v4122, %v4124
    %v4126 = vrot.slane %v4110, %v4125
    %v4128 = vunpack.c.l.s4 1966171168
    %v4129 = vunpack.c.0.s8 %v4128
    %v4130 = vlaneseq
    %v4131 = vshrl.u32 %v4130, 7
    %v4132 = vsub.s32 %v4129, %v4131
    %v4133 = vrot.slane %v4111, %v4132
    %v4135 = vunpack.c.l.s4 1966171168
    %v4136 = vunpack.c.0.s8 %v4135
    %v4137 = vlaneseq
    %v4138 = vshrl.u32 %v4137, 7
    %v4139 = vsub.s32 %v4136, %v4138
    %v4140 = vrot.slane %v4112, %v4139
    %v4141 = vcombine.low %v4119, %v4133
    %v4142 = vcombine.high %v4119, %v4133
    %v4143 = vcombine.low %v4126, %v4140
    %v4144 = vcombine.high %v4126, %v4140
    %v4146 = vunpack.c.l.s4 1966171168
    %v4147 = vunpack.c.0.s8 %v4146
    %v4148 = vlaneseq
    %v4149 = vshrl.u32 %v4148, 7
    %v4150 = vsub.s32 %v4147, %v4149
    %v4151 = vrot.slane %v4141, %v4150
    %v4153 = vunpack.c.l.s4 1966171168
    %v4154 = vunpack.c.0.s8 %v4153
    %v4155 = vlaneseq
    %v4156 = vshrl.u32 %v4155, 7
    %v4157 = vsub.s32 %v4154, %v4156
    %v4158 = vrot.slane %v4143, %v4157
    %v4160 = vunpack.c.l.s4 1966171168
    %v4161 = vunpack.c.0.s8 %v4160
    %v4162 = vlaneseq
    %v4163 = vshrl.u32 %v4162, 7
    %v4164 = vsub.s32 %v4161, %v4163
    %v4165 = vrot.slane %v4142, %v4164
    %v4167 = vunpack.c.l.s4 1966171168
    %v4168 = vunpack.c.0.s8 %v4167
    %v4169 = vlaneseq
    %v4170 = vshrl.u32 %v4169, 7
    %v4171 = vsub.s32 %v4168, %v4170
    %v4172 = vrot.slane %v4144, %v4171
    %v4173 = vcombine.high %v4151, %v4151
    %v4174 = vcombine.high %v4158, %v4158
    %v4175 = vcombine.high %v4165, %v4165
    %v4176 = vcombine.high %v4172, %v4172
    %v4185 = vadd.f32 %v3890, %v4151
    %v4186 = vadd.f32 %v3892, %v4165
    %v4187 = vadd.f32 %v3894, %v4173
    %v4188 = vadd.f32 %v3896, %v4175
    %v4189 = vadd.f32 %v3898, %v4158
    %v4190 = vadd.f32 %v3900, %v4172
    %v4191 = vadd.f32 %v3902, %v4174
    %v4192 = vadd.f32 %v3904, %v4176
    %v4193 = vxor.u32 %v4185, 2147483648
    %v4194 = vxor.u32 %v4186, 2147483648
    %v4195 = vxor.u32 %v4187, 2147483648
    %v4196 = vxor.u32 %v4188, 2147483648
    %v4197 = vxor.u32 %v4189, 2147483648
    %v4198 = vxor.u32 %v4190, 2147483648
    %v4199 = vxor.u32 %v4191, 2147483648
    %v4200 = vxor.u32 %v4192, 2147483648
    %v4201 = vmul.f32 %v4193, 1.442695
    %v4202 = vpow.pop %v4201
    %v4203 = vmul.f32 %v4194, 1.442695
    %v4204 = vpow.pop %v4203
    %v4205 = vmul.f32 %v4195, 1.442695
    %v4206 = vpow.pop %v4205
    %v4207 = vmul.f32 %v4196, 1.442695
    %v4208 = vpow.pop %v4207
    %v4209 = vmul.f32 %v4197, 1.442695
    %v4210 = vpow.pop %v4209
    %v4211 = vmul.f32 %v4198, 1.442695
    %v4212 = vpow.pop %v4211
    %v4213 = vmul.f32 %v4199, 1.442695
    %v4214 = vpow.pop %v4213
    %v4215 = vmul.f32 %v4200, 1.442695
    %v4216 = vpow.pop %v4215
    %v4217 = vadd.f32 %v4202, 1.0
    %v4218 = vadd.f32 %v4204, 1.0
    %v4219 = vadd.f32 %v4206, 1.0
    %v4220 = vadd.f32 %v4208, 1.0
    %v4221 = vadd.f32 %v4210, 1.0
    %v4222 = vadd.f32 %v4212, 1.0
    %v4223 = vadd.f32 %v4214, 1.0
    %v4224 = vadd.f32 %v4216, 1.0
    %v4225 = vrcp.pop %v4217
    %v4226 = vmul.f32 1.0, %v4225
    %v4227 = vrcp.pop %v4218
    %v4228 = vmul.f32 1.0, %v4227
    %v4229 = vrcp.pop %v4219
    %v4230 = vmul.f32 1.0, %v4229
    %v4231 = vrcp.pop %v4220
    %v4232 = vmul.f32 1.0, %v4231
    %v4233 = vrcp.pop %v4221
    %v4234 = vmul.f32 1.0, %v4233
    %v4235 = vrcp.pop %v4222
    %v4236 = vmul.f32 1.0, %v4235
    %v4237 = vrcp.pop %v4223
    %v4238 = vmul.f32 1.0, %v4237
    %v4239 = vrcp.pop %v4224
    %v4240 = vmul.f32 1.0, %v4239
    %v4249 = vrot.slane %v4185, 1
    %v4250 = vrot.slane %v4186, 1
    %v4251 = vrot.slane %v4187, 1
    %v4252 = vrot.slane %v4188, 1
    %v4253 = vrot.slane %v4189, 1
    %v4254 = vrot.slane %v4190, 1
    %v4255 = vrot.slane %v4191, 1
    %v4256 = vrot.slane %v4192, 1
    %v4265 = vxor.u32 %v4249, 2147483648
    %v4266 = vxor.u32 %v4250, 2147483648
    %v4267 = vxor.u32 %v4251, 2147483648
    %v4268 = vxor.u32 %v4252, 2147483648
    %v4269 = vxor.u32 %v4253, 2147483648
    %v4270 = vxor.u32 %v4254, 2147483648
    %v4271 = vxor.u32 %v4255, 2147483648
    %v4272 = vxor.u32 %v4256, 2147483648
    %v4273 = vmul.f32 %v4265, 1.442695
    %v4274 = vpow.pop %v4273
    %v4275 = vmul.f32 %v4266, 1.442695
    %v4276 = vpow.pop %v4275
    %v4277 = vmul.f32 %v4267, 1.442695
    %v4278 = vpow.pop %v4277
    %v4279 = vmul.f32 %v4268, 1.442695
    %v4280 = vpow.pop %v4279
    %v4281 = vmul.f32 %v4269, 1.442695
    %v4282 = vpow.pop %v4281
    %v4283 = vmul.f32 %v4270, 1.442695
    %v4284 = vpow.pop %v4283
    %v4285 = vmul.f32 %v4271, 1.442695
    %v4286 = vpow.pop %v4285
    %v4287 = vmul.f32 %v4272, 1.442695
    %v4288 = vpow.pop %v4287
    %v4289 = vadd.f32 %v4274, 1.0
    %v4290 = vadd.f32 %v4276, 1.0
    %v4291 = vadd.f32 %v4278, 1.0
    %v4292 = vadd.f32 %v4280, 1.0
    %v4293 = vadd.f32 %v4282, 1.0
    %v4294 = vadd.f32 %v4284, 1.0
    %v4295 = vadd.f32 %v4286, 1.0
    %v4296 = vadd.f32 %v4288, 1.0
    %v4297 = vrcp.pop %v4289
    %v4298 = vmul.f32 1.0, %v4297
    %v4299 = vrcp.pop %v4290
    %v4300 = vmul.f32 1.0, %v4299
    %v4301 = vrcp.pop %v4291
    %v4302 = vmul.f32 1.0, %v4301
    %v4303 = vrcp.pop %v4292
    %v4304 = vmul.f32 1.0, %v4303
    %v4305 = vrcp.pop %v4293
    %v4306 = vmul.f32 1.0, %v4305
    %v4307 = vrcp.pop %v4294
    %v4308 = vmul.f32 1.0, %v4307
    %v4309 = vrcp.pop %v4295
    %v4310 = vmul.f32 1.0, %v4309
    %v4311 = vrcp.pop %v4296
    %v4312 = vmul.f32 1.0, %v4311
    %v4313 = vrot.slane %v4185, 2
    %v4314 = vrot.slane %v4186, 2
    %v4315 = vrot.slane %v4187, 2
    %v4316 = vrot.slane %v4188, 2
    %v4317 = vrot.slane %v4189, 2
    %v4318 = vrot.slane %v4190, 2
    %v4319 = vrot.slane %v4191, 2
    %v4320 = vrot.slane %v4192, 2
    %v4329 = vtanh.pop %v4313
    %v4330 = vtanh.pop %v4314
    %v4331 = vtanh.pop %v4315
    %v4332 = vtanh.pop %v4316
    %v4333 = vtanh.pop %v4317
    %v4334 = vtanh.pop %v4318
    %v4335 = vtanh.pop %v4319
    %v4336 = vtanh.pop %v4320
    %v4337 = vrot.slane %v4185, 3
    %v4338 = vrot.slane %v4186, 3
    %v4339 = vrot.slane %v4187, 3
    %v4340 = vrot.slane %v4188, 3
    %v4341 = vrot.slane %v4189, 3
    %v4342 = vrot.slane %v4190, 3
    %v4343 = vrot.slane %v4191, 3
    %v4344 = vrot.slane %v4192, 3
    %v4353 = vxor.u32 %v4337, 2147483648
    %v4354 = vxor.u32 %v4338, 2147483648
    %v4355 = vxor.u32 %v4339, 2147483648
    %v4356 = vxor.u32 %v4340, 2147483648
    %v4357 = vxor.u32 %v4341, 2147483648
    %v4358 = vxor.u32 %v4342, 2147483648
    %v4359 = vxor.u32 %v4343, 2147483648
    %v4360 = vxor.u32 %v4344, 2147483648
    %v4361 = vmul.f32 %v4353, 1.442695
    %v4362 = vpow.pop %v4361
    %v4363 = vmul.f32 %v4354, 1.442695
    %v4364 = vpow.pop %v4363
    %v4365 = vmul.f32 %v4355, 1.442695
    %v4366 = vpow.pop %v4365
    %v4367 = vmul.f32 %v4356, 1.442695
    %v4368 = vpow.pop %v4367
    %v4369 = vmul.f32 %v4357, 1.442695
    %v4370 = vpow.pop %v4369
    %v4371 = vmul.f32 %v4358, 1.442695
    %v4372 = vpow.pop %v4371
    %v4373 = vmul.f32 %v4359, 1.442695
    %v4374 = vpow.pop %v4373
    %v4375 = vmul.f32 %v4360, 1.442695
    %v4376 = vpow.pop %v4375
    %v4377 = vadd.f32 %v4362, 1.0
    %v4378 = vadd.f32 %v4364, 1.0
    %v4379 = vadd.f32 %v4366, 1.0
    %v4380 = vadd.f32 %v4368, 1.0
    %v4381 = vadd.f32 %v4370, 1.0
    %v4382 = vadd.f32 %v4372, 1.0
    %v4383 = vadd.f32 %v4374, 1.0
    %v4384 = vadd.f32 %v4376, 1.0
    %v4385 = vrcp.pop %v4377
    %v4386 = vmul.f32 1.0, %v4385
    %v4387 = vrcp.pop %v4378
    %v4388 = vmul.f32 1.0, %v4387
    %v4389 = vrcp.pop %v4379
    %v4390 = vmul.f32 1.0, %v4389
    %v4391 = vrcp.pop %v4380
    %v4392 = vmul.f32 1.0, %v4391
    %v4393 = vrcp.pop %v4381
    %v4394 = vmul.f32 1.0, %v4393
    %v4395 = vrcp.pop %v4382
    %v4396 = vmul.f32 1.0, %v4395
    %v4397 = vrcp.pop %v4383
    %v4398 = vmul.f32 1.0, %v4397
    %v4399 = vrcp.pop %v4384
    %v4400 = vmul.f32 1.0, %v4399
    %v4401 = vmul.f32 %v4298, %v3857
    %v4402 = vmul.f32 %v4300, %v3858
    %v4403 = vmul.f32 %v4302, %v3859
    %v4404 = vmul.f32 %v4304, %v3860
    %v4405 = vmul.f32 %v4306, %v3861
    %v4406 = vmul.f32 %v4308, %v3862
    %v4407 = vmul.f32 %v4310, %v3863
    %v4408 = vmul.f32 %v4312, %v3864
    %v4409 = vmul.f32 %v4226, %v4329
    %v4410 = vmul.f32 %v4228, %v4330
    %v4411 = vmul.f32 %v4230, %v4331
    %v4412 = vmul.f32 %v4232, %v4332
    %v4413 = vmul.f32 %v4234, %v4333
    %v4414 = vmul.f32 %v4236, %v4334
    %v4415 = vmul.f32 %v4238, %v4335
    %v4416 = vmul.f32 %v4240, %v4336
    %v4417 = vadd.f32 %v4401, %v4409
    %v4418 = vadd.f32 %v4402, %v4410
    %v4419 = vadd.f32 %v4403, %v4411
    %v4420 = vadd.f32 %v4404, %v4412
    %v4421 = vadd.f32 %v4405, %v4413
    %v4422 = vadd.f32 %v4406, %v4414
    %v4423 = vadd.f32 %v4407, %v4415
    %v4424 = vadd.f32 %v4408, %v4416
    %v4425 = vtanh.pop %v4417
    %v4426 = vtanh.pop %v4418
    %v4427 = vtanh.pop %v4419
    %v4428 = vtanh.pop %v4420
    %v4429 = vtanh.pop %v4421
    %v4430 = vtanh.pop %v4422
    %v4431 = vtanh.pop %v4423
    %v4432 = vtanh.pop %v4424
    %v4433 = vmul.f32 %v4386, %v4425
    %v4434 = vmul.f32 %v4388, %v4426
    %v4435 = vmul.f32 %v4390, %v4427
    %v4436 = vmul.f32 %v4392, %v4428
    %v4437 = vmul.f32 %v4394, %v4429
    %v4438 = vmul.f32 %v4396, %v4430
    %v4439 = vmul.f32 %v4398, %v4431
    %v4440 = vmul.f32 %v4400, %v4432
    %4441 = vst [vmem:[#allocation3 + $0x6] sm:$0x1] %v4433
    %4442 = vst [vmem:[#allocation3 + $0xe] sm:$0x1] %v4434
    %4443 = vst [vmem:[#allocation3 + $0x16] sm:$0x1] %v4435
    %4444 = vst [vmem:[#allocation3 + $0x1e] sm:$0x1] %v4436
    %4445 = vst [vmem:[#allocation3 + $0x26] sm:$0x1] %v4437
    %4446 = vst [vmem:[#allocation3 + $0x2e] sm:$0x1] %v4438
    %4447 = vst [vmem:[#allocation3 + $0x36] sm:$0x1] %v4439
    %4448 = vst [vmem:[#allocation3 + $0x3e] sm:$0x1] %v4440
    %s4449 = scalar_lea.vmem [#allocation2], 7
    %v4450 = vld [vmem:[%s4449] ss:$8 sm:$0xf]
    %s4451 = scalar_lea.vmem [#allocation2], 39
    %v4452 = vld [vmem:[%s4451] ss:$8 sm:$0xf]
    %s4453 = scalar_lea.vmem [#allocation2], 71
    %v4454 = vld [vmem:[%s4453] ss:$8 sm:$0xf]
    %s4455 = scalar_lea.vmem [#allocation2], 103
    %v4456 = vld [vmem:[%s4455] ss:$8 sm:$0xf]
    %s4457 = scalar_lea.vmem [#allocation2], 135
    %v4458 = vld [vmem:[%s4457] ss:$8 sm:$0xf]
    %s4459 = scalar_lea.vmem [#allocation2], 167
    %v4460 = vld [vmem:[%s4459] ss:$8 sm:$0xf]
    %s4461 = scalar_lea.vmem [#allocation2], 199
    %v4462 = vld [vmem:[%s4461] ss:$8 sm:$0xf]
    %s4463 = scalar_lea.vmem [#allocation2], 231
    %v4464 = vld [vmem:[%s4463] ss:$8 sm:$0xf]
    %v4473 = vcombine.low %v4433, %v4434
    %v4474 = vcombine.low %v4435, %v4436
    %v4475 = vcombine.low %v4437, %v4438
    %v4476 = vcombine.low %v4439, %v4440
    %v4478 = vunpack.c.l.s4 1966171168
    %v4479 = vunpack.c.0.s8 %v4478
    %v4480 = vlaneseq
    %v4481 = vshrl.u32 %v4480, 7
    %v4482 = vsub.s32 %v4479, %v4481
    %v4483 = vrot.slane %v4473, %v4482
    %v4485 = vunpack.c.l.s4 1966171168
    %v4486 = vunpack.c.0.s8 %v4485
    %v4487 = vlaneseq
    %v4488 = vshrl.u32 %v4487, 7
    %v4489 = vsub.s32 %v4486, %v4488
    %v4490 = vrot.slane %v4474, %v4489
    %v4492 = vunpack.c.l.s4 1966171168
    %v4493 = vunpack.c.0.s8 %v4492
    %v4494 = vlaneseq
    %v4495 = vshrl.u32 %v4494, 7
    %v4496 = vsub.s32 %v4493, %v4495
    %v4497 = vrot.slane %v4475, %v4496
    %v4499 = vunpack.c.l.s4 1966171168
    %v4500 = vunpack.c.0.s8 %v4499
    %v4501 = vlaneseq
    %v4502 = vshrl.u32 %v4501, 7
    %v4503 = vsub.s32 %v4500, %v4502
    %v4504 = vrot.slane %v4476, %v4503
    %v4505 = vcombine.low %v4483, %v4490
    %v4506 = vcombine.low %v4497, %v4504
    %v4508 = vunpack.c.l.s4 1966171168
    %v4509 = vunpack.c.0.s8 %v4508
    %v4510 = vlaneseq
    %v4511 = vshrl.u32 %v4510, 7
    %v4512 = vsub.s32 %v4509, %v4511
    %v4513 = vrot.slane %v4505, %v4512
    %v4515 = vunpack.c.l.s4 1966171168
    %v4516 = vunpack.c.0.s8 %v4515
    %v4517 = vlaneseq
    %v4518 = vshrl.u32 %v4517, 7
    %v4519 = vsub.s32 %v4516, %v4518
    %v4520 = vrot.slane %v4506, %v4519
    %v4521 = vcombine.low %v4513, %v4520
    %4523 = vmatprep.subr.mxu0 %v525
    %4524 = vmatpush1.msra.mxu0 %v524
    %4525 = vmatprep.subr.mxu0 %v521
    %4526 = vmatpush1.msra.mxu0 %v520
    %4527 = vmatprep.subr.mxu0 %v517
    %4528 = vmatpush1.msra.mxu0 %v516
    %4529 = vmatprep.subr.mxu0 %v513
    %4530 = vmatpush1.msra.mxu0 %v512
    %4531 = vmatprep.subr.mxu0 %v509
    %4532 = vmatpush1.msra.mxu0 %v508
    %4533 = vmatprep.subr.mxu0 %v505
    %4534 = vmatpush1.msra.mxu0 %v504
    %4535 = vmatprep.subr.mxu0 %v501
    %4536 = vmatpush1.msra.mxu0 %v500
    %4537 = vmatprep.subr.mxu0 %v497
    %4538 = vmatpush1.msra.mxu0 %v496
    %4539 = vmatprep.subr.mxu0 %v493
    %4540 = vmatpush1.msra.mxu0 %v492
    %4541 = vmatprep.subr.mxu0 %v489
    %4542 = vmatpush1.msra.mxu0 %v488
    %4543 = vmatprep.subr.mxu0 %v485
    %4544 = vmatpush1.msra.mxu0 %v484
    %4545 = vmatprep.subr.mxu0 %v481
    %4546 = vmatpush1.msra.mxu0 %v480
    %4547 = vmatprep.subr.mxu0 %v477
    %4548 = vmatpush1.msra.mxu0 %v476
    %4549 = vmatprep.subr.mxu0 %v473
    %4550 = vmatpush1.msra.mxu0 %v472
    %4551 = vmatprep.subr.mxu0 %v469
    %4552 = vmatpush1.msra.mxu0 %v468
    %4553 = vmatprep.subr.mxu0 %v465
    %4554 = vmatpush1.msra.mxu0 %v464
    %4555 = vmatprep.subr.mxu0 0.0
    %4556 = vmatpush2.msra.mxu0 0.0
    %4557 = vmatprep.subr.mxu0 0.0
    %4558 = vmatpush2.msra.mxu0 0.0
    %4559 = vmatprep.subr.mxu0 0.0
    %4560 = vmatpush2.msra.mxu0 0.0
    %4561 = vmatprep.subr.mxu0 0.0
    %4562 = vmatpush2.msra.mxu0 0.0
    %4563 = vmatprep.subr.mxu0 0.0
    %4564 = vmatpush2.msra.mxu0 0.0
    %4565 = vmatprep.subr.mxu0 0.0
    %4566 = vmatpush2.msra.mxu0 0.0
    %4567 = vmatprep.subr.mxu0 0.0
    %4568 = vmatpush2.msra.mxu0 0.0
    %4569 = vmatprep.subr.mxu0 0.0
    %4570 = vmatpush2.msra.mxu0 0.0
    %4571 = vmatprep.subr.mxu0 0.0
    %4572 = vmatpush2.msra.mxu0 0.0
    %4573 = vmatprep.subr.mxu0 0.0
    %4574 = vmatpush2.msra.mxu0 0.0
    %4575 = vmatprep.subr.mxu0 0.0
    %4576 = vmatpush2.msra.mxu0 0.0
    %4577 = vmatprep.subr.mxu0 0.0
    %4578 = vmatpush2.msra.mxu0 0.0
    %4579 = vmatprep.subr.mxu0 0.0
    %4580 = vmatpush2.msra.mxu0 0.0
    %4581 = vmatprep.subr.mxu0 0.0
    %4582 = vmatpush2.msra.mxu0 0.0
    %4583 = vmatprep.subr.mxu0 0.0
    %4584 = vmatpush2.msra.mxu0 0.0
    %4585 = vmatprep.subr.mxu0 0.0
    %4586 = vmatpush2.msra.mxu0 0.0
    %4587 = vmatprep.mubr.f32.mxu0 0.0
    %4588 = vmatmul.mubr.f32.gmra.mxu0 %v4521
    %v4589 = vpop.f32.mrf.mxu0
    %v4590 = vadd.f32 0.0, %v4589
    %v4591 = vpop.f32.mrf.mxu0
    %v4592 = vadd.f32 0.0, %v4591
    %4593 = vdwg.mxu0
    %4594 = vmatprep.subr.mxu0 %v527
    %4595 = vmatpush1.msra.mxu0 %v526
    %4596 = vmatprep.subr.mxu0 %v523
    %4597 = vmatpush1.msra.mxu0 %v522
    %4598 = vmatprep.subr.mxu0 %v519
    %4599 = vmatpush1.msra.mxu0 %v518
    %4600 = vmatprep.subr.mxu0 %v515
    %4601 = vmatpush1.msra.mxu0 %v514
    %4602 = vmatprep.subr.mxu0 %v511
    %4603 = vmatpush1.msra.mxu0 %v510
    %4604 = vmatprep.subr.mxu0 %v507
    %4605 = vmatpush1.msra.mxu0 %v506
    %4606 = vmatprep.subr.mxu0 %v503
    %4607 = vmatpush1.msra.mxu0 %v502
    %4608 = vmatprep.subr.mxu0 %v499
    %4609 = vmatpush1.msra.mxu0 %v498
    %4610 = vmatprep.subr.mxu0 %v495
    %4611 = vmatpush1.msra.mxu0 %v494
    %4612 = vmatprep.subr.mxu0 %v491
    %4613 = vmatpush1.msra.mxu0 %v490
    %4614 = vmatprep.subr.mxu0 %v487
    %4615 = vmatpush1.msra.mxu0 %v486
    %4616 = vmatprep.subr.mxu0 %v483
    %4617 = vmatpush1.msra.mxu0 %v482
    %4618 = vmatprep.subr.mxu0 %v479
    %4619 = vmatpush1.msra.mxu0 %v478
    %4620 = vmatprep.subr.mxu0 %v475
    %4621 = vmatpush1.msra.mxu0 %v474
    %4622 = vmatprep.subr.mxu0 %v471
    %4623 = vmatpush1.msra.mxu0 %v470
    %4624 = vmatprep.subr.mxu0 %v467
    %4625 = vmatpush1.msra.mxu0 %v466
    %4626 = vmatprep.subr.mxu0 0.0
    %4627 = vmatpush2.msra.mxu0 0.0
    %4628 = vmatprep.subr.mxu0 0.0
    %4629 = vmatpush2.msra.mxu0 0.0
    %4630 = vmatprep.subr.mxu0 0.0
    %4631 = vmatpush2.msra.mxu0 0.0
    %4632 = vmatprep.subr.mxu0 0.0
    %4633 = vmatpush2.msra.mxu0 0.0
    %4634 = vmatprep.subr.mxu0 0.0
    %4635 = vmatpush2.msra.mxu0 0.0
    %4636 = vmatprep.subr.mxu0 0.0
    %4637 = vmatpush2.msra.mxu0 0.0
    %4638 = vmatprep.subr.mxu0 0.0
    %4639 = vmatpush2.msra.mxu0 0.0
    %4640 = vmatprep.subr.mxu0 0.0
    %4641 = vmatpush2.msra.mxu0 0.0
    %4642 = vmatprep.subr.mxu0 0.0
    %4643 = vmatpush2.msra.mxu0 0.0
    %4644 = vmatprep.subr.mxu0 0.0
    %4645 = vmatpush2.msra.mxu0 0.0
    %4646 = vmatprep.subr.mxu0 0.0
    %4647 = vmatpush2.msra.mxu0 0.0
    %4648 = vmatprep.subr.mxu0 0.0
    %4649 = vmatpush2.msra.mxu0 0.0
    %4650 = vmatprep.subr.mxu0 0.0
    %4651 = vmatpush2.msra.mxu0 0.0
    %4652 = vmatprep.subr.mxu0 0.0
    %4653 = vmatpush2.msra.mxu0 0.0
    %4654 = vmatprep.subr.mxu0 0.0
    %4655 = vmatpush2.msra.mxu0 0.0
    %4656 = vmatprep.subr.mxu0 0.0
    %4657 = vmatpush2.msra.mxu0 0.0
    %4658 = vmatprep.mubr.f32.mxu0 0.0
    %4659 = vmatmul.mubr.f32.gmra.mxu0 %v4521
    %v4660 = vpop.f32.mrf.mxu0
    %v4661 = vadd.f32 0.0, %v4660
    %v4662 = vpop.f32.mrf.mxu0
    %v4663 = vadd.f32 0.0, %v4662
    %4664 = vdwg.mxu0
    %v4669 = vcombine.low %v4590, %v4592
    %v4670 = vcombine.high %v4590, %v4592
    %v4671 = vcombine.low %v4661, %v4663
    %v4672 = vcombine.high %v4661, %v4663
    %v4674 = vunpack.c.l.s4 1966171168
    %v4675 = vunpack.c.0.s8 %v4674
    %v4676 = vlaneseq
    %v4677 = vshrl.u32 %v4676, 7
    %v4678 = vsub.s32 %v4675, %v4677
    %v4679 = vrot.slane %v4669, %v4678
    %v4681 = vunpack.c.l.s4 1966171168
    %v4682 = vunpack.c.0.s8 %v4681
    %v4683 = vlaneseq
    %v4684 = vshrl.u32 %v4683, 7
    %v4685 = vsub.s32 %v4682, %v4684
    %v4686 = vrot.slane %v4670, %v4685
    %v4688 = vunpack.c.l.s4 1966171168
    %v4689 = vunpack.c.0.s8 %v4688
    %v4690 = vlaneseq
    %v4691 = vshrl.u32 %v4690, 7
    %v4692 = vsub.s32 %v4689, %v4691
    %v4693 = vrot.slane %v4671, %v4692
    %v4695 = vunpack.c.l.s4 1966171168
    %v4696 = vunpack.c.0.s8 %v4695
    %v4697 = vlaneseq
    %v4698 = vshrl.u32 %v4697, 7
    %v4699 = vsub.s32 %v4696, %v4698
    %v4700 = vrot.slane %v4672, %v4699
    %v4701 = vcombine.low %v4679, %v4693
    %v4702 = vcombine.high %v4679, %v4693
    %v4703 = vcombine.low %v4686, %v4700
    %v4704 = vcombine.high %v4686, %v4700
    %v4706 = vunpack.c.l.s4 1966171168
    %v4707 = vunpack.c.0.s8 %v4706
    %v4708 = vlaneseq
    %v4709 = vshrl.u32 %v4708, 7
    %v4710 = vsub.s32 %v4707, %v4709
    %v4711 = vrot.slane %v4701, %v4710
    %v4713 = vunpack.c.l.s4 1966171168
    %v4714 = vunpack.c.0.s8 %v4713
    %v4715 = vlaneseq
    %v4716 = vshrl.u32 %v4715, 7
    %v4717 = vsub.s32 %v4714, %v4716
    %v4718 = vrot.slane %v4703, %v4717
    %v4720 = vunpack.c.l.s4 1966171168
    %v4721 = vunpack.c.0.s8 %v4720
    %v4722 = vlaneseq
    %v4723 = vshrl.u32 %v4722, 7
    %v4724 = vsub.s32 %v4721, %v4723
    %v4725 = vrot.slane %v4702, %v4724
    %v4727 = vunpack.c.l.s4 1966171168
    %v4728 = vunpack.c.0.s8 %v4727
    %v4729 = vlaneseq
    %v4730 = vshrl.u32 %v4729, 7
    %v4731 = vsub.s32 %v4728, %v4730
    %v4732 = vrot.slane %v4704, %v4731
    %v4733 = vcombine.high %v4711, %v4711
    %v4734 = vcombine.high %v4718, %v4718
    %v4735 = vcombine.high %v4725, %v4725
    %v4736 = vcombine.high %v4732, %v4732
    %v4745 = vadd.f32 %v4450, %v4711
    %v4746 = vadd.f32 %v4452, %v4725
    %v4747 = vadd.f32 %v4454, %v4733
    %v4748 = vadd.f32 %v4456, %v4735
    %v4749 = vadd.f32 %v4458, %v4718
    %v4750 = vadd.f32 %v4460, %v4732
    %v4751 = vadd.f32 %v4462, %v4734
    %v4752 = vadd.f32 %v4464, %v4736
    %v4753 = vxor.u32 %v4745, 2147483648
    %v4754 = vxor.u32 %v4746, 2147483648
    %v4755 = vxor.u32 %v4747, 2147483648
    %v4756 = vxor.u32 %v4748, 2147483648
    %v4757 = vxor.u32 %v4749, 2147483648
    %v4758 = vxor.u32 %v4750, 2147483648
    %v4759 = vxor.u32 %v4751, 2147483648
    %v4760 = vxor.u32 %v4752, 2147483648
    %v4761 = vmul.f32 %v4753, 1.442695
    %v4762 = vpow.pop %v4761
    %v4763 = vmul.f32 %v4754, 1.442695
    %v4764 = vpow.pop %v4763
    %v4765 = vmul.f32 %v4755, 1.442695
    %v4766 = vpow.pop %v4765
    %v4767 = vmul.f32 %v4756, 1.442695
    %v4768 = vpow.pop %v4767
    %v4769 = vmul.f32 %v4757, 1.442695
    %v4770 = vpow.pop %v4769
    %v4771 = vmul.f32 %v4758, 1.442695
    %v4772 = vpow.pop %v4771
    %v4773 = vmul.f32 %v4759, 1.442695
    %v4774 = vpow.pop %v4773
    %v4775 = vmul.f32 %v4760, 1.442695
    %v4776 = vpow.pop %v4775
    %v4777 = vadd.f32 %v4762, 1.0
    %v4778 = vadd.f32 %v4764, 1.0
    %v4779 = vadd.f32 %v4766, 1.0
    %v4780 = vadd.f32 %v4768, 1.0
    %v4781 = vadd.f32 %v4770, 1.0
    %v4782 = vadd.f32 %v4772, 1.0
    %v4783 = vadd.f32 %v4774, 1.0
    %v4784 = vadd.f32 %v4776, 1.0
    %v4785 = vrcp.pop %v4777
    %v4786 = vmul.f32 1.0, %v4785
    %v4787 = vrcp.pop %v4778
    %v4788 = vmul.f32 1.0, %v4787
    %v4789 = vrcp.pop %v4779
    %v4790 = vmul.f32 1.0, %v4789
    %v4791 = vrcp.pop %v4780
    %v4792 = vmul.f32 1.0, %v4791
    %v4793 = vrcp.pop %v4781
    %v4794 = vmul.f32 1.0, %v4793
    %v4795 = vrcp.pop %v4782
    %v4796 = vmul.f32 1.0, %v4795
    %v4797 = vrcp.pop %v4783
    %v4798 = vmul.f32 1.0, %v4797
    %v4799 = vrcp.pop %v4784
    %v4800 = vmul.f32 1.0, %v4799
    %v4809 = vrot.slane %v4745, 1
    %v4810 = vrot.slane %v4746, 1
    %v4811 = vrot.slane %v4747, 1
    %v4812 = vrot.slane %v4748, 1
    %v4813 = vrot.slane %v4749, 1
    %v4814 = vrot.slane %v4750, 1
    %v4815 = vrot.slane %v4751, 1
    %v4816 = vrot.slane %v4752, 1
    %v4825 = vxor.u32 %v4809, 2147483648
    %v4826 = vxor.u32 %v4810, 2147483648
    %v4827 = vxor.u32 %v4811, 2147483648
    %v4828 = vxor.u32 %v4812, 2147483648
    %v4829 = vxor.u32 %v4813, 2147483648
    %v4830 = vxor.u32 %v4814, 2147483648
    %v4831 = vxor.u32 %v4815, 2147483648
    %v4832 = vxor.u32 %v4816, 2147483648
    %v4833 = vmul.f32 %v4825, 1.442695
    %v4834 = vpow.pop %v4833
    %v4835 = vmul.f32 %v4826, 1.442695
    %v4836 = vpow.pop %v4835
    %v4837 = vmul.f32 %v4827, 1.442695
    %v4838 = vpow.pop %v4837
    %v4839 = vmul.f32 %v4828, 1.442695
    %v4840 = vpow.pop %v4839
    %v4841 = vmul.f32 %v4829, 1.442695
    %v4842 = vpow.pop %v4841
    %v4843 = vmul.f32 %v4830, 1.442695
    %v4844 = vpow.pop %v4843
    %v4845 = vmul.f32 %v4831, 1.442695
    %v4846 = vpow.pop %v4845
    %v4847 = vmul.f32 %v4832, 1.442695
    %v4848 = vpow.pop %v4847
    %v4849 = vadd.f32 %v4834, 1.0
    %v4850 = vadd.f32 %v4836, 1.0
    %v4851 = vadd.f32 %v4838, 1.0
    %v4852 = vadd.f32 %v4840, 1.0
    %v4853 = vadd.f32 %v4842, 1.0
    %v4854 = vadd.f32 %v4844, 1.0
    %v4855 = vadd.f32 %v4846, 1.0
    %v4856 = vadd.f32 %v4848, 1.0
    %v4857 = vrcp.pop %v4849
    %v4858 = vmul.f32 1.0, %v4857
    %v4859 = vrcp.pop %v4850
    %v4860 = vmul.f32 1.0, %v4859
    %v4861 = vrcp.pop %v4851
    %v4862 = vmul.f32 1.0, %v4861
    %v4863 = vrcp.pop %v4852
    %v4864 = vmul.f32 1.0, %v4863
    %v4865 = vrcp.pop %v4853
    %v4866 = vmul.f32 1.0, %v4865
    %v4867 = vrcp.pop %v4854
    %v4868 = vmul.f32 1.0, %v4867
    %v4869 = vrcp.pop %v4855
    %v4870 = vmul.f32 1.0, %v4869
    %v4871 = vrcp.pop %v4856
    %v4872 = vmul.f32 1.0, %v4871
    %v4873 = vrot.slane %v4745, 2
    %v4874 = vrot.slane %v4746, 2
    %v4875 = vrot.slane %v4747, 2
    %v4876 = vrot.slane %v4748, 2
    %v4877 = vrot.slane %v4749, 2
    %v4878 = vrot.slane %v4750, 2
    %v4879 = vrot.slane %v4751, 2
    %v4880 = vrot.slane %v4752, 2
    %v4889 = vtanh.pop %v4873
    %v4890 = vtanh.pop %v4874
    %v4891 = vtanh.pop %v4875
    %v4892 = vtanh.pop %v4876
    %v4893 = vtanh.pop %v4877
    %v4894 = vtanh.pop %v4878
    %v4895 = vtanh.pop %v4879
    %v4896 = vtanh.pop %v4880
    %v4897 = vrot.slane %v4745, 3
    %v4898 = vrot.slane %v4746, 3
    %v4899 = vrot.slane %v4747, 3
    %v4900 = vrot.slane %v4748, 3
    %v4901 = vrot.slane %v4749, 3
    %v4902 = vrot.slane %v4750, 3
    %v4903 = vrot.slane %v4751, 3
    %v4904 = vrot.slane %v4752, 3
    %v4913 = vxor.u32 %v4897, 2147483648
    %v4914 = vxor.u32 %v4898, 2147483648
    %v4915 = vxor.u32 %v4899, 2147483648
    %v4916 = vxor.u32 %v4900, 2147483648
    %v4917 = vxor.u32 %v4901, 2147483648
    %v4918 = vxor.u32 %v4902, 2147483648
    %v4919 = vxor.u32 %v4903, 2147483648
    %v4920 = vxor.u32 %v4904, 2147483648
    %v4921 = vmul.f32 %v4913, 1.442695
    %v4922 = vpow.pop %v4921
    %v4923 = vmul.f32 %v4914, 1.442695
    %v4924 = vpow.pop %v4923
    %v4925 = vmul.f32 %v4915, 1.442695
    %v4926 = vpow.pop %v4925
    %v4927 = vmul.f32 %v4916, 1.442695
    %v4928 = vpow.pop %v4927
    %v4929 = vmul.f32 %v4917, 1.442695
    %v4930 = vpow.pop %v4929
    %v4931 = vmul.f32 %v4918, 1.442695
    %v4932 = vpow.pop %v4931
    %v4933 = vmul.f32 %v4919, 1.442695
    %v4934 = vpow.pop %v4933
    %v4935 = vmul.f32 %v4920, 1.442695
    %v4936 = vpow.pop %v4935
    %v4937 = vadd.f32 %v4922, 1.0
    %v4938 = vadd.f32 %v4924, 1.0
    %v4939 = vadd.f32 %v4926, 1.0
    %v4940 = vadd.f32 %v4928, 1.0
    %v4941 = vadd.f32 %v4930, 1.0
    %v4942 = vadd.f32 %v4932, 1.0
    %v4943 = vadd.f32 %v4934, 1.0
    %v4944 = vadd.f32 %v4936, 1.0
    %v4945 = vrcp.pop %v4937
    %v4946 = vmul.f32 1.0, %v4945
    %v4947 = vrcp.pop %v4938
    %v4948 = vmul.f32 1.0, %v4947
    %v4949 = vrcp.pop %v4939
    %v4950 = vmul.f32 1.0, %v4949
    %v4951 = vrcp.pop %v4940
    %v4952 = vmul.f32 1.0, %v4951
    %v4953 = vrcp.pop %v4941
    %v4954 = vmul.f32 1.0, %v4953
    %v4955 = vrcp.pop %v4942
    %v4956 = vmul.f32 1.0, %v4955
    %v4957 = vrcp.pop %v4943
    %v4958 = vmul.f32 1.0, %v4957
    %v4959 = vrcp.pop %v4944
    %v4960 = vmul.f32 1.0, %v4959
    %v4961 = vmul.f32 %v4858, %v4417
    %v4962 = vmul.f32 %v4860, %v4418
    %v4963 = vmul.f32 %v4862, %v4419
    %v4964 = vmul.f32 %v4864, %v4420
    %v4965 = vmul.f32 %v4866, %v4421
    %v4966 = vmul.f32 %v4868, %v4422
    %v4967 = vmul.f32 %v4870, %v4423
    %v4968 = vmul.f32 %v4872, %v4424
    %v4969 = vmul.f32 %v4786, %v4889
    %v4970 = vmul.f32 %v4788, %v4890
    %v4971 = vmul.f32 %v4790, %v4891
    %v4972 = vmul.f32 %v4792, %v4892
    %v4973 = vmul.f32 %v4794, %v4893
    %v4974 = vmul.f32 %v4796, %v4894
    %v4975 = vmul.f32 %v4798, %v4895
    %v4976 = vmul.f32 %v4800, %v4896
    %v4977 = vadd.f32 %v4961, %v4969
    %v4978 = vadd.f32 %v4962, %v4970
    %v4979 = vadd.f32 %v4963, %v4971
    %v4980 = vadd.f32 %v4964, %v4972
    %v4981 = vadd.f32 %v4965, %v4973
    %v4982 = vadd.f32 %v4966, %v4974
    %v4983 = vadd.f32 %v4967, %v4975
    %v4984 = vadd.f32 %v4968, %v4976
    %v4985 = vtanh.pop %v4977
    %v4986 = vtanh.pop %v4978
    %v4987 = vtanh.pop %v4979
    %v4988 = vtanh.pop %v4980
    %v4989 = vtanh.pop %v4981
    %v4990 = vtanh.pop %v4982
    %v4991 = vtanh.pop %v4983
    %v4992 = vtanh.pop %v4984
    %v4993 = vmul.f32 %v4946, %v4985
    %v4994 = vmul.f32 %v4948, %v4986
    %v4995 = vmul.f32 %v4950, %v4987
    %v4996 = vmul.f32 %v4952, %v4988
    %v4997 = vmul.f32 %v4954, %v4989
    %v4998 = vmul.f32 %v4956, %v4990
    %v4999 = vmul.f32 %v4958, %v4991
    %v5000 = vmul.f32 %v4960, %v4992
    %5001 = vst [vmem:[#allocation3 + $0x7] sm:$0x1] %v4993
    %5002 = vst [vmem:[#allocation3 + $0xf] sm:$0x1] %v4994
    %5003 = vst [vmem:[#allocation3 + $0x17] sm:$0x1] %v4995
    %5004 = vst [vmem:[#allocation3 + $0x1f] sm:$0x1] %v4996
    %5005 = vst [vmem:[#allocation3 + $0x27] sm:$0x1] %v4997
    %5006 = vst [vmem:[#allocation3 + $0x2f] sm:$0x1] %v4998
    %5007 = vst [vmem:[#allocation3 + $0x37] sm:$0x1] %v4999
    %5008 = vst [vmem:[#allocation3 + $0x3f] sm:$0x1] %v5000
    %v5017 = vcombine.low %v4993, %v4994
    %v5018 = vcombine.low %v4995, %v4996
    %v5019 = vcombine.low %v4997, %v4998
    %v5020 = vcombine.low %v4999, %v5000
    %v5022 = vunpack.c.l.s4 1966171168
    %v5023 = vunpack.c.0.s8 %v5022
    %v5024 = vlaneseq
    %v5025 = vshrl.u32 %v5024, 7
    %v5026 = vsub.s32 %v5023, %v5025
    %v5027 = vrot.slane %v5017, %v5026
    %v5029 = vunpack.c.l.s4 1966171168
    %v5030 = vunpack.c.0.s8 %v5029
    %v5031 = vlaneseq
    %v5032 = vshrl.u32 %v5031, 7
    %v5033 = vsub.s32 %v5030, %v5032
    %v5034 = vrot.slane %v5018, %v5033
    %v5036 = vunpack.c.l.s4 1966171168
    %v5037 = vunpack.c.0.s8 %v5036
    %v5038 = vlaneseq
    %v5039 = vshrl.u32 %v5038, 7
    %v5040 = vsub.s32 %v5037, %v5039
    %v5041 = vrot.slane %v5019, %v5040
    %v5043 = vunpack.c.l.s4 1966171168
    %v5044 = vunpack.c.0.s8 %v5043
    %v5045 = vlaneseq
    %v5046 = vshrl.u32 %v5045, 7
    %v5047 = vsub.s32 %v5044, %v5046
    %v5048 = vrot.slane %v5020, %v5047
    %v5049 = vcombine.low %v5027, %v5034
    %v5050 = vcombine.low %v5041, %v5048
    %v5052 = vunpack.c.l.s4 1966171168
    %v5053 = vunpack.c.0.s8 %v5052
    %v5054 = vlaneseq
    %v5055 = vshrl.u32 %v5054, 7
    %v5056 = vsub.s32 %v5053, %v5055
    %v5057 = vrot.slane %v5049, %v5056
    %v5059 = vunpack.c.l.s4 1966171168
    %v5060 = vunpack.c.0.s8 %v5059
    %v5061 = vlaneseq
    %v5062 = vshrl.u32 %v5061, 7
    %v5063 = vsub.s32 %v5060, %v5062
    %v5064 = vrot.slane %v5050, %v5063
    %v5065 = vcombine.low %v5057, %v5064
    %5067 = vst [vmem:[#allocation16] sm:$0xff] %v5065
    %v5076 = vcombine.low %v4977, %v4978
    %v5077 = vcombine.low %v4979, %v4980
    %v5078 = vcombine.low %v4981, %v4982
    %v5079 = vcombine.low %v4983, %v4984
    %v5081 = vunpack.c.l.s4 1966171168
    %v5082 = vunpack.c.0.s8 %v5081
    %v5083 = vlaneseq
    %v5084 = vshrl.u32 %v5083, 7
    %v5085 = vsub.s32 %v5082, %v5084
    %v5086 = vrot.slane %v5076, %v5085
    %v5088 = vunpack.c.l.s4 1966171168
    %v5089 = vunpack.c.0.s8 %v5088
    %v5090 = vlaneseq
    %v5091 = vshrl.u32 %v5090, 7
    %v5092 = vsub.s32 %v5089, %v5091
    %v5093 = vrot.slane %v5077, %v5092
    %v5095 = vunpack.c.l.s4 1966171168
    %v5096 = vunpack.c.0.s8 %v5095
    %v5097 = vlaneseq
    %v5098 = vshrl.u32 %v5097, 7
    %v5099 = vsub.s32 %v5096, %v5098
    %v5100 = vrot.slane %v5078, %v5099
    %v5102 = vunpack.c.l.s4 1966171168
    %v5103 = vunpack.c.0.s8 %v5102
    %v5104 = vlaneseq
    %v5105 = vshrl.u32 %v5104, 7
    %v5106 = vsub.s32 %v5103, %v5105
    %v5107 = vrot.slane %v5079, %v5106
    %v5108 = vcombine.low %v5086, %v5093
    %v5109 = vcombine.low %v5100, %v5107
    %v5111 = vunpack.c.l.s4 1966171168
    %v5112 = vunpack.c.0.s8 %v5111
    %v5113 = vlaneseq
    %v5114 = vshrl.u32 %v5113, 7
    %v5115 = vsub.s32 %v5112, %v5114
    %v5116 = vrot.slane %v5108, %v5115
    %v5118 = vunpack.c.l.s4 1966171168
    %v5119 = vunpack.c.0.s8 %v5118
    %v5120 = vlaneseq
    %v5121 = vshrl.u32 %v5120, 7
    %v5122 = vsub.s32 %v5119, %v5121
    %v5123 = vrot.slane %v5109, %v5122
    %v5124 = vcombine.low %v5116, %v5123
    %5126 = vst [vmem:[#allocation18] sm:$0xff] %v5124
    %v5127 = vld [vmem:[#allocation3] sm:$0xff]
    %v5128 = vld [vmem:[#allocation3 + $0x8] sm:$0xff]
    %v5129 = vld [vmem:[#allocation3 + $0x10] sm:$0xff]
    %v5130 = vld [vmem:[#allocation3 + $0x18] sm:$0xff]
    %v5131 = vld [vmem:[#allocation3 + $0x20] sm:$0xff]
    %v5132 = vld [vmem:[#allocation3 + $0x28] sm:$0xff]
    %v5133 = vld [vmem:[#allocation3 + $0x30] sm:$0xff]
    %v5134 = vld [vmem:[#allocation3 + $0x38] sm:$0xff]
    %v5135 = vld [vmem:[#allocation13] sm:$0xff]
    %v5136 = vld [vmem:[#allocation13 + $0x8] sm:$0xff]
    %v5137 = vld [vmem:[#allocation13 + $0x10] sm:$0xff]
    %v5138 = vld [vmem:[#allocation13 + $0x18] sm:$0xff]
    %v5139 = vld [vmem:[#allocation13 + $0x20] sm:$0xff]
    %v5140 = vld [vmem:[#allocation13 + $0x28] sm:$0xff]
    %v5141 = vld [vmem:[#allocation13 + $0x30] sm:$0xff]
    %v5142 = vld [vmem:[#allocation13 + $0x38] sm:$0xff]
    %v5143 = vld [vmem:[#allocation13 + $0x40] sm:$0xff]
    %v5144 = vld [vmem:[#allocation13 + $0x48] sm:$0xff]
    %v5145 = vld [vmem:[#allocation13 + $0x50] sm:$0xff]
    %v5146 = vld [vmem:[#allocation13 + $0x58] sm:$0xff]
    %v5147 = vld [vmem:[#allocation13 + $0x60] sm:$0xff]
    %v5148 = vld [vmem:[#allocation13 + $0x68] sm:$0xff]
    %v5149 = vld [vmem:[#allocation13 + $0x70] sm:$0xff]
    %v5150 = vld [vmem:[#allocation13 + $0x78] sm:$0xff]
    %v5151 = vld [vmem:[#allocation13 + $0x80] sm:$0xff]
    %v5152 = vld [vmem:[#allocation13 + $0x88] sm:$0xff]
    %v5153 = vld [vmem:[#allocation13 + $0x90] sm:$0xff]
    %v5154 = vld [vmem:[#allocation13 + $0x98] sm:$0xff]
    %v5155 = vld [vmem:[#allocation13 + $0xa0] sm:$0xff]
    %v5156 = vld [vmem:[#allocation13 + $0xa8] sm:$0xff]
    %v5157 = vld [vmem:[#allocation13 + $0xb0] sm:$0xff]
    %v5158 = vld [vmem:[#allocation13 + $0xb8] sm:$0xff]
    %v5159 = vld [vmem:[#allocation13 + $0xc0] sm:$0xff]
    %v5160 = vld [vmem:[#allocation13 + $0xc8] sm:$0xff]
    %v5161 = vld [vmem:[#allocation13 + $0xd0] sm:$0xff]
    %v5162 = vld [vmem:[#allocation13 + $0xd8] sm:$0xff]
    %v5163 = vld [vmem:[#allocation13 + $0xe0] sm:$0xff]
    %v5164 = vld [vmem:[#allocation13 + $0xe8] sm:$0xff]
    %v5165 = vld [vmem:[#allocation13 + $0xf0] sm:$0xff]
    %v5166 = vld [vmem:[#allocation13 + $0xf8] sm:$0xff]
    %v5167 = vld [vmem:[%s7] sm:$0x3]
    %v5169 = vlaneseq
    %v5170 = vshrl.u32 %v5169, 7
    %v5171 = vsub.s32 0, %v5170
    %v5172 = vrot.slane %v5167, %v5171
    %v5173 = vlaneseq
    %v5174 = vshrl.u32 %v5173, 7
    %v5175 = vsub.s32 1, %v5174
    %v5176 = vrot.slane %v5167, %v5175
    %5179 = vmatprep.subr.mxu0 %v5166
    %5180 = vmatpush1.msra.mxu0 %v5165
    %5181 = vmatprep.subr.mxu0 %v5164
    %5182 = vmatpush1.msra.mxu0 %v5163
    %5183 = vmatprep.subr.mxu0 %v5162
    %5184 = vmatpush1.msra.mxu0 %v5161
    %5185 = vmatprep.subr.mxu0 %v5160
    %5186 = vmatpush1.msra.mxu0 %v5159
    %5187 = vmatprep.subr.mxu0 %v5158
    %5188 = vmatpush1.msra.mxu0 %v5157
    %5189 = vmatprep.subr.mxu0 %v5156
    %5190 = vmatpush1.msra.mxu0 %v5155
    %5191 = vmatprep.subr.mxu0 %v5154
    %5192 = vmatpush1.msra.mxu0 %v5153
    %5193 = vmatprep.subr.mxu0 %v5152
    %5194 = vmatpush1.msra.mxu0 %v5151
    %5195 = vmatprep.subr.mxu0 %v5150
    %5196 = vmatpush1.msra.mxu0 %v5149
    %5197 = vmatprep.subr.mxu0 %v5148
    %5198 = vmatpush1.msra.mxu0 %v5147
    %5199 = vmatprep.subr.mxu0 %v5146
    %5200 = vmatpush1.msra.mxu0 %v5145
    %5201 = vmatprep.subr.mxu0 %v5144
    %5202 = vmatpush1.msra.mxu0 %v5143
    %5203 = vmatprep.subr.mxu0 %v5142
    %5204 = vmatpush1.msra.mxu0 %v5141
    %5205 = vmatprep.subr.mxu0 %v5140
    %5206 = vmatpush1.msra.mxu0 %v5139
    %5207 = vmatprep.subr.mxu0 %v5138
    %5208 = vmatpush1.msra.mxu0 %v5137
    %5209 = vmatprep.subr.mxu0 %v5136
    %5210 = vmatpush1.msra.mxu0 %v5135
    %5211 = vmatprep.subr.mxu0 0.0
    %5212 = vmatpush2.msra.mxu0 0.0
    %5213 = vmatprep.subr.mxu0 0.0
    %5214 = vmatpush2.msra.mxu0 0.0
    %5215 = vmatprep.subr.mxu0 0.0
    %5216 = vmatpush2.msra.mxu0 0.0
    %5217 = vmatprep.subr.mxu0 0.0
    %5218 = vmatpush2.msra.mxu0 0.0
    %5219 = vmatprep.subr.mxu0 0.0
    %5220 = vmatpush2.msra.mxu0 0.0
    %5221 = vmatprep.subr.mxu0 0.0
    %5222 = vmatpush2.msra.mxu0 0.0
    %5223 = vmatprep.subr.mxu0 0.0
    %5224 = vmatpush2.msra.mxu0 0.0
    %5225 = vmatprep.subr.mxu0 0.0
    %5226 = vmatpush2.msra.mxu0 0.0
    %5227 = vmatprep.subr.mxu0 0.0
    %5228 = vmatpush2.msra.mxu0 0.0
    %5229 = vmatprep.subr.mxu0 0.0
    %5230 = vmatpush2.msra.mxu0 0.0
    %5231 = vmatprep.subr.mxu0 0.0
    %5232 = vmatpush2.msra.mxu0 0.0
    %5233 = vmatprep.subr.mxu0 0.0
    %5234 = vmatpush2.msra.mxu0 0.0
    %5235 = vmatprep.subr.mxu0 0.0
    %5236 = vmatpush2.msra.mxu0 0.0
    %5237 = vmatprep.subr.mxu0 0.0
    %5238 = vmatpush2.msra.mxu0 0.0
    %5239 = vmatprep.subr.mxu0 0.0
    %5240 = vmatpush2.msra.mxu0 0.0
    %5241 = vmatprep.subr.mxu0 0.0
    %5242 = vmatpush2.msra.mxu0 0.0
    %5243 = vmatprep.mubr.f32.mxu0 0.0
    %5244 = vmatmul.mubr.f32.gmra.mxu0 %v5127
    %v5245 = vpop.f32.mrf.mxu0
    %v5246 = vadd.f32 %v5172, %v5245
    %v5247 = vpop.f32.mrf.mxu0
    %v5248 = vadd.f32 %v5176, %v5247
    %5249 = vmatprep.mubr.f32.mxu0 0.0
    %5250 = vmatmul.mubr.f32.gmra.mxu0 %v5128
    %v5251 = vpop.f32.mrf.mxu0
    %v5252 = vadd.f32 %v5172, %v5251
    %v5253 = vpop.f32.mrf.mxu0
    %v5254 = vadd.f32 %v5176, %v5253
    %5255 = vmatprep.mubr.f32.mxu0 0.0
    %5256 = vmatmul.mubr.f32.gmra.mxu0 %v5129
    %v5257 = vpop.f32.mrf.mxu0
    %v5258 = vadd.f32 %v5172, %v5257
    %v5259 = vpop.f32.mrf.mxu0
    %v5260 = vadd.f32 %v5176, %v5259
    %5261 = vmatprep.mubr.f32.mxu0 0.0
    %5262 = vmatmul.mubr.f32.gmra.mxu0 %v5130
    %v5263 = vpop.f32.mrf.mxu0
    %v5264 = vadd.f32 %v5172, %v5263
    %v5265 = vpop.f32.mrf.mxu0
    %v5266 = vadd.f32 %v5176, %v5265
    %5267 = vmatprep.mubr.f32.mxu0 0.0
    %5268 = vmatmul.mubr.f32.gmra.mxu0 %v5131
    %v5269 = vpop.f32.mrf.mxu0
    %v5270 = vadd.f32 %v5172, %v5269
    %v5271 = vpop.f32.mrf.mxu0
    %v5272 = vadd.f32 %v5176, %v5271
    %5273 = vmatprep.mubr.f32.mxu0 0.0
    %5274 = vmatmul.mubr.f32.gmra.mxu0 %v5132
    %v5275 = vpop.f32.mrf.mxu0
    %v5276 = vadd.f32 %v5172, %v5275
    %v5277 = vpop.f32.mrf.mxu0
    %v5278 = vadd.f32 %v5176, %v5277
    %5279 = vmatprep.mubr.f32.mxu0 0.0
    %5280 = vmatmul.mubr.f32.gmra.mxu0 %v5133
    %v5281 = vpop.f32.mrf.mxu0
    %v5282 = vadd.f32 %v5172, %v5281
    %v5283 = vpop.f32.mrf.mxu0
    %v5284 = vadd.f32 %v5176, %v5283
    %5285 = vmatprep.mubr.f32.mxu0 0.0
    %5286 = vmatmul.mubr.f32.gmra.mxu0 %v5134
    %v5287 = vpop.f32.mrf.mxu0
    %v5288 = vadd.f32 %v5172, %v5287
    %v5289 = vpop.f32.mrf.mxu0
    %v5290 = vadd.f32 %v5176, %v5289
    %5291 = vdwg.mxu0
    %5292 = vst [vmem:[#allocation15] sm:$0xff] %v5246
    %5293 = vst [vmem:[#allocation15 + $0x8] sm:$0xff] %v5248
    %5294 = vst [vmem:[#allocation15 + $0x10] sm:$0xff] %v5252
    %5295 = vst [vmem:[#allocation15 + $0x18] sm:$0xff] %v5254
    %5296 = vst [vmem:[#allocation15 + $0x20] sm:$0xff] %v5258
    %5297 = vst [vmem:[#allocation15 + $0x28] sm:$0xff] %v5260
    %5298 = vst [vmem:[#allocation15 + $0x30] sm:$0xff] %v5264
    %5299 = vst [vmem:[#allocation15 + $0x38] sm:$0xff] %v5266
    %5300 = vst [vmem:[#allocation15 + $0x40] sm:$0xff] %v5270
    %5301 = vst [vmem:[#allocation15 + $0x48] sm:$0xff] %v5272
    %5302 = vst [vmem:[#allocation15 + $0x50] sm:$0xff] %v5276
    %5303 = vst [vmem:[#allocation15 + $0x58] sm:$0xff] %v5278
    %5304 = vst [vmem:[#allocation15 + $0x60] sm:$0xff] %v5282
    %5305 = vst [vmem:[#allocation15 + $0x68] sm:$0xff] %v5284
    %5306 = vst [vmem:[#allocation15 + $0x70] sm:$0xff] %v5288
    %5307 = vst [vmem:[#allocation15 + $0x78] sm:$0xff] %v5290
    // Predicated region
    $region58: #{tpu_custom_call.1} parent=1 // pred_check
      _
    $region59: #{tpu_custom_call.1} parent=1 // pred_check_branch
      %5309 = sbr.rel (0) target = $region61
    $region60: #{tpu_custom_call.1} parent=1 // pred_region
      %s5311 = ssub.s32 2048, 2048
      %5312 = vsyncadd [#allocation6], %s5311
      %s5313 = sshll.u32 [#allocation15], 4
      %s5314 = int_to_ptr.vmem [resolvable:$true] %s5313
      %5319 = dma.vmem_to_hbm [thread:$0]  %s5314, 2048, %s8, [#allocation6], 256, 256, 16
    $region61: #{tpu_custom_call.1} parent=1 // pred_fallthru
      _
    // Predicated region
    $region62: #{tpu_custom_call.1} parent=1 // pred_check
      _
    $region63: #{tpu_custom_call.1} parent=1 // pred_check_branch
      %5321 = sbr.rel (0) target = $region65
    $region64: #{tpu_custom_call.1} parent=1 // pred_region
      %s5323 = ssub.s32 128, 128
      %5324 = vsyncadd [#allocation17], %s5323
      %s5326 = sshll.u32 [#allocation16], 4
      %s5327 = int_to_ptr.vmem [resolvable:$true] %s5326
      %5329 = dma.vmem_to_hbm [thread:$0]  %s5327, 128, %s9, [#allocation17]
    $region65: #{tpu_custom_call.1} parent=1 // pred_fallthru
      _
    // Predicated region
    $region66: #{tpu_custom_call.1} parent=1 // pred_check
      _
    $region67: #{tpu_custom_call.1} parent=1 // pred_check_branch
      %5331 = sbr.rel (0) target = $region69
    $region68: #{tpu_custom_call.1} parent=1 // pred_region
      %s5333 = ssub.s32 128, 128
      %5334 = vsyncadd [#allocation17], %s5333
      %s5336 = sshll.u32 [#allocation18], 4
      %s5337 = int_to_ptr.vmem [resolvable:$true] %s5336
      %5339 = dma.vmem_to_hbm [thread:$0]  %s5337, 128, %s10, [#allocation17]
    $region69: #{tpu_custom_call.1} parent=1 // pred_fallthru
      _
    // Predicated region
    $region70: #{tpu_custom_call.1} parent=1 // pred_check
      _
    $region71: #{tpu_custom_call.1} parent=1 // pred_check_branch
      %5341 = sbr.rel (0) target = $region73
    $region72: #{tpu_custom_call.1} parent=1 // pred_region
      %5342 = dma.done [#allocation6], 2048
    $region73: #{tpu_custom_call.1} parent=1 // pred_fallthru
      _
    // Predicated region
    $region74: #{tpu_custom_call.1} parent=1 // pred_check
      _
    $region75: #{tpu_custom_call.1} parent=1 // pred_check_branch
      %5344 = sbr.rel (0) target = $region77
    $region76: #{tpu_custom_call.1} parent=1 // pred_region
      %5345 = dma.done [#allocation17], 128
    $region77: #{tpu_custom_call.1} parent=1 // pred_fallthru
      _
    // Predicated region
    $region78: #{tpu_custom_call.1} parent=1 // pred_check
      _
    $region79: #{tpu_custom_call.1} parent=1 // pred_check_branch
      %5347 = sbr.rel (0) target = $region81
    $region80: #{tpu_custom_call.1} parent=1 // pred_region
      %5348 = dma.done [#allocation17], 128
    $region81: #{tpu_custom_call.1} parent=1 // pred_fallthru
      _
    %5349 = vsyncpa [#allocation5], 1
    %5350 = vsyncpa [#allocation8], 1
    %5351 = vsyncpa [#allocation11], 1
    %5352 = vsyncpa [#allocation14], 1
    %5353 = vsyncpa [#allocation6], 1
    %5354 = vsyncpa [#allocation17], 1

</llo_original>
